<compile_context>
chip_gen: v6e
topology: v6e:2x2x1
jax: 0.10.0
libtpu: 0.0.40
codegen_flags: <defaults>
</compile_context>

<pallas_src>
import functools

import jax
import jax.numpy as jnp
from jax.experimental import pallas as pl
from jax.experimental.pallas import tpu as pltpu


# ----------------------------- tile selection -------------------------------

def _pick_spatial_tile(n_pad, c, kk, batch, budget=12 * 1024 * 1024):
    """Largest 128-multiple lane tile whose f32 working set fits `budget`,
    while keeping >= 2 parallel grid steps so both v7x TensorCores get work."""
    # Dominant residents per lane column: per-tap k/v + their LN'd copies in f32,
    # plus ~16 (C,) f32 temporaries (q, logits, ov, out, ...).
    per_col = (4 * kk * c + 16 * c) * 4
    tn = 128
    for cand in (1024, 512, 256, 128):
        if n_pad % cand == 0 and per_col * cand <= budget:
            tn = cand
            break
    while batch * (n_pad // tn) < 2 and tn > 128:
        tn //= 2
    return tn


# ------------------- fused qkv + down_q + LN + attention + proj -------------

def _eap_fused_kernel(xp_ref, wkv_ref, wdq_ref,
                      gq_ref, bq_ref, gk_ref, bk_ref, gv_ref, bv_ref,
                      wp_ref, bp_ref, o_ref,
                      *, num_heads, head_dim, kk, cin, scale, eps):
    C = num_heads * head_dim
    xp = xp_ref[0]                                    # (KK*Cin, tn) bf16, n on lanes

    # Fused 1x1 qkv conv (q rows) + depthwise down_q: single K = KK*Cin matmul.
    dq = jnp.dot(wdq_ref[...], xp,
                 preferred_element_type=jnp.float32)  # (C, tn) f32

    # Fused 1x1 qkv conv for the k/v taps: 9 small MXU ops, results stay in VMEM.
    wkv = wkv_ref[...]                                # (2C, Cin) bf16
    kv = jnp.stack(
        [jnp.dot(wkv, xp[t * cin:(t + 1) * cin, :],
                 preferred_element_type=jnp.float32) for t in range(kk)],
        axis=0)                                       # (KK, 2C, tn) f32

    def ln_c(t, g, b):                                # channels-first LN (axis=-2)
        u = jnp.mean(t, axis=-2, keepdims=True)
        tc = t - u
        s = jnp.mean(tc * tc, axis=-2, keepdims=True)
        return tc * jax.lax.rsqrt(s + eps) * g + b

    qn = ln_c(dq, gq_ref[...], bq_ref[...])           # (C, tn)
    kn = ln_c(kv[:, :C, :], gk_ref[...], bk_ref[...])  # (KK, C, tn)
    vn = ln_c(kv[:, C:, :], gv_ref[...], bv_ref[...])  # (KK, C, tn)

    # Per-window softmax attention.  Heads are static, sublane-aligned 32-row
    # slices (no reshapes across the tile boundary, no transposes).
    ov_heads = []
    for h in range(num_heads):
        sl = slice(h * head_dim, (h + 1) * head_dim)
        qh = qn[sl]                                   # (hd, tn)
        kh = kn[:, sl, :]                             # (KK, hd, tn)
        vh = vn[:, sl, :]                             # (KK, hd, tn)
        logits = jnp.sum(qh * kh, axis=1) * scale     # (KK, tn)
        m = jnp.max(logits, axis=0, keepdims=True)
        p = jnp.exp(logits - m)
        p = p * pl.reciprocal(jnp.sum(p, axis=0, keepdims=True), approx=True)
        ov_heads.append(jnp.sum(p[:, None, :] * vh, axis=0))     # (hd, tn)
    ov = jnp.concatenate(ov_heads, axis=0)            # (C, tn)

    # Channels-first projection: one (C,C)@(C,tn) MXU op, lane-dense output store.
    out = jnp.dot(wp_ref[...], ov.astype(jnp.bfloat16),
                  preferred_element_type=jnp.float32)  # (C, tn)
    o_ref[0] = out + bp_ref[...]


def eap_fused_attention(xpat, w_kv, w_dq, gq, bq, gk, bk, gv, bv, w_proj, b_proj,
                        *, num_heads, head_dim, kk, cin, scale, eps=1e-6):
    """xpat: (B, KK*Cin, n_pad) bf16 unfolded-input patches (n on lanes).
    Returns channels-first output (B, C, n_pad) f32."""
    B, KC, n_pad = xpat.shape
    C = num_heads * head_dim
    tn = _pick_spatial_tile(n_pad, C, kk, B)

    def cvec(a):
        return a.reshape(C, 1).astype(jnp.float32)

    kernel = functools.partial(_eap_fused_kernel, num_heads=num_heads,
                               head_dim=head_dim, kk=kk, cin=cin,
                               scale=scale, eps=eps)
    param_spec = pl.BlockSpec((C, 1), lambda b, j: (0, 0))
    return pl.pallas_call(
        kernel,
        out_shape=jax.ShapeDtypeStruct((B, C, n_pad), jnp.float32),
        grid=(B, n_pad // tn),
        in_specs=[
            pl.BlockSpec((1, KC, tn), lambda b, j: (b, 0, j)),
            pl.BlockSpec((2 * C, cin), lambda b, j: (0, 0)),
            pl.BlockSpec((C, kk * cin), lambda b, j: (0, 0)),
            param_spec, param_spec, param_spec, param_spec, param_spec, param_spec,
            pl.BlockSpec((C, C), lambda b, j: (0, 0)),
            param_spec,
        ],
        out_specs=pl.BlockSpec((1, C, tn), lambda b, j: (b, 0, j)),
        compiler_params=pltpu.CompilerParams(
            dimension_semantics=("parallel", "parallel"),
            vmem_limit_bytes=32 * 1024 * 1024),
    )(xpat,
      w_kv.astype(jnp.bfloat16), w_dq.astype(jnp.bfloat16),
      cvec(gq), cvec(bq), cvec(gk), cvec(bk), cvec(gv), cvec(bv),
      w_proj.astype(jnp.bfloat16), cvec(b_proj))


# ------------------------------- JAX glue ----------------------------------

def _unfold_cols(x, ksize, stride, pad):
    """torch.nn.Unfold taps: list of ksize*ksize arrays (B, C, h*w); tap index
    ki*ksize + kj, output positions row-major."""
    B, C, H, W = x.shape
    xp = jnp.pad(x, ((0, 0), (0, 0), (pad, pad), (pad, pad)))
    h = (H + 2 * pad - ksize) // stride + 1
    w = (W + 2 * pad - ksize) // stride + 1
    cols = []
    for ki in range(ksize):
        for kj in range(ksize):
            patch = xp[:, :, ki:ki + stride * h:stride, kj:kj + stride * w:stride]
            cols.append(patch.reshape(B, C, h * w))
    return cols


def unfold_patches(x, ksize, stride, pad):
    """(B,C,H,W) -> (B, C, ksize*ksize, h*w) (reference-side layout)."""
    return jnp.stack(_unfold_cols(x, ksize, stride, pad), axis=2)


def eap_v1_forward(x, params, *, out_dim, head_dim, kernel_size=3, ratio=2):
    B, Cin, H, W = x.shape
    num_heads = out_dim // head_dim
    scale = head_dim ** (-0.5)
    pad = kernel_size // 2
    KK = kernel_size * kernel_size
    h, w = H // ratio, W // ratio
    n = h * w

    # im2col of the raw input (Cin channels) -- XLA glue.  Tap-major (B, KK*Cin, n)
    # keeps n on the lane axis and C*KK dense on sublanes (no KK=9 padding).
    # TODO(synk): replace with halo-strip DMA inside the kernel to drop this HBM
    #             intermediate entirely (biggest remaining v5e/v6e lever).
    xpat = jnp.concatenate(_unfold_cols(x, kernel_size, ratio, pad),
                           axis=1).astype(jnp.bfloat16)        # (B, KK*Cin, n)
    n_pad = ((n + 127) // 128) * 128
    if n_pad != n:
        xpat = jnp.pad(xpat, ((0, 0), (0, 0), (0, n_pad - n)))

    # Fold the 1x1 qkv conv (q rows) and the depthwise down_q conv into one weight:
    # Wdq[c, kk*Cin + ci] = dw[c, kk] * Wq[c, ci]  (conv1x1 commutes with unfold).
    w_q = params["w_qkv"][:out_dim]                            # (C, Cin)
    w_kv = params["w_qkv"][out_dim:]                           # (2C, Cin)
    w_dq = (params["w_dw"][:, :, None] * w_q[:, None, :]).reshape(out_dim, KK * Cin)

    out_cf = eap_fused_attention(
        xpat, w_kv, w_dq,
        params["g_q"], params["b_q"], params["g_k"], params["b_k"],
        params["g_v"], params["b_v"], params["w_proj"], params["b_proj"],
        num_heads=num_heads, head_dim=head_dim, kk=KK, cin=Cin, scale=scale)

    out = jnp.transpose(out_cf[:, :, :n], (0, 2, 1))           # (B, n, C)
    return out, h, w


# ------------------------------ reference ----------------------------------

def reference_forward(x, params, *, out_dim, head_dim, kernel_size=3, ratio=2):
    B, Cin, H, W = x.shape
    nh = out_dim // head_dim
    scale = head_dim ** (-0.5)
    eps = 1e-6
    hp = jax.lax.Precision.HIGHEST

    qkv = jnp.einsum("oc,bchw->bohw", params["w_qkv"], x, precision=hp)
    q, kk_, v = jnp.split(qkv, 3, axis=1)

    pad = kernel_size // 2
    qp = unfold_patches(q, kernel_size, ratio, pad)              # (B, C, KK, n)
    kp = unfold_patches(kk_, kernel_size, ratio, pad)
    vp = unfold_patches(v, kernel_size, ratio, pad)
    dq = jnp.einsum("bckn,ck->bcn", qp, params["w_dw"], precision=hp)

    def ln_cf(t, g, b):
        u = jnp.mean(t, axis=1, keepdims=True)
        s = jnp.mean((t - u) ** 2, axis=1, keepdims=True)
        tn_ = (t - u) / jnp.sqrt(s + eps)
        shape = (1, -1) + (1,) * (t.ndim - 2)
        return g.reshape(shape) * tn_ + b.reshape(shape)

    qn = ln_cf(dq, params["g_q"], params["b_q"])                 # (B, C, n)
    kn = ln_cf(kp, params["g_k"], params["b_k"])                 # (B, C, KK, n)
    vn = ln_cf(vp, params["g_v"], params["b_v"])

    n = qn.shape[-1]
    KK = kernel_size * kernel_size
    q5 = qn.reshape(B, nh, head_dim, n)
    k5 = kn.reshape(B, nh, head_dim, KK, n)
    v5 = vn.reshape(B, nh, head_dim, KK, n)
    attn = jnp.einsum("bhcn,bhckn->bhkn", q5, k5, precision=hp) * scale
    attn = jax.nn.softmax(attn, axis=2)
    o = jnp.einsum("bhkn,bhckn->bhcn", attn, v5, precision=hp)
    o = o.reshape(B, out_dim, n).transpose(0, 2, 1)
    out = jnp.dot(o.reshape(B * n, out_dim), params["w_proj"].T,
                  precision=hp) + params["b_proj"]
    return out.reshape(B, n, out_dim)


# --------------------------------- main -------------------------------------

if __name__ == "__main__":
    B, dim, H, W = 2, 16, 16, 16
    out_dim, head_dim, ksize, ratio = 64, 32, 3, 2
    KK = ksize * ksize

    key = jax.random.PRNGKey(0)
    keys = jax.random.split(key, 12)
    x = jax.random.normal(keys[0], (B, dim, H, W), jnp.float32)

    params = {
        # nn.Conv2d(dim, out_dim*3, 1, bias=False): weight (3*out_dim, dim, 1, 1)
        "w_qkv": 0.2 * jax.random.normal(keys[1], (3 * out_dim, dim), jnp.float32),
        # depthwise Conv2d(out_dim, out_dim, 3, stride=2, groups=out_dim): (out_dim,1,3,3)
        "w_dw": 0.2 * jax.random.normal(keys[2], (out_dim, KK), jnp.float32),
        # LayerNorm params (channels_first)
        "g_q": 1.0 + 0.1 * jax.random.normal(keys[3], (out_dim,), jnp.float32),
        "b_q": 0.1 * jax.random.normal(keys[4], (out_dim,), jnp.float32),
        "g_k": 1.0 + 0.1 * jax.random.normal(keys[5], (out_dim,), jnp.float32),
        "b_k": 0.1 * jax.random.normal(keys[6], (out_dim,), jnp.float32),
        "g_v": 1.0 + 0.1 * jax.random.normal(keys[7], (out_dim,), jnp.float32),
        "b_v": 0.1 * jax.random.normal(keys[8], (out_dim,), jnp.float32),
        # nn.Linear(out_dim, out_dim)
        "w_proj": 0.2 * jax.random.normal(keys[9], (out_dim, out_dim), jnp.float32),
        "b_proj": 0.1 * jax.random.normal(keys[10], (out_dim,), jnp.float32),
    }

    out, h, w = eap_v1_forward(x, params, out_dim=out_dim, head_dim=head_dim,
                               kernel_size=ksize, ratio=ratio)
    out = jax.block_until_ready(out)

    assert out.shape == (B, (H // ratio) * (W // ratio), out_dim)
    assert (h, w) == (H // ratio, W // ratio)

    ref = reference_forward(x, params, out_dim=out_dim, head_dim=head_dim,
                            kernel_size=ksize, ratio=ratio)
    ref = jax.block_until_ready(ref)

    max_err = float(jnp.max(jnp.abs(out - ref)))
    ref_max = float(jnp.max(jnp.abs(ref)))
    if not (max_err <= 5e-2 * ref_max + 5e-2):   # bf16 matmul/storage path vs f32 ref
        raise SystemExit(
            f"mismatch vs reference: max|err|={max_err:.4f}, max|ref|={ref_max:.4f}")

    print("KERNEL_OK")
</pallas_src>

<mosaic_0001>
module attributes {stable_mosaic.version = 11 : i64} {
  func.func @_eap_fused_kernel(%arg0: i32, %arg1: i32, %arg2: memref<1x144x128xbf16, #tpu.memory_space<vmem>>, %arg3: memref<128x16xbf16, #tpu.memory_space<vmem>>, %arg4: memref<64x144xbf16, #tpu.memory_space<vmem>>, %arg5: memref<64x1xf32, #tpu.memory_space<vmem>>, %arg6: memref<64x1xf32, #tpu.memory_space<vmem>>, %arg7: memref<64x1xf32, #tpu.memory_space<vmem>>, %arg8: memref<64x1xf32, #tpu.memory_space<vmem>>, %arg9: memref<64x1xf32, #tpu.memory_space<vmem>>, %arg10: memref<64x1xf32, #tpu.memory_space<vmem>>, %arg11: memref<64x64xbf16, #tpu.memory_space<vmem>>, %arg12: memref<64x1xf32, #tpu.memory_space<vmem>>, %arg13: memref<1x64x128xf32, #tpu.memory_space<vmem>>) attributes {dimension_semantics = [#tpu.dimension_semantics<parallel>, #tpu.dimension_semantics<parallel>], iteration_bounds = array<i64: 2, 1>, scalar_prefetch = 0 : i64, scratch_operands = 0 : i64, tpu.core_type = #tpu.core_type<tc>, window_params = [{transform_indices = @transform_0, window_bounds = array<i64: 1, 144, 128>}, {pipeline_mode = #tpu.pipeline_mode<synchronous>, transform_indices = @transform_1, window_bounds = array<i64: 128, 16>}, {pipeline_mode = #tpu.pipeline_mode<synchronous>, transform_indices = @transform_2, window_bounds = array<i64: 64, 144>}, {pipeline_mode = #tpu.pipeline_mode<synchronous>, transform_indices = @transform_3, window_bounds = array<i64: 64, 1>}, {pipeline_mode = #tpu.pipeline_mode<synchronous>, transform_indices = @transform_4, window_bounds = array<i64: 64, 1>}, {pipeline_mode = #tpu.pipeline_mode<synchronous>, transform_indices = @transform_5, window_bounds = array<i64: 64, 1>}, {pipeline_mode = #tpu.pipeline_mode<synchronous>, transform_indices = @transform_6, window_bounds = array<i64: 64, 1>}, {pipeline_mode = #tpu.pipeline_mode<synchronous>, transform_indices = @transform_7, window_bounds = array<i64: 64, 1>}, {pipeline_mode = #tpu.pipeline_mode<synchronous>, transform_indices = @transform_8, window_bounds = array<i64: 64, 1>}, {pipeline_mode = #tpu.pipeline_mode<synchronous>, transform_indices = @transform_9, window_bounds = array<i64: 64, 64>}, {pipeline_mode = #tpu.pipeline_mode<synchronous>, transform_indices = @transform_10, window_bounds = array<i64: 64, 1>}, {transform_indices = @transform_11, window_bounds = array<i64: 1, 64, 128>}]} {
    %c0 = arith.constant 0 : index
    %c0_0 = arith.constant 0 : index
    %c0_1 = arith.constant 0 : index
    %0 = vector.load %arg2[%c0, %c0_0, %c0_1] : memref<1x144x128xbf16, #tpu.memory_space<vmem>>, vector<1x144x128xbf16>
    %1 = vector.shape_cast %0 : vector<1x144x128xbf16> to vector<144x128xbf16>
    %c0_2 = arith.constant 0 : index
    %c0_3 = arith.constant 0 : index
    %2 = vector.load %arg4[%c0_2, %c0_3] : memref<64x144xbf16, #tpu.memory_space<vmem>>, vector<64x144xbf16>
    %cst = arith.constant dense<0.000000e+00> : vector<64x128xf32>
    %3 = tpu.matmul %2, %1, %cst {dimension_numbers = #tpu.dot_dimension_numbers<[1], [0], [0], [1], [0, 0, 1, 1], [], []>} : vector<64x144xbf16>, vector<144x128xbf16>, vector<64x128xf32> -> vector<64x128xf32>
    %c0_4 = arith.constant 0 : index
    %c0_5 = arith.constant 0 : index
    %4 = vector.load %arg3[%c0_4, %c0_5] : memref<128x16xbf16, #tpu.memory_space<vmem>>, vector<128x16xbf16>
    %5 = vector.extract_strided_slice %1 {offsets = [0, 0], sizes = [16, 128], strides = [1, 1]} : vector<144x128xbf16> to vector<16x128xbf16>
    %cst_6 = arith.constant dense<0.000000e+00> : vector<128x128xf32>
    %6 = tpu.matmul %4, %5, %cst_6 {dimension_numbers = #tpu.dot_dimension_numbers<[1], [0], [0], [1], [0, 0, 1, 1], [], []>} : vector<128x16xbf16>, vector<16x128xbf16>, vector<128x128xf32> -> vector<128x128xf32>
    %7 = vector.extract_strided_slice %1 {offsets = [16, 0], sizes = [16, 128], strides = [1, 1]} : vector<144x128xbf16> to vector<16x128xbf16>
    %cst_7 = arith.constant dense<0.000000e+00> : vector<128x128xf32>
    %8 = tpu.matmul %4, %7, %cst_7 {dimension_numbers = #tpu.dot_dimension_numbers<[1], [0], [0], [1], [0, 0, 1, 1], [], []>} : vector<128x16xbf16>, vector<16x128xbf16>, vector<128x128xf32> -> vector<128x128xf32>
    %9 = vector.extract_strided_slice %1 {offsets = [32, 0], sizes = [16, 128], strides = [1, 1]} : vector<144x128xbf16> to vector<16x128xbf16>
    %cst_8 = arith.constant dense<0.000000e+00> : vector<128x128xf32>
    %10 = tpu.matmul %4, %9, %cst_8 {dimension_numbers = #tpu.dot_dimension_numbers<[1], [0], [0], [1], [0, 0, 1, 1], [], []>} : vector<128x16xbf16>, vector<16x128xbf16>, vector<128x128xf32> -> vector<128x128xf32>
    %11 = vector.extract_strided_slice %1 {offsets = [48, 0], sizes = [16, 128], strides = [1, 1]} : vector<144x128xbf16> to vector<16x128xbf16>
    %cst_9 = arith.constant dense<0.000000e+00> : vector<128x128xf32>
    %12 = tpu.matmul %4, %11, %cst_9 {dimension_numbers = #tpu.dot_dimension_numbers<[1], [0], [0], [1], [0, 0, 1, 1], [], []>} : vector<128x16xbf16>, vector<16x128xbf16>, vector<128x128xf32> -> vector<128x128xf32>
    %13 = vector.extract_strided_slice %1 {offsets = [64, 0], sizes = [16, 128], strides = [1, 1]} : vector<144x128xbf16> to vector<16x128xbf16>
    %cst_10 = arith.constant dense<0.000000e+00> : vector<128x128xf32>
    %14 = tpu.matmul %4, %13, %cst_10 {dimension_numbers = #tpu.dot_dimension_numbers<[1], [0], [0], [1], [0, 0, 1, 1], [], []>} : vector<128x16xbf16>, vector<16x128xbf16>, vector<128x128xf32> -> vector<128x128xf32>
    %15 = vector.extract_strided_slice %1 {offsets = [80, 0], sizes = [16, 128], strides = [1, 1]} : vector<144x128xbf16> to vector<16x128xbf16>
    %cst_11 = arith.constant dense<0.000000e+00> : vector<128x128xf32>
    %16 = tpu.matmul %4, %15, %cst_11 {dimension_numbers = #tpu.dot_dimension_numbers<[1], [0], [0], [1], [0, 0, 1, 1], [], []>} : vector<128x16xbf16>, vector<16x128xbf16>, vector<128x128xf32> -> vector<128x128xf32>
    %17 = vector.extract_strided_slice %1 {offsets = [96, 0], sizes = [16, 128], strides = [1, 1]} : vector<144x128xbf16> to vector<16x128xbf16>
    %cst_12 = arith.constant dense<0.000000e+00> : vector<128x128xf32>
    %18 = tpu.matmul %4, %17, %cst_12 {dimension_numbers = #tpu.dot_dimension_numbers<[1], [0], [0], [1], [0, 0, 1, 1], [], []>} : vector<128x16xbf16>, vector<16x128xbf16>, vector<128x128xf32> -> vector<128x128xf32>
    %19 = vector.extract_strided_slice %1 {offsets = [112, 0], sizes = [16, 128], strides = [1, 1]} : vector<144x128xbf16> to vector<16x128xbf16>
    %cst_13 = arith.constant dense<0.000000e+00> : vector<128x128xf32>
    %20 = tpu.matmul %4, %19, %cst_13 {dimension_numbers = #tpu.dot_dimension_numbers<[1], [0], [0], [1], [0, 0, 1, 1], [], []>} : vector<128x16xbf16>, vector<16x128xbf16>, vector<128x128xf32> -> vector<128x128xf32>
    %21 = vector.extract_strided_slice %1 {offsets = [128, 0], sizes = [16, 128], strides = [1, 1]} : vector<144x128xbf16> to vector<16x128xbf16>
    %cst_14 = arith.constant dense<0.000000e+00> : vector<128x128xf32>
    %22 = tpu.matmul %4, %21, %cst_14 {dimension_numbers = #tpu.dot_dimension_numbers<[1], [0], [0], [1], [0, 0, 1, 1], [], []>} : vector<128x16xbf16>, vector<16x128xbf16>, vector<128x128xf32> -> vector<128x128xf32>
    %23 = vector.shape_cast %6 : vector<128x128xf32> to vector<1x128x128xf32>
    %24 = vector.shape_cast %8 : vector<128x128xf32> to vector<1x128x128xf32>
    %25 = vector.shape_cast %10 : vector<128x128xf32> to vector<1x128x128xf32>
    %26 = vector.shape_cast %12 : vector<128x128xf32> to vector<1x128x128xf32>
    %27 = vector.shape_cast %14 : vector<128x128xf32> to vector<1x128x128xf32>
    %28 = vector.shape_cast %16 : vector<128x128xf32> to vector<1x128x128xf32>
    %29 = vector.shape_cast %18 : vector<128x128xf32> to vector<1x128x128xf32>
    %30 = vector.shape_cast %20 : vector<128x128xf32> to vector<1x128x128xf32>
    %31 = vector.shape_cast %22 : vector<128x128xf32> to vector<1x128x128xf32>
    %32 = tpu.concatenate %23, %24, %25, %26, %27, %28, %29, %30, %31 in 0 : vector<1x128x128xf32>, vector<1x128x128xf32>, vector<1x128x128xf32>, vector<1x128x128xf32>, vector<1x128x128xf32>, vector<1x128x128xf32>, vector<1x128x128xf32>, vector<1x128x128xf32>, vector<1x128x128xf32> -> vector<9x128x128xf32>
    %c0_15 = arith.constant 0 : index
    %c0_16 = arith.constant 0 : index
    %33 = vector.load %arg5[%c0_15, %c0_16] : memref<64x1xf32, #tpu.memory_space<vmem>>, vector<64x1xf32>
    %c0_17 = arith.constant 0 : index
    %c0_18 = arith.constant 0 : index
    %34 = vector.load %arg6[%c0_17, %c0_18] : memref<64x1xf32, #tpu.memory_space<vmem>>, vector<64x1xf32>
    %cst_19 = arith.constant dense<0.000000e+00> : vector<128xf32>
    %35 = vector.multi_reduction <add>, %3, %cst_19 [0] : vector<64x128xf32> to vector<128xf32>
    %36 = vector.shape_cast %35 : vector<128xf32> to vector<1x128xf32>
    %cst_20 = arith.constant 6.400000e+01 : f32
    %37 = vector.broadcast %cst_20 : f32 to vector<1x128xf32>
    %38 = arith.divf %36, %37 : vector<1x128xf32>
    %39 = vector.broadcast %38 : vector<1x128xf32> to vector<64x128xf32>
    %40 = arith.subf %3, %39 : vector<64x128xf32>
    %41 = arith.mulf %40, %40 : vector<64x128xf32>
    %cst_21 = arith.constant dense<0.000000e+00> : vector<128xf32>
    %42 = vector.multi_reduction <add>, %41, %cst_21 [0] : vector<64x128xf32> to vector<128xf32>
    %43 = vector.shape_cast %42 : vector<128xf32> to vector<1x128xf32>
    %cst_22 = arith.constant 6.400000e+01 : f32
    %44 = vector.broadcast %cst_22 : f32 to vector<1x128xf32>
    %45 = arith.divf %43, %44 : vector<1x128xf32>
    %cst_23 = arith.constant 9.99999997E-7 : f32
    %46 = vector.broadcast %cst_23 : f32 to vector<1x128xf32>
    %47 = arith.addf %45, %46 : vector<1x128xf32>
    %48 = math.rsqrt %47 : vector<1x128xf32>
    %49 = vector.broadcast %48 : vector<1x128xf32> to vector<64x128xf32>
    %50 = arith.mulf %40, %49 : vector<64x128xf32>
    %51 = vector.broadcast %33 : vector<64x1xf32> to vector<64x128xf32>
    %52 = arith.mulf %50, %51 : vector<64x128xf32>
    %53 = vector.broadcast %34 : vector<64x1xf32> to vector<64x128xf32>
    %54 = arith.addf %52, %53 : vector<64x128xf32>
    %55 = vector.extract_strided_slice %32 {offsets = [0, 0, 0], sizes = [9, 64, 128], strides = [1, 1, 1]} : vector<9x128x128xf32> to vector<9x64x128xf32>
    %c0_24 = arith.constant 0 : index
    %c0_25 = arith.constant 0 : index
    %56 = vector.load %arg7[%c0_24, %c0_25] : memref<64x1xf32, #tpu.memory_space<vmem>>, vector<64x1xf32>
    %c0_26 = arith.constant 0 : index
    %c0_27 = arith.constant 0 : index
    %57 = vector.load %arg8[%c0_26, %c0_27] : memref<64x1xf32, #tpu.memory_space<vmem>>, vector<64x1xf32>
    %cst_28 = arith.constant dense<0.000000e+00> : vector<9x128xf32>
    %58 = vector.multi_reduction <add>, %55, %cst_28 [1] : vector<9x64x128xf32> to vector<9x128xf32>
    %59 = vector.shape_cast %58 : vector<9x128xf32> to vector<9x1x128xf32>
    %cst_29 = arith.constant 6.400000e+01 : f32
    %60 = vector.broadcast %cst_29 : f32 to vector<9x1x128xf32>
    %61 = arith.divf %59, %60 : vector<9x1x128xf32>
    %62 = vector.broadcast %61 : vector<9x1x128xf32> to vector<9x64x128xf32>
    %63 = arith.subf %55, %62 : vector<9x64x128xf32>
    %64 = arith.mulf %63, %63 : vector<9x64x128xf32>
    %cst_30 = arith.constant dense<0.000000e+00> : vector<9x128xf32>
    %65 = vector.multi_reduction <add>, %64, %cst_30 [1] : vector<9x64x128xf32> to vector<9x128xf32>
    %66 = vector.shape_cast %65 : vector<9x128xf32> to vector<9x1x128xf32>
    %cst_31 = arith.constant 6.400000e+01 : f32
    %67 = vector.broadcast %cst_31 : f32 to vector<9x1x128xf32>
    %68 = arith.divf %66, %67 : vector<9x1x128xf32>
    %cst_32 = arith.constant 9.99999997E-7 : f32
    %69 = vector.broadcast %cst_32 : f32 to vector<9x1x128xf32>
    %70 = arith.addf %68, %69 : vector<9x1x128xf32>
    %71 = math.rsqrt %70 : vector<9x1x128xf32>
    %72 = vector.broadcast %71 : vector<9x1x128xf32> to vector<9x64x128xf32>
    %73 = arith.mulf %63, %72 : vector<9x64x128xf32>
    %74 = vector.shape_cast %56 : vector<64x1xf32> to vector<1x64x1xf32>
    %75 = vector.broadcast %74 : vector<1x64x1xf32> to vector<9x64x128xf32>
    %76 = arith.mulf %73, %75 : vector<9x64x128xf32>
    %77 = vector.shape_cast %57 : vector<64x1xf32> to vector<1x64x1xf32>
    %78 = vector.broadcast %77 : vector<1x64x1xf32> to vector<9x64x128xf32>
    %79 = arith.addf %76, %78 : vector<9x64x128xf32>
    %80 = vector.extract_strided_slice %32 {offsets = [0, 64, 0], sizes = [9, 64, 128], strides = [1, 1, 1]} : vector<9x128x128xf32> to vector<9x64x128xf32>
    %c0_33 = arith.constant 0 : index
    %c0_34 = arith.constant 0 : index
    %81 = vector.load %arg9[%c0_33, %c0_34] : memref<64x1xf32, #tpu.memory_space<vmem>>, vector<64x1xf32>
    %c0_35 = arith.constant 0 : index
    %c0_36 = arith.constant 0 : index
    %82 = vector.load %arg10[%c0_35, %c0_36] : memref<64x1xf32, #tpu.memory_space<vmem>>, vector<64x1xf32>
    %cst_37 = arith.constant dense<0.000000e+00> : vector<9x128xf32>
    %83 = vector.multi_reduction <add>, %80, %cst_37 [1] : vector<9x64x128xf32> to vector<9x128xf32>
    %84 = vector.shape_cast %83 : vector<9x128xf32> to vector<9x1x128xf32>
    %cst_38 = arith.constant 6.400000e+01 : f32
    %85 = vector.broadcast %cst_38 : f32 to vector<9x1x128xf32>
    %86 = arith.divf %84, %85 : vector<9x1x128xf32>
    %87 = vector.broadcast %86 : vector<9x1x128xf32> to vector<9x64x128xf32>
    %88 = arith.subf %80, %87 : vector<9x64x128xf32>
    %89 = arith.mulf %88, %88 : vector<9x64x128xf32>
    %cst_39 = arith.constant dense<0.000000e+00> : vector<9x128xf32>
    %90 = vector.multi_reduction <add>, %89, %cst_39 [1] : vector<9x64x128xf32> to vector<9x128xf32>
    %91 = vector.shape_cast %90 : vector<9x128xf32> to vector<9x1x128xf32>
    %cst_40 = arith.constant 6.400000e+01 : f32
    %92 = vector.broadcast %cst_40 : f32 to vector<9x1x128xf32>
    %93 = arith.divf %91, %92 : vector<9x1x128xf32>
    %cst_41 = arith.constant 9.99999997E-7 : f32
    %94 = vector.broadcast %cst_41 : f32 to vector<9x1x128xf32>
    %95 = arith.addf %93, %94 : vector<9x1x128xf32>
    %96 = math.rsqrt %95 : vector<9x1x128xf32>
    %97 = vector.broadcast %96 : vector<9x1x128xf32> to vector<9x64x128xf32>
    %98 = arith.mulf %88, %97 : vector<9x64x128xf32>
    %99 = vector.shape_cast %81 : vector<64x1xf32> to vector<1x64x1xf32>
    %100 = vector.broadcast %99 : vector<1x64x1xf32> to vector<9x64x128xf32>
    %101 = arith.mulf %98, %100 : vector<9x64x128xf32>
    %102 = vector.shape_cast %82 : vector<64x1xf32> to vector<1x64x1xf32>
    %103 = vector.broadcast %102 : vector<1x64x1xf32> to vector<9x64x128xf32>
    %104 = arith.addf %101, %103 : vector<9x64x128xf32>
    %105 = vector.extract_strided_slice %54 {offsets = [0, 0], sizes = [32, 128], strides = [1, 1]} : vector<64x128xf32> to vector<32x128xf32>
    %106 = vector.extract_strided_slice %79 {offsets = [0, 0, 0], sizes = [9, 32, 128], strides = [1, 1, 1]} : vector<9x64x128xf32> to vector<9x32x128xf32>
    %107 = vector.extract_strided_slice %104 {offsets = [0, 0, 0], sizes = [9, 32, 128], strides = [1, 1, 1]} : vector<9x64x128xf32> to vector<9x32x128xf32>
    %108 = vector.shape_cast %105 : vector<32x128xf32> to vector<1x32x128xf32>
    %109 = vector.broadcast %108 : vector<1x32x128xf32> to vector<9x32x128xf32>
    %110 = arith.mulf %109, %106 : vector<9x32x128xf32>
    %cst_42 = arith.constant dense<0.000000e+00> : vector<9x128xf32>
    %111 = vector.multi_reduction <add>, %110, %cst_42 [1] : vector<9x32x128xf32> to vector<9x128xf32>
    %cst_43 = arith.constant 0.176776692 : f32
    %112 = vector.broadcast %cst_43 : f32 to vector<9x128xf32>
    %113 = arith.mulf %111, %112 : vector<9x128xf32>
    %cst_44 = arith.constant dense<0xFF800000> : vector<128xf32>
    %114 = vector.multi_reduction <maximumf>, %113, %cst_44 [0] : vector<9x128xf32> to vector<128xf32>
    %115 = vector.shape_cast %114 : vector<128xf32> to vector<1x128xf32>
    %116 = vector.broadcast %115 : vector<1x128xf32> to vector<9x128xf32>
    %117 = arith.subf %113, %116 : vector<9x128xf32>
    %118 = math.exp %117 : vector<9x128xf32>
    %cst_45 = arith.constant dense<0.000000e+00> : vector<128xf32>
    %119 = vector.multi_reduction <add>, %118, %cst_45 [0] : vector<9x128xf32> to vector<128xf32>
    %120 = vector.shape_cast %119 : vector<128xf32> to vector<1x128xf32>
    %121 = tpu.reciprocal %120 {approx = true} : vector<1x128xf32> -> vector<1x128xf32>
    %122 = vector.broadcast %121 : vector<1x128xf32> to vector<9x128xf32>
    %123 = arith.mulf %118, %122 : vector<9x128xf32>
    %124 = vector.shape_cast %123 : vector<9x128xf32> to vector<9x1x128xf32>
    %125 = vector.broadcast %124 : vector<9x1x128xf32> to vector<9x32x128xf32>
    %126 = arith.mulf %125, %107 : vector<9x32x128xf32>
    %cst_46 = arith.constant dense<0.000000e+00> : vector<32x128xf32>
    %127 = vector.multi_reduction <add>, %126, %cst_46 [0] : vector<9x32x128xf32> to vector<32x128xf32>
    %128 = vector.extract_strided_slice %54 {offsets = [32, 0], sizes = [32, 128], strides = [1, 1]} : vector<64x128xf32> to vector<32x128xf32>
    %129 = vector.extract_strided_slice %79 {offsets = [0, 32, 0], sizes = [9, 32, 128], strides = [1, 1, 1]} : vector<9x64x128xf32> to vector<9x32x128xf32>
    %130 = vector.extract_strided_slice %104 {offsets = [0, 32, 0], sizes = [9, 32, 128], strides = [1, 1, 1]} : vector<9x64x128xf32> to vector<9x32x128xf32>
    %131 = vector.shape_cast %128 : vector<32x128xf32> to vector<1x32x128xf32>
    %132 = vector.broadcast %131 : vector<1x32x128xf32> to vector<9x32x128xf32>
    %133 = arith.mulf %132, %129 : vector<9x32x128xf32>
    %cst_47 = arith.constant dense<0.000000e+00> : vector<9x128xf32>
    %134 = vector.multi_reduction <add>, %133, %cst_47 [1] : vector<9x32x128xf32> to vector<9x128xf32>
    %cst_48 = arith.constant 0.176776692 : f32
    %135 = vector.broadcast %cst_48 : f32 to vector<9x128xf32>
    %136 = arith.mulf %134, %135 : vector<9x128xf32>
    %cst_49 = arith.constant dense<0xFF800000> : vector<128xf32>
    %137 = vector.multi_reduction <maximumf>, %136, %cst_49 [0] : vector<9x128xf32> to vector<128xf32>
    %138 = vector.shape_cast %137 : vector<128xf32> to vector<1x128xf32>
    %139 = vector.broadcast %138 : vector<1x128xf32> to vector<9x128xf32>
    %140 = arith.subf %136, %139 : vector<9x128xf32>
    %141 = math.exp %140 : vector<9x128xf32>
    %cst_50 = arith.constant dense<0.000000e+00> : vector<128xf32>
    %142 = vector.multi_reduction <add>, %141, %cst_50 [0] : vector<9x128xf32> to vector<128xf32>
    %143 = vector.shape_cast %142 : vector<128xf32> to vector<1x128xf32>
    %144 = tpu.reciprocal %143 {approx = true} : vector<1x128xf32> -> vector<1x128xf32>
    %145 = vector.broadcast %144 : vector<1x128xf32> to vector<9x128xf32>
    %146 = arith.mulf %141, %145 : vector<9x128xf32>
    %147 = vector.shape_cast %146 : vector<9x128xf32> to vector<9x1x128xf32>
    %148 = vector.broadcast %147 : vector<9x1x128xf32> to vector<9x32x128xf32>
    %149 = arith.mulf %148, %130 : vector<9x32x128xf32>
    %cst_51 = arith.constant dense<0.000000e+00> : vector<32x128xf32>
    %150 = vector.multi_reduction <add>, %149, %cst_51 [0] : vector<9x32x128xf32> to vector<32x128xf32>
    %151 = tpu.concatenate %127, %150 in 0 : vector<32x128xf32>, vector<32x128xf32> -> vector<64x128xf32>
    %c0_52 = arith.constant 0 : index
    %c0_53 = arith.constant 0 : index
    %152 = vector.load %arg11[%c0_52, %c0_53] : memref<64x64xbf16, #tpu.memory_space<vmem>>, vector<64x64xbf16>
    %153 = arith.truncf %151 : vector<64x128xf32> to vector<64x128xbf16>
    %cst_54 = arith.constant dense<0.000000e+00> : vector<64x128xf32>
    %154 = tpu.matmul %152, %153, %cst_54 {dimension_numbers = #tpu.dot_dimension_numbers<[1], [0], [0], [1], [0, 0, 1, 1], [], []>} : vector<64x64xbf16>, vector<64x128xbf16>, vector<64x128xf32> -> vector<64x128xf32>
    %c0_55 = arith.constant 0 : index
    %c0_56 = arith.constant 0 : index
    %155 = vector.load %arg12[%c0_55, %c0_56] : memref<64x1xf32, #tpu.memory_space<vmem>>, vector<64x1xf32>
    %156 = vector.broadcast %155 : vector<64x1xf32> to vector<64x128xf32>
    %157 = arith.addf %154, %156 : vector<64x128xf32>
    %c0_57 = arith.constant 0 : index
    %c0_58 = arith.constant 0 : index
    %c0_59 = arith.constant 0 : index
    %158 = vector.load %arg13[%c0_57, %c0_58, %c0_59] : memref<1x64x128xf32, #tpu.memory_space<vmem>>, vector<1x64x128xf32>
    %159 = vector.shape_cast %158 : vector<1x64x128xf32> to vector<64x128xf32>
    %160 = vector.shape_cast %157 : vector<64x128xf32> to vector<1x64x128xf32>
    tpu.vector_store %arg13[%c0_57, %c0_58, %c0_59], %160 {strides = array<i32>} : memref<1x64x128xf32, #tpu.memory_space<vmem>>, vector<1x64x128xf32>,
    return
  }
  func.func @transform_0(%arg0: i32, %arg1: i32) -> (i32, i32, i32) {
    %c0_i32 = arith.constant 0 : i32
    %c0_i32_0 = arith.constant 0 : i32
    return %arg0, %c0_i32, %arg1 : i32, i32, i32
  }
  func.func @transform_1(%arg0: i32, %arg1: i32) -> (i32, i32) {
    %c0_i32 = arith.constant 0 : i32
    %c0_i32_0 = arith.constant 0 : i32
    %c0_i32_1 = arith.constant 0 : i32
    return %c0_i32, %c0_i32_0 : i32, i32
  }
  func.func @transform_2(%arg0: i32, %arg1: i32) -> (i32, i32) {
    %c0_i32 = arith.constant 0 : i32
    %c0_i32_0 = arith.constant 0 : i32
    %c0_i32_1 = arith.constant 0 : i32
    return %c0_i32, %c0_i32_0 : i32, i32
  }
  func.func @transform_3(%arg0: i32, %arg1: i32) -> (i32, i32) {
    %c0_i32 = arith.constant 0 : i32
    %c0_i32_0 = arith.constant 0 : i32
    %c0_i32_1 = arith.constant 0 : i32
    return %c0_i32, %c0_i32_0 : i32, i32
  }
  func.func @transform_4(%arg0: i32, %arg1: i32) -> (i32, i32) {
    %c0_i32 = arith.constant 0 : i32
    %c0_i32_0 = arith.constant 0 : i32
    %c0_i32_1 = arith.constant 0 : i32
    return %c0_i32, %c0_i32_0 : i32, i32
  }
  func.func @transform_5(%arg0: i32, %arg1: i32) -> (i32, i32) {
    %c0_i32 = arith.constant 0 : i32
    %c0_i32_0 = arith.constant 0 : i32
    %c0_i32_1 = arith.constant 0 : i32
    return %c0_i32, %c0_i32_0 : i32, i32
  }
  func.func @transform_6(%arg0: i32, %arg1: i32) -> (i32, i32) {
    %c0_i32 = arith.constant 0 : i32
    %c0_i32_0 = arith.constant 0 : i32
    %c0_i32_1 = arith.constant 0 : i32
    return %c0_i32, %c0_i32_0 : i32, i32
  }
  func.func @transform_7(%arg0: i32, %arg1: i32) -> (i32, i32) {
    %c0_i32 = arith.constant 0 : i32
    %c0_i32_0 = arith.constant 0 : i32
    %c0_i32_1 = arith.constant 0 : i32
    return %c0_i32, %c0_i32_0 : i32, i32
  }
  func.func @transform_8(%arg0: i32, %arg1: i32) -> (i32, i32) {
    %c0_i32 = arith.constant 0 : i32
    %c0_i32_0 = arith.constant 0 : i32
    %c0_i32_1 = arith.constant 0 : i32
    return %c0_i32, %c0_i32_0 : i32, i32
  }
  func.func @transform_9(%arg0: i32, %arg1: i32) -> (i32, i32) {
    %c0_i32 = arith.constant 0 : i32
    %c0_i32_0 = arith.constant 0 : i32
    %c0_i32_1 = arith.constant 0 : i32
    return %c0_i32, %c0_i32_0 : i32, i32
  }
  func.func @transform_10(%arg0: i32, %arg1: i32) -> (i32, i32) {
    %c0_i32 = arith.constant 0 : i32
    %c0_i32_0 = arith.constant 0 : i32
    %c0_i32_1 = arith.constant 0 : i32
    return %c0_i32, %c0_i32_0 : i32, i32
  }
  func.func @transform_11(%arg0: i32, %arg1: i32) -> (i32, i32, i32) {
    %c0_i32 = arith.constant 0 : i32
    %c0_i32_0 = arith.constant 0 : i32
    return %arg0, %c0_i32, %arg1 : i32, i32, i32
  }
}

</mosaic_0001>

<llo_original>
// kernel: tpu_custom_call.1
$region0: #{tpu_custom_call.1}
  #allocation0 [shape = 'u32[]', space=smem, size = 0x4, offset = 0x4, fixed_abs, tag = 'smem constant byte address 0x4 - core index']
  #allocation1 [shape = 'u32[144,128]{1,0:T(1,128)}', space=vmem, size = 0x12000, scoped, tag = 'internal scratch']
  %s0 = inlined_call_operand.vmem [shape: bf16[2,144,128], index: 0, kind: input, shape index: {}]
  %s1 = inlined_call_operand.vmem [shape: bf16[128,16], index: 1, kind: input, shape index: {}]
  %s2 = inlined_call_operand.vmem [shape: bf16[64,144], index: 2, kind: input, shape index: {}]
  %s3 = inlined_call_operand.vmem [shape: f32[64,1], index: 3, kind: input, shape index: {}]
  %s4 = inlined_call_operand.vmem [shape: f32[64,1], index: 4, kind: input, shape index: {}]
  %s5 = inlined_call_operand.vmem [shape: f32[64,1], index: 5, kind: input, shape index: {}]
  %s6 = inlined_call_operand.vmem [shape: f32[64,1], index: 6, kind: input, shape index: {}]
  %s7 = inlined_call_operand.vmem [shape: f32[64,1], index: 7, kind: input, shape index: {}]
  %s8 = inlined_call_operand.vmem [shape: f32[64,1], index: 8, kind: input, shape index: {}]
  %s9 = inlined_call_operand.vmem [shape: bf16[64,64], index: 9, kind: input, shape index: {}]
  %s10 = inlined_call_operand.vmem [shape: f32[64,1], index: 10, kind: input, shape index: {}]
  %s11 = inlined_call_operand.hbm [shape: f32[2,64,128], index: 11, kind: output, shape index: {}]
  %s12 = sld [smem:[#allocation0]]
  $region77: #{tpu_custom_call.1} parent=0
    _
  %s14 = ssub.s32 1, %s12
  %s15 = scalar_select 0, %s14, %s12
  $region1: #{tpu_custom_call.1} parent=0
    #allocation2 [shape = 'u8[65536]{0}', space=vmem, size = 0x10000, scoped, tag = 'output window, operand 0']
    #allocation3 [shape = 's32[2]{0}', space=sflag, size = 0x8, scoped, tag = 'scoped memory for tpu_custom_call.1']
    %16 = vsyncpa [#allocation3], 0
    %s17 = scalar_lea.sflag [#allocation3], 1
    %18 = vsyncpa %s17, 0
    loop: start=0, step=1, limit=4
    $region2: #{tpu_custom_call.1} parent=1 // loop_pre_header
      _
    $region3: #{tpu_custom_call.1} parent=1 // loop_header
      %s20 = sphi 0, %s24
      %p21 = scmp.ge.s32.totalorder %s20, 4
      %s27 = sphi 0, %s39
      %s28 = sphi 0, %s35
      %s29 = sphi 0, %s27
      %s30 = sphi 0, %s28
      %s31 = sphi 0, %s29
      %s32 = sphi 0, %s30
      %s44 = sphi 0, %s46
      %s47 = sphi 0, %s44
      %s48 = sphi 0, %s47
      %s64 = sphi 0, %s48
      %s68 = sphi 0, %s68
      %s70 = sphi 0, %s68
      %s71 = sphi 0, %s70
      %s85 = sphi 0, %s71
      %s89 = sphi 0, %s89
      %s91 = sphi 0, %s89
      %s92 = sphi 0, %s91
      %s106 = sphi 0, %s92
      %s110 = sphi 0, %s110
      %s112 = sphi 0, %s110
      %s113 = sphi 0, %s112
      %s127 = sphi 0, %s113
      %s131 = sphi 0, %s131
      %s133 = sphi 0, %s131
      %s134 = sphi 0, %s133
      %s148 = sphi 0, %s134
      %s152 = sphi 0, %s152
      %s154 = sphi 0, %s152
      %s155 = sphi 0, %s154
      %s169 = sphi 0, %s155
      %s173 = sphi 0, %s173
      %s175 = sphi 0, %s173
      %s176 = sphi 0, %s175
      %s190 = sphi 0, %s176
      %s194 = sphi 0, %s194
      %s196 = sphi 0, %s194
      %s197 = sphi 0, %s196
      %s211 = sphi 0, %s197
      %s215 = sphi 0, %s215
      %s217 = sphi 0, %s215
      %s218 = sphi 0, %s217
      %s232 = sphi 0, %s218
      %s236 = sphi 0, %s236
      %s238 = sphi 0, %s236
      %s239 = sphi 0, %s238
      %s253 = sphi 0, %s239
      %s257 = sphi 0, %s257
      %s259 = sphi 0, %s257
      %s260 = sphi 0, %s259
      %s274 = sphi 0, %s260
      %s282 = sphi 0, %s284
      %s285 = sphi 0, %s282
      %s286 = sphi 0, %s285
      %s302 = sphi 0, %s286
    $region4: #{tpu_custom_call.1} parent=1 // loop_header_branch
      %23 = sbr.rel (%p21) target = $region8
    $region5: #{tpu_custom_call.1} parent=1 // loop_body
      %s25 = ssub.s32 %s20, 1
      %s26 = ssub.s32 %s20, 2
      %s33 = sadd.s32 1, %s28
      %p34 = scmp.ge.s32.totalorder %s33, 1
      %s35 = scalar_select %p34, 0, %s33
      %s36 = sadd.s32 1, %s27
      %s37 = scalar_select %p34, %s36, %s27
      %p38 = scmp.ge.s32.totalorder %s37, 2
      %s39 = scalar_select %p38, 0, %s37
      %s40 = ssub.s32 %s27, %s39
      %s41 = ssub.s32 %s28, %s35
      %s42 = sor.u32 %s40, %s41
      %p43 = scmp.eq.s32.totalorder %s42, 0
      %s45 = sadd.s32 %s44, 1
      %s46 = scalar_select %p43, %s44, %s45
      %p49 = pneg %p43
      %p50 = scmp.eq.s32.totalorder %s20, 1
      %p51 = por %p49, %p50
      %p52 = scmp.ne.s32.totalorder %s44, %s47
      %p53 = scmp.eq.s32.totalorder %s20, 0
      %p54 = por %p52, %p53
      %p55 = scmp.ne.s32.totalorder %s44, %s47
      %p56 = scmp.eq.s32.totalorder %s25, 1
      %p57 = por %p55, %p56
      %p58 = scmp.ne.s32.totalorder %s47, %s48
      %p59 = scmp.eq.s32.totalorder %s25, 0
      %p60 = por %p58, %p59
      %p61 = scmp.ne.s32.totalorder %s47, %s48
      %p62 = scmp.eq.s32.totalorder %s26, 1
      %p63 = por %p61, %p62
      %p65 = scmp.ne.s32.totalorder %s48, %s64
      %p66 = scmp.eq.s32.totalorder %s26, 0
      %p67 = por %p65, %p66
      %s69 = sadd.s32 %s68, 1
      %p72 = scmp.eq.s32.totalorder %s20, 1
      %p73 = scmp.ne.s32.totalorder %s68, %s70
      %p74 = scmp.eq.s32.totalorder %s20, 0
      %p75 = por %p73, %p74
      %p76 = scmp.ne.s32.totalorder %s68, %s70
      %p77 = scmp.eq.s32.totalorder %s25, 1
      %p78 = por %p76, %p77
      %p79 = scmp.ne.s32.totalorder %s70, %s71
      %p80 = scmp.eq.s32.totalorder %s25, 0
      %p81 = por %p79, %p80
      %p82 = scmp.ne.s32.totalorder %s70, %s71
      %p83 = scmp.eq.s32.totalorder %s26, 1
      %p84 = por %p82, %p83
      %p86 = scmp.ne.s32.totalorder %s71, %s85
      %p87 = scmp.eq.s32.totalorder %s26, 0
      %p88 = por %p86, %p87
      %s90 = sadd.s32 %s89, 1
      %p93 = scmp.eq.s32.totalorder %s20, 1
      %p94 = scmp.ne.s32.totalorder %s89, %s91
      %p95 = scmp.eq.s32.totalorder %s20, 0
      %p96 = por %p94, %p95
      %p97 = scmp.ne.s32.totalorder %s89, %s91
      %p98 = scmp.eq.s32.totalorder %s25, 1
      %p99 = por %p97, %p98
      %p100 = scmp.ne.s32.totalorder %s91, %s92
      %p101 = scmp.eq.s32.totalorder %s25, 0
      %p102 = por %p100, %p101
      %p103 = scmp.ne.s32.totalorder %s91, %s92
      %p104 = scmp.eq.s32.totalorder %s26, 1
      %p105 = por %p103, %p104
      %p107 = scmp.ne.s32.totalorder %s92, %s106
      %p108 = scmp.eq.s32.totalorder %s26, 0
      %p109 = por %p107, %p108
      %s111 = sadd.s32 %s110, 1
      %p114 = scmp.eq.s32.totalorder %s20, 1
      %p115 = scmp.ne.s32.totalorder %s110, %s112
      %p116 = scmp.eq.s32.totalorder %s20, 0
      %p117 = por %p115, %p116
      %p118 = scmp.ne.s32.totalorder %s110, %s112
      %p119 = scmp.eq.s32.totalorder %s25, 1
      %p120 = por %p118, %p119
      %p121 = scmp.ne.s32.totalorder %s112, %s113
      %p122 = scmp.eq.s32.totalorder %s25, 0
      %p123 = por %p121, %p122
      %p124 = scmp.ne.s32.totalorder %s112, %s113
      %p125 = scmp.eq.s32.totalorder %s26, 1
      %p126 = por %p124, %p125
      %p128 = scmp.ne.s32.totalorder %s113, %s127
      %p129 = scmp.eq.s32.totalorder %s26, 0
      %p130 = por %p128, %p129
      %s132 = sadd.s32 %s131, 1
      %p135 = scmp.eq.s32.totalorder %s20, 1
      %p136 = scmp.ne.s32.totalorder %s131, %s133
      %p137 = scmp.eq.s32.totalorder %s20, 0
      %p138 = por %p136, %p137
      %p139 = scmp.ne.s32.totalorder %s131, %s133
      %p140 = scmp.eq.s32.totalorder %s25, 1
      %p141 = por %p139, %p140
      %p142 = scmp.ne.s32.totalorder %s133, %s134
      %p143 = scmp.eq.s32.totalorder %s25, 0
      %p144 = por %p142, %p143
      %p145 = scmp.ne.s32.totalorder %s133, %s134
      %p146 = scmp.eq.s32.totalorder %s26, 1
      %p147 = por %p145, %p146
      %p149 = scmp.ne.s32.totalorder %s134, %s148
      %p150 = scmp.eq.s32.totalorder %s26, 0
      %p151 = por %p149, %p150
      %s153 = sadd.s32 %s152, 1
      %p156 = scmp.eq.s32.totalorder %s20, 1
      %p157 = scmp.ne.s32.totalorder %s152, %s154
      %p158 = scmp.eq.s32.totalorder %s20, 0
      %p159 = por %p157, %p158
      %p160 = scmp.ne.s32.totalorder %s152, %s154
      %p161 = scmp.eq.s32.totalorder %s25, 1
      %p162 = por %p160, %p161
      %p163 = scmp.ne.s32.totalorder %s154, %s155
      %p164 = scmp.eq.s32.totalorder %s25, 0
      %p165 = por %p163, %p164
      %p166 = scmp.ne.s32.totalorder %s154, %s155
      %p167 = scmp.eq.s32.totalorder %s26, 1
      %p168 = por %p166, %p167
      %p170 = scmp.ne.s32.totalorder %s155, %s169
      %p171 = scmp.eq.s32.totalorder %s26, 0
      %p172 = por %p170, %p171
      %s174 = sadd.s32 %s173, 1
      %p177 = scmp.eq.s32.totalorder %s20, 1
      %p178 = scmp.ne.s32.totalorder %s173, %s175
      %p179 = scmp.eq.s32.totalorder %s20, 0
      %p180 = por %p178, %p179
      %p181 = scmp.ne.s32.totalorder %s173, %s175
      %p182 = scmp.eq.s32.totalorder %s25, 1
      %p183 = por %p181, %p182
      %p184 = scmp.ne.s32.totalorder %s175, %s176
      %p185 = scmp.eq.s32.totalorder %s25, 0
      %p186 = por %p184, %p185
      %p187 = scmp.ne.s32.totalorder %s175, %s176
      %p188 = scmp.eq.s32.totalorder %s26, 1
      %p189 = por %p187, %p188
      %p191 = scmp.ne.s32.totalorder %s176, %s190
      %p192 = scmp.eq.s32.totalorder %s26, 0
      %p193 = por %p191, %p192
      %s195 = sadd.s32 %s194, 1
      %p198 = scmp.eq.s32.totalorder %s20, 1
      %p199 = scmp.ne.s32.totalorder %s194, %s196
      %p200 = scmp.eq.s32.totalorder %s20, 0
      %p201 = por %p199, %p200
      %p202 = scmp.ne.s32.totalorder %s194, %s196
      %p203 = scmp.eq.s32.totalorder %s25, 1
      %p204 = por %p202, %p203
      %p205 = scmp.ne.s32.totalorder %s196, %s197
      %p206 = scmp.eq.s32.totalorder %s25, 0
      %p207 = por %p205, %p206
      %p208 = scmp.ne.s32.totalorder %s196, %s197
      %p209 = scmp.eq.s32.totalorder %s26, 1
      %p210 = por %p208, %p209
      %p212 = scmp.ne.s32.totalorder %s197, %s211
      %p213 = scmp.eq.s32.totalorder %s26, 0
      %p214 = por %p212, %p213
      %s216 = sadd.s32 %s215, 1
      %p219 = scmp.eq.s32.totalorder %s20, 1
      %p220 = scmp.ne.s32.totalorder %s215, %s217
      %p221 = scmp.eq.s32.totalorder %s20, 0
      %p222 = por %p220, %p221
      %p223 = scmp.ne.s32.totalorder %s215, %s217
      %p224 = scmp.eq.s32.totalorder %s25, 1
      %p225 = por %p223, %p224
      %p226 = scmp.ne.s32.totalorder %s217, %s218
      %p227 = scmp.eq.s32.totalorder %s25, 0
      %p228 = por %p226, %p227
      %p229 = scmp.ne.s32.totalorder %s217, %s218
      %p230 = scmp.eq.s32.totalorder %s26, 1
      %p231 = por %p229, %p230
      %p233 = scmp.ne.s32.totalorder %s218, %s232
      %p234 = scmp.eq.s32.totalorder %s26, 0
      %p235 = por %p233, %p234
      %s237 = sadd.s32 %s236, 1
      %p240 = scmp.eq.s32.totalorder %s20, 1
      %p241 = scmp.ne.s32.totalorder %s236, %s238
      %p242 = scmp.eq.s32.totalorder %s20, 0
      %p243 = por %p241, %p242
      %p244 = scmp.ne.s32.totalorder %s236, %s238
      %p245 = scmp.eq.s32.totalorder %s25, 1
      %p246 = por %p244, %p245
      %p247 = scmp.ne.s32.totalorder %s238, %s239
      %p248 = scmp.eq.s32.totalorder %s25, 0
      %p249 = por %p247, %p248
      %p250 = scmp.ne.s32.totalorder %s238, %s239
      %p251 = scmp.eq.s32.totalorder %s26, 1
      %p252 = por %p250, %p251
      %p254 = scmp.ne.s32.totalorder %s239, %s253
      %p255 = scmp.eq.s32.totalorder %s26, 0
      %p256 = por %p254, %p255
      %s258 = sadd.s32 %s257, 1
      %p261 = scmp.eq.s32.totalorder %s20, 1
      %p262 = scmp.ne.s32.totalorder %s257, %s259
      %p263 = scmp.eq.s32.totalorder %s20, 0
      %p264 = por %p262, %p263
      %p265 = scmp.ne.s32.totalorder %s257, %s259
      %p266 = scmp.eq.s32.totalorder %s25, 1
      %p267 = por %p265, %p266
      %p268 = scmp.ne.s32.totalorder %s259, %s260
      %p269 = scmp.eq.s32.totalorder %s25, 0
      %p270 = por %p268, %p269
      %p271 = scmp.ne.s32.totalorder %s259, %s260
      %p272 = scmp.eq.s32.totalorder %s26, 1
      %p273 = por %p271, %p272
      %p275 = scmp.ne.s32.totalorder %s260, %s274
      %p276 = scmp.eq.s32.totalorder %s26, 0
      %p277 = por %p275, %p276
      %s278 = ssub.s32 %s27, %s39
      %s279 = ssub.s32 %s28, %s35
      %s280 = sor.u32 %s278, %s279
      %p281 = scmp.eq.s32.totalorder %s280, 0
      %s283 = sadd.s32 %s282, 1
      %s284 = scalar_select %p281, %s282, %s283
      %p287 = pneg %p281
      %p288 = scmp.eq.s32.totalorder %s20, 1
      %p289 = por %p287, %p288
      %p290 = scmp.ne.s32.totalorder %s282, %s285
      %p291 = scmp.eq.s32.totalorder %s20, 0
      %p292 = por %p290, %p291
      %p293 = scmp.ne.s32.totalorder %s282, %s285
      %p294 = scmp.eq.s32.totalorder %s25, 1
      %p295 = por %p293, %p294
      %p296 = scmp.ne.s32.totalorder %s285, %s286
      %p297 = scmp.eq.s32.totalorder %s25, 0
      %p298 = por %p296, %p297
      %p299 = scmp.ne.s32.totalorder %s285, %s286
      %p300 = scmp.eq.s32.totalorder %s26, 1
      %p301 = por %p299, %p300
      %p303 = scmp.ne.s32.totalorder %s286, %s302
      %p304 = scmp.eq.s32.totalorder %s26, 0
      %p305 = por %p303, %p304
      %p306 = scmp.le.s32.totalorder 1, %s20
      %p307 = scmp.lt.s32.totalorder %s20, 3
      %p308 = pnand %p306, %p307
      %p309 = pneg %p308
      // Predicated region
      $region9: #{tpu_custom_call.1} parent=5 // pred_check
        _
      $region10: #{tpu_custom_call.1} parent=5 // pred_check_branch
        %311 = sbr.rel (%p308) target = $region12
      $region11: #{tpu_custom_call.1} parent=5 // pred_region
        %s312 = ssub.s32 %s20, 1
        // Predicated region
        $region13: #{tpu_custom_call.1} parent=11 // pred_check
          %p313 = pneg %p81
        $region14: #{tpu_custom_call.1} parent=11 // pred_check_branch
          %315 = sbr.rel (%p313) target = $region16
        $region15: #{tpu_custom_call.1} parent=11 // pred_region
          _
        $region16: #{tpu_custom_call.1} parent=11 // pred_fallthru
          _
        // Predicated region
        $region17: #{tpu_custom_call.1} parent=11 // pred_check
          %p316 = pneg %p102
        $region18: #{tpu_custom_call.1} parent=11 // pred_check_branch
          %318 = sbr.rel (%p316) target = $region20
        $region19: #{tpu_custom_call.1} parent=11 // pred_region
          _
        $region20: #{tpu_custom_call.1} parent=11 // pred_fallthru
          _
        // Predicated region
        $region21: #{tpu_custom_call.1} parent=11 // pred_check
          %p319 = pneg %p123
        $region22: #{tpu_custom_call.1} parent=11 // pred_check_branch
          %321 = sbr.rel (%p319) target = $region24
        $region23: #{tpu_custom_call.1} parent=11 // pred_region
          _
        $region24: #{tpu_custom_call.1} parent=11 // pred_fallthru
          _
        // Predicated region
        $region25: #{tpu_custom_call.1} parent=11 // pred_check
          %p322 = pneg %p144
        $region26: #{tpu_custom_call.1} parent=11 // pred_check_branch
          %324 = sbr.rel (%p322) target = $region28
        $region27: #{tpu_custom_call.1} parent=11 // pred_region
          _
        $region28: #{tpu_custom_call.1} parent=11 // pred_fallthru
          _
        // Predicated region
        $region29: #{tpu_custom_call.1} parent=11 // pred_check
          %p325 = pneg %p165
        $region30: #{tpu_custom_call.1} parent=11 // pred_check_branch
          %327 = sbr.rel (%p325) target = $region32
        $region31: #{tpu_custom_call.1} parent=11 // pred_region
          _
        $region32: #{tpu_custom_call.1} parent=11 // pred_fallthru
          _
        // Predicated region
        $region33: #{tpu_custom_call.1} parent=11 // pred_check
          %p328 = pneg %p186
        $region34: #{tpu_custom_call.1} parent=11 // pred_check_branch
          %330 = sbr.rel (%p328) target = $region36
        $region35: #{tpu_custom_call.1} parent=11 // pred_region
          _
        $region36: #{tpu_custom_call.1} parent=11 // pred_fallthru
          _
        // Predicated region
        $region37: #{tpu_custom_call.1} parent=11 // pred_check
          %p331 = pneg %p207
        $region38: #{tpu_custom_call.1} parent=11 // pred_check_branch
          %333 = sbr.rel (%p331) target = $region40
        $region39: #{tpu_custom_call.1} parent=11 // pred_region
          _
        $region40: #{tpu_custom_call.1} parent=11 // pred_fallthru
          _
        // Predicated region
        $region41: #{tpu_custom_call.1} parent=11 // pred_check
          %p334 = pneg %p228
        $region42: #{tpu_custom_call.1} parent=11 // pred_check_branch
          %336 = sbr.rel (%p334) target = $region44
        $region43: #{tpu_custom_call.1} parent=11 // pred_region
          _
        $region44: #{tpu_custom_call.1} parent=11 // pred_fallthru
          _
        // Predicated region
        $region45: #{tpu_custom_call.1} parent=11 // pred_check
          %p337 = pneg %p249
        $region46: #{tpu_custom_call.1} parent=11 // pred_check_branch
          %339 = sbr.rel (%p337) target = $region48
        $region47: #{tpu_custom_call.1} parent=11 // pred_region
          _
        $region48: #{tpu_custom_call.1} parent=11 // pred_fallthru
          _
        // Predicated region
        $region49: #{tpu_custom_call.1} parent=11 // pred_check
          %p340 = pneg %p270
        $region50: #{tpu_custom_call.1} parent=11 // pred_check_branch
          %342 = sbr.rel (%p340) target = $region52
        $region51: #{tpu_custom_call.1} parent=11 // pred_region
          _
        $region52: #{tpu_custom_call.1} parent=11 // pred_fallthru
          _
      $region12: #{tpu_custom_call.1} parent=5 // pred_fallthru
        _
      %p343 = scmp.lt.s32.totalorder %s20, 2
      // Predicated region
      $region53: #{tpu_custom_call.1} parent=5 // pred_check
        %p344 = pneg %p343
      $region54: #{tpu_custom_call.1} parent=5 // pred_check_branch
        %346 = sbr.rel (%p344) target = $region56
      $region55: #{tpu_custom_call.1} parent=5 // pred_region
        // Predicated region
        $region57: #{tpu_custom_call.1} parent=55 // pred_check
          %p347 = pneg %p54
        $region58: #{tpu_custom_call.1} parent=55 // pred_check_branch
          %349 = sbr.rel (%p347) target = $region60
        $region59: #{tpu_custom_call.1} parent=55 // pred_region
          %p350 = scmp.lt.s32.totalorder %s27, 1
          %s351 = scalar_select %p350, %s27, 1
          %p352 = scmp.lt.s32.totalorder %s28, 0
          %s353 = scalar_select %p352, %s28, 0
          %s354 = smul.addr %s351, 18
          %s355 = sadd.s32 %s353, %s354
          %s356 = smul.addr %s355, 4
          %s357 = scalar_lea.vmem %s0, %s356
        $region60: #{tpu_custom_call.1} parent=55 // pred_fallthru
          _
      $region56: #{tpu_custom_call.1} parent=5 // pred_fallthru
        _
      %p358 = scmp.le.s32.totalorder 1, %s20
      %p359 = scmp.lt.s32.totalorder %s20, 3
      %p360 = pnand %p358, %p359
      %p361 = pneg %p360
      // Predicated region
      $region61: #{tpu_custom_call.1} parent=5 // pred_check
        _
      $region62: #{tpu_custom_call.1} parent=5 // pred_check_branch
        %363 = sbr.rel (%p360) target = $region64
      $region63: #{tpu_custom_call.1} parent=5 // pred_region
        %s364 = ssub.s32 %s20, 1
        %p365 = scmp.lt.s32.totalorder %s29, 1
        %s366 = scalar_select %p365, %s29, 1
        %p367 = scmp.lt.s32.totalorder %s30, 0
        %s368 = scalar_select %p367, %s30, 0
        %s369 = smul.addr %s366, 18
        %s370 = sadd.s32 %s368, %s369
        %s371 = smul.addr %s370, 4
        %s372 = scalar_lea.vmem %s0, %s371
        %p373 = pneg %p60
        %p374 = pneg %p57
        %p375 = pneg %p81
        %p376 = pneg %p78
        %p377 = pneg %p102
        %p378 = pneg %p99
        %p379 = pneg %p123
        %p380 = pneg %p120
        %p381 = pneg %p144
        %p382 = pneg %p141
        %p383 = pneg %p165
        %p384 = pneg %p162
        %p385 = pneg %p186
        %p386 = pneg %p183
        %p387 = pneg %p207
        %p388 = pneg %p204
        %p389 = pneg %p228
        %p390 = pneg %p225
        %p391 = pneg %p249
        %p392 = pneg %p246
        %p393 = pneg %p270
        %p394 = pneg %p267
        %p395 = pneg %p298
        %p396 = pneg %p295
        %s397 = sand.u32 %s285, 1
        %s398 = scalar_lea.sflag [#allocation3], %s397
        %s399 = sand.u32 %s285, 1
        %s400 = smul.addr %s399, 64
        %s401 = scalar_lea.vmem [#allocation2], %s400
        %p402 = scmp.lt.s32.totalorder %s29, 1
        %s403 = scalar_select %p402, %s29, 1
        %p404 = scmp.lt.s32.totalorder %s30, 0
        %s405 = scalar_select %p404, %s30, 0
        %s406 = smul.addr %s403, 18
        %s407 = sadd.s32 %s405, %s406
        %s408 = smul.addr %s407, 4
        %s409 = scalar_lea.vmem %s0, %s408
        %v411 = vld [vmem:[%s409] sm:$0xf]
        %v412 = vld [vmem:[%s409 + $0x4] sm:$0xf]
        %v413 = vld [vmem:[%s409 + $0x8] sm:$0xf]
        %v414 = vld [vmem:[%s409 + $0xc] sm:$0xf]
        %v415 = vld [vmem:[%s409 + $0x10] sm:$0xf]
        %v416 = vld [vmem:[%s409 + $0x14] sm:$0xf]
        %v417 = vld [vmem:[%s409 + $0x18] sm:$0xf]
        %v418 = vld [vmem:[%s409 + $0x1c] sm:$0xf]
        %v419 = vld [vmem:[%s409 + $0x20] sm:$0xf]
        %v420 = vld [vmem:[%s409 + $0x24] sm:$0xf]
        %v421 = vld [vmem:[%s409 + $0x28] sm:$0xf]
        %v422 = vld [vmem:[%s409 + $0x2c] sm:$0xf]
        %v423 = vld [vmem:[%s409 + $0x30] sm:$0xf]
        %v424 = vld [vmem:[%s409 + $0x34] sm:$0xf]
        %v425 = vld [vmem:[%s409 + $0x38] sm:$0xf]
        %v426 = vld [vmem:[%s409 + $0x3c] sm:$0xf]
        %v427 = vld [vmem:[%s409 + $0x40] sm:$0xf]
        %v428 = vld [vmem:[%s409 + $0x44] sm:$0xf]
        %v429 = vld [vmem:[%s2] sm:$0xff]
        %v430 = vld [vmem:[%s2 + $0x8] sm:$0xff]
        %v431 = vld [vmem:[%s2 + $0x10] sm:$0xff]
        %v432 = vld [vmem:[%s2 + $0x18] sm:$0xff]
        %v433 = vld [vmem:[%s2 + $0x20] sm:$0xff]
        %v434 = vld [vmem:[%s2 + $0x28] sm:$0xff]
        %v435 = vld [vmem:[%s2 + $0x30] sm:$0xff]
        %v436 = vld [vmem:[%s2 + $0x38] sm:$0xff]
        %v445 = vunpack.c.l.b16 %v429
        %v446 = vunpack.c.h.b16 %v429
        %v447 = vunpack.c.l.b16 %v430
        %v448 = vunpack.c.h.b16 %v430
        %v449 = vunpack.c.l.b16 %v431
        %v450 = vunpack.c.h.b16 %v431
        %v451 = vunpack.c.l.b16 %v432
        %v452 = vunpack.c.h.b16 %v432
        %v453 = vunpack.c.l.b16 %v433
        %v454 = vunpack.c.h.b16 %v433
        %v455 = vunpack.c.l.b16 %v434
        %v456 = vunpack.c.h.b16 %v434
        %v457 = vunpack.c.l.b16 %v435
        %v458 = vunpack.c.h.b16 %v435
        %v459 = vunpack.c.l.b16 %v436
        %v460 = vunpack.c.h.b16 %v436
        %v461 = vpack.c.b16 %v447, %v445
        %v462 = vpack.c.b16 %v448, %v446
        %v463 = vpack.c.b16 %v451, %v449
        %v464 = vpack.c.b16 %v452, %v450
        %v465 = vpack.c.b16 %v455, %v453
        %v466 = vpack.c.b16 %v456, %v454
        %v467 = vpack.c.b16 %v459, %v457
        %v468 = vpack.c.b16 %v460, %v458
        %v491 = vunpack.c.l.b16 %v411
        %v492 = vunpack.c.l.b16 %v412
        %v493 = vunpack.c.l.b16 %v413
        %v494 = vunpack.c.l.b16 %v414
        %v495 = vunpack.c.l.b16 %v415
        %v496 = vunpack.c.l.b16 %v416
        %v497 = vunpack.c.l.b16 %v417
        %v498 = vunpack.c.l.b16 %v418
        %v499 = vunpack.c.l.b16 %v419
        %v500 = vunpack.c.l.b16 %v420
        %v501 = vunpack.c.l.b16 %v421
        %v502 = vunpack.c.l.b16 %v422
        %v503 = vunpack.c.l.b16 %v423
        %v504 = vunpack.c.l.b16 %v424
        %v505 = vunpack.c.l.b16 %v425
        %v506 = vunpack.c.l.b16 %v426
        %v507 = vunpack.c.l.b16 %v427
        %v508 = vunpack.c.l.b16 %v428
        %v509 = vpack.c.b16 %v492, %v491
        %v510 = vpack.c.b16 %v494, %v493
        %v511 = vpack.c.b16 %v496, %v495
        %v512 = vpack.c.b16 %v498, %v497
        %v513 = vpack.c.b16 %v500, %v499
        %v514 = vpack.c.b16 %v502, %v501
        %v515 = vpack.c.b16 %v504, %v503
        %v516 = vpack.c.b16 %v506, %v505
        %v517 = vpack.c.b16 %v508, %v507
        %vm527 = vcmask 130048
        %v529 = vsel %vm527, %v462, 0
        %v532 = vsel %vm527, %v464, 0
        %v535 = vsel %vm527, %v466, 0
        %v538 = vsel %vm527, %v468, 0
        %540 = vmatprep.subr.bf16.mxu0 0
        %541 = vmatpush1.bf16.msra.mxu0 %v516
        %542 = vmatprep.subr.bf16.mxu0 0
        %543 = vmatpush1.bf16.msra.mxu0 %v515
        %544 = vmatprep.subr.bf16.mxu0 0
        %545 = vmatpush1.bf16.msra.mxu0 %v514
        %546 = vmatprep.subr.bf16.mxu0 0
        %547 = vmatpush1.bf16.msra.mxu0 %v513
        %548 = vmatprep.subr.bf16.mxu0 0
        %549 = vmatpush1.bf16.msra.mxu0 %v512
        %550 = vmatprep.subr.bf16.mxu0 0
        %551 = vmatpush1.bf16.msra.mxu0 %v511
        %552 = vmatprep.subr.bf16.mxu0 0
        %553 = vmatpush1.bf16.msra.mxu0 %v510
        %554 = vmatprep.subr.bf16.mxu0 0
        %555 = vmatpush1.bf16.msra.mxu0 %v509
        %556 = vmatprep.subr.bf16.mxu0 0
        %557 = vmatpush2.bf16.msra.mxu0 0
        %558 = vmatprep.subr.bf16.mxu0 0
        %559 = vmatpush2.bf16.msra.mxu0 0
        %560 = vmatprep.subr.bf16.mxu0 0
        %561 = vmatpush2.bf16.msra.mxu0 0
        %562 = vmatprep.subr.bf16.mxu0 0
        %563 = vmatpush2.bf16.msra.mxu0 0
        %564 = vmatprep.subr.bf16.mxu0 0
        %565 = vmatpush2.bf16.msra.mxu0 0
        %566 = vmatprep.subr.bf16.mxu0 0
        %567 = vmatpush2.bf16.msra.mxu0 0
        %568 = vmatprep.subr.bf16.mxu0 0
        %569 = vmatpush2.bf16.msra.mxu0 0
        %570 = vmatprep.subr.bf16.mxu0 0
        %571 = vmatpush2.bf16.msra.mxu0 %v517
        %572 = vmatprep.mubr.bf16.mxu0 %v529
        %573 = vmatmul.mubr.bf16.gmra.mxu0 %v461
        %v574 = vpop.f32.mrf.mxu0
        %v575 = vadd.f32 0.0, %v574
        %v576 = vpop.f32.mrf.mxu0
        %v577 = vpop.f32.mrf.mxu0
        %v578 = vadd.f32 0.0, %v577
        %v579 = vpop.f32.mrf.mxu0
        %580 = vmatprep.mubr.bf16.mxu0 %v532
        %581 = vmatmul.mubr.bf16.gmra.mxu0 %v463
        %v582 = vpop.f32.mrf.mxu0
        %v583 = vadd.f32 0.0, %v582
        %v584 = vpop.f32.mrf.mxu0
        %v585 = vpop.f32.mrf.mxu0
        %v586 = vadd.f32 0.0, %v585
        %v587 = vpop.f32.mrf.mxu0
        %588 = vmatprep.mubr.bf16.mxu0 %v535
        %589 = vmatmul.mubr.bf16.gmra.mxu0 %v465
        %v590 = vpop.f32.mrf.mxu0
        %v591 = vadd.f32 0.0, %v590
        %v592 = vpop.f32.mrf.mxu0
        %v593 = vpop.f32.mrf.mxu0
        %v594 = vadd.f32 0.0, %v593
        %v595 = vpop.f32.mrf.mxu0
        %596 = vmatprep.mubr.bf16.mxu0 %v538
        %597 = vmatmul.mubr.bf16.gmra.mxu0 %v467
        %v598 = vpop.f32.mrf.mxu0
        %v599 = vadd.f32 0.0, %v598
        %v600 = vpop.f32.mrf.mxu0
        %v601 = vpop.f32.mrf.mxu0
        %v602 = vadd.f32 0.0, %v601
        %v603 = vpop.f32.mrf.mxu0
        %604 = vdwg.mxu0
        %v605 = vld [vmem:[%s1] sm:$0xf]
        %v606 = vld [vmem:[%s1 + $0x4] sm:$0xf]
        %v607 = vld [vmem:[%s1 + $0x8] sm:$0xf]
        %v608 = vld [vmem:[%s1 + $0xc] sm:$0xf]
        %v609 = vld [vmem:[%s1 + $0x10] sm:$0xf]
        %v610 = vld [vmem:[%s1 + $0x14] sm:$0xf]
        %v611 = vld [vmem:[%s1 + $0x18] sm:$0xf]
        %v612 = vld [vmem:[%s1 + $0x1c] sm:$0xf]
        %v613 = vld [vmem:[%s1 + $0x20] sm:$0xf]
        %v614 = vld [vmem:[%s1 + $0x24] sm:$0xf]
        %v615 = vld [vmem:[%s1 + $0x28] sm:$0xf]
        %v616 = vld [vmem:[%s1 + $0x2c] sm:$0xf]
        %v617 = vld [vmem:[%s1 + $0x30] sm:$0xf]
        %v618 = vld [vmem:[%s1 + $0x34] sm:$0xf]
        %v619 = vld [vmem:[%s1 + $0x38] sm:$0xf]
        %v620 = vld [vmem:[%s1 + $0x3c] sm:$0xf]
        %v637 = vunpack.c.l.b16 %v605
        %v638 = vunpack.c.l.b16 %v606
        %v639 = vunpack.c.l.b16 %v607
        %v640 = vunpack.c.l.b16 %v608
        %v641 = vunpack.c.l.b16 %v609
        %v642 = vunpack.c.l.b16 %v610
        %v643 = vunpack.c.l.b16 %v611
        %v644 = vunpack.c.l.b16 %v612
        %v645 = vunpack.c.l.b16 %v613
        %v646 = vunpack.c.l.b16 %v614
        %v647 = vunpack.c.l.b16 %v615
        %v648 = vunpack.c.l.b16 %v616
        %v649 = vunpack.c.l.b16 %v617
        %v650 = vunpack.c.l.b16 %v618
        %v651 = vunpack.c.l.b16 %v619
        %v652 = vunpack.c.l.b16 %v620
        %v653 = vpack.c.b16 %v638, %v637
        %v654 = vpack.c.b16 %v640, %v639
        %v655 = vpack.c.b16 %v642, %v641
        %v656 = vpack.c.b16 %v644, %v643
        %v657 = vpack.c.b16 %v646, %v645
        %v658 = vpack.c.b16 %v648, %v647
        %v659 = vpack.c.b16 %v650, %v649
        %v660 = vpack.c.b16 %v652, %v651
        %v662 = vsel %vm527, %v653, 0
        %v665 = vsel %vm527, %v654, 0
        %v668 = vsel %vm527, %v655, 0
        %v671 = vsel %vm527, %v656, 0
        %v674 = vsel %vm527, %v657, 0
        %v677 = vsel %vm527, %v658, 0
        %v680 = vsel %vm527, %v659, 0
        %v683 = vsel %vm527, %v660, 0
        %685 = vmatprep.subr.bf16.mxu0 0
        %686 = vmatpush1.bf16.msra.mxu0 0
        %687 = vmatprep.subr.bf16.mxu0 0
        %688 = vmatpush1.bf16.msra.mxu0 0
        %689 = vmatprep.subr.bf16.mxu0 0
        %690 = vmatpush1.bf16.msra.mxu0 0
        %691 = vmatprep.subr.bf16.mxu0 0
        %692 = vmatpush1.bf16.msra.mxu0 0
        %693 = vmatprep.subr.bf16.mxu0 0
        %694 = vmatpush1.bf16.msra.mxu0 0
        %695 = vmatprep.subr.bf16.mxu0 0
        %696 = vmatpush1.bf16.msra.mxu0 0
        %697 = vmatprep.subr.bf16.mxu0 0
        %698 = vmatpush1.bf16.msra.mxu0 0
        %699 = vmatprep.subr.bf16.mxu0 0
        %700 = vmatpush1.bf16.msra.mxu0 %v509
        %701 = vmatprep.subr.bf16.mxu0 0
        %702 = vmatpush2.bf16.msra.mxu0 0
        %703 = vmatprep.subr.bf16.mxu0 0
        %704 = vmatpush2.bf16.msra.mxu0 0
        %705 = vmatprep.subr.bf16.mxu0 0
        %706 = vmatpush2.bf16.msra.mxu0 0
        %707 = vmatprep.subr.bf16.mxu0 0
        %708 = vmatpush2.bf16.msra.mxu0 0
        %709 = vmatprep.subr.bf16.mxu0 0
        %710 = vmatpush2.bf16.msra.mxu0 0
        %711 = vmatprep.subr.bf16.mxu0 0
        %712 = vmatpush2.bf16.msra.mxu0 0
        %713 = vmatprep.subr.bf16.mxu0 0
        %714 = vmatpush2.bf16.msra.mxu0 0
        %715 = vmatprep.subr.bf16.mxu0 0
        %716 = vmatpush2.bf16.msra.mxu0 0
        %717 = vmatprep.mubr.bf16.mxu0 0
        %718 = vmatmul.mubr.bf16.gmra.mxu0 %v662
        %v719 = vpop.f32.mrf.mxu0
        %v720 = vadd.f32 0.0, %v719
        %v721 = vpop.f32.mrf.mxu0
        %v722 = vpop.f32.mrf.mxu0
        %v723 = vadd.f32 0.0, %v722
        %v724 = vpop.f32.mrf.mxu0
        %725 = vmatprep.mubr.bf16.mxu0 0
        %726 = vmatmul.mubr.bf16.gmra.mxu0 %v665
        %v727 = vpop.f32.mrf.mxu0
        %v728 = vadd.f32 0.0, %v727
        %v729 = vpop.f32.mrf.mxu0
        %v730 = vpop.f32.mrf.mxu0
        %v731 = vadd.f32 0.0, %v730
        %v732 = vpop.f32.mrf.mxu0
        %733 = vmatprep.mubr.bf16.mxu0 0
        %734 = vmatmul.mubr.bf16.gmra.mxu0 %v668
        %v735 = vpop.f32.mrf.mxu0
        %v736 = vadd.f32 0.0, %v735
        %v737 = vpop.f32.mrf.mxu0
        %v738 = vpop.f32.mrf.mxu0
        %v739 = vadd.f32 0.0, %v738
        %v740 = vpop.f32.mrf.mxu0
        %741 = vmatprep.mubr.bf16.mxu0 0
        %742 = vmatmul.mubr.bf16.gmra.mxu0 %v671
        %v743 = vpop.f32.mrf.mxu0
        %v744 = vadd.f32 0.0, %v743
        %v745 = vpop.f32.mrf.mxu0
        %v746 = vpop.f32.mrf.mxu0
        %v747 = vadd.f32 0.0, %v746
        %v748 = vpop.f32.mrf.mxu0
        %749 = vmatprep.mubr.bf16.mxu0 0
        %750 = vmatmul.mubr.bf16.gmra.mxu0 %v674
        %v751 = vpop.f32.mrf.mxu0
        %v752 = vadd.f32 0.0, %v751
        %v753 = vpop.f32.mrf.mxu0
        %v754 = vpop.f32.mrf.mxu0
        %v755 = vadd.f32 0.0, %v754
        %v756 = vpop.f32.mrf.mxu0
        %757 = vmatprep.mubr.bf16.mxu0 0
        %758 = vmatmul.mubr.bf16.gmra.mxu0 %v677
        %v759 = vpop.f32.mrf.mxu0
        %v760 = vadd.f32 0.0, %v759
        %v761 = vpop.f32.mrf.mxu0
        %v762 = vpop.f32.mrf.mxu0
        %v763 = vadd.f32 0.0, %v762
        %v764 = vpop.f32.mrf.mxu0
        %765 = vmatprep.mubr.bf16.mxu0 0
        %766 = vmatmul.mubr.bf16.gmra.mxu0 %v680
        %v767 = vpop.f32.mrf.mxu0
        %v768 = vadd.f32 0.0, %v767
        %v769 = vpop.f32.mrf.mxu0
        %v770 = vpop.f32.mrf.mxu0
        %v771 = vadd.f32 0.0, %v770
        %v772 = vpop.f32.mrf.mxu0
        %773 = vmatprep.mubr.bf16.mxu0 0
        %774 = vmatmul.mubr.bf16.gmra.mxu0 %v683
        %v775 = vpop.f32.mrf.mxu0
        %v776 = vadd.f32 0.0, %v775
        %v777 = vpop.f32.mrf.mxu0
        %v778 = vpop.f32.mrf.mxu0
        %v779 = vadd.f32 0.0, %v778
        %v780 = vpop.f32.mrf.mxu0
        %781 = vdwg.mxu0
        %782 = vmatprep.subr.bf16.mxu0 0
        %783 = vmatpush1.bf16.msra.mxu0 0
        %784 = vmatprep.subr.bf16.mxu0 0
        %785 = vmatpush1.bf16.msra.mxu0 0
        %786 = vmatprep.subr.bf16.mxu0 0
        %787 = vmatpush1.bf16.msra.mxu0 0
        %788 = vmatprep.subr.bf16.mxu0 0
        %789 = vmatpush1.bf16.msra.mxu0 0
        %790 = vmatprep.subr.bf16.mxu0 0
        %791 = vmatpush1.bf16.msra.mxu0 0
        %792 = vmatprep.subr.bf16.mxu0 0
        %793 = vmatpush1.bf16.msra.mxu0 0
        %794 = vmatprep.subr.bf16.mxu0 0
        %795 = vmatpush1.bf16.msra.mxu0 0
        %796 = vmatprep.subr.bf16.mxu0 0
        %797 = vmatpush1.bf16.msra.mxu0 %v510
        %798 = vmatprep.subr.bf16.mxu0 0
        %799 = vmatpush2.bf16.msra.mxu0 0
        %800 = vmatprep.subr.bf16.mxu0 0
        %801 = vmatpush2.bf16.msra.mxu0 0
        %802 = vmatprep.subr.bf16.mxu0 0
        %803 = vmatpush2.bf16.msra.mxu0 0
        %804 = vmatprep.subr.bf16.mxu0 0
        %805 = vmatpush2.bf16.msra.mxu0 0
        %806 = vmatprep.subr.bf16.mxu0 0
        %807 = vmatpush2.bf16.msra.mxu0 0
        %808 = vmatprep.subr.bf16.mxu0 0
        %809 = vmatpush2.bf16.msra.mxu0 0
        %810 = vmatprep.subr.bf16.mxu0 0
        %811 = vmatpush2.bf16.msra.mxu0 0
        %812 = vmatprep.subr.bf16.mxu0 0
        %813 = vmatpush2.bf16.msra.mxu0 0
        %814 = vmatprep.mubr.bf16.mxu0 0
        %815 = vmatmul.mubr.bf16.gmra.mxu0 %v662
        %v816 = vpop.f32.mrf.mxu0
        %v817 = vadd.f32 0.0, %v816
        %v818 = vpop.f32.mrf.mxu0
        %v819 = vpop.f32.mrf.mxu0
        %v820 = vadd.f32 0.0, %v819
        %v821 = vpop.f32.mrf.mxu0
        %822 = vmatprep.mubr.bf16.mxu0 0
        %823 = vmatmul.mubr.bf16.gmra.mxu0 %v665
        %v824 = vpop.f32.mrf.mxu0
        %v825 = vadd.f32 0.0, %v824
        %v826 = vpop.f32.mrf.mxu0
        %v827 = vpop.f32.mrf.mxu0
        %v828 = vadd.f32 0.0, %v827
        %v829 = vpop.f32.mrf.mxu0
        %830 = vmatprep.mubr.bf16.mxu0 0
        %831 = vmatmul.mubr.bf16.gmra.mxu0 %v668
        %v832 = vpop.f32.mrf.mxu0
        %v833 = vadd.f32 0.0, %v832
        %v834 = vpop.f32.mrf.mxu0
        %v835 = vpop.f32.mrf.mxu0
        %v836 = vadd.f32 0.0, %v835
        %v837 = vpop.f32.mrf.mxu0
        %838 = vmatprep.mubr.bf16.mxu0 0
        %839 = vmatmul.mubr.bf16.gmra.mxu0 %v671
        %v840 = vpop.f32.mrf.mxu0
        %v841 = vadd.f32 0.0, %v840
        %v842 = vpop.f32.mrf.mxu0
        %v843 = vpop.f32.mrf.mxu0
        %v844 = vadd.f32 0.0, %v843
        %v845 = vpop.f32.mrf.mxu0
        %846 = vmatprep.mubr.bf16.mxu0 0
        %847 = vmatmul.mubr.bf16.gmra.mxu0 %v674
        %v848 = vpop.f32.mrf.mxu0
        %v849 = vadd.f32 0.0, %v848
        %v850 = vpop.f32.mrf.mxu0
        %v851 = vpop.f32.mrf.mxu0
        %v852 = vadd.f32 0.0, %v851
        %v853 = vpop.f32.mrf.mxu0
        %854 = vmatprep.mubr.bf16.mxu0 0
        %855 = vmatmul.mubr.bf16.gmra.mxu0 %v677
        %v856 = vpop.f32.mrf.mxu0
        %v857 = vadd.f32 0.0, %v856
        %v858 = vpop.f32.mrf.mxu0
        %v859 = vpop.f32.mrf.mxu0
        %v860 = vadd.f32 0.0, %v859
        %v861 = vpop.f32.mrf.mxu0
        %862 = vmatprep.mubr.bf16.mxu0 0
        %863 = vmatmul.mubr.bf16.gmra.mxu0 %v680
        %v864 = vpop.f32.mrf.mxu0
        %v865 = vadd.f32 0.0, %v864
        %v866 = vpop.f32.mrf.mxu0
        %v867 = vpop.f32.mrf.mxu0
        %v868 = vadd.f32 0.0, %v867
        %v869 = vpop.f32.mrf.mxu0
        %870 = vmatprep.mubr.bf16.mxu0 0
        %871 = vmatmul.mubr.bf16.gmra.mxu0 %v683
        %v872 = vpop.f32.mrf.mxu0
        %v873 = vadd.f32 0.0, %v872
        %v874 = vpop.f32.mrf.mxu0
        %v875 = vpop.f32.mrf.mxu0
        %v876 = vadd.f32 0.0, %v875
        %v877 = vpop.f32.mrf.mxu0
        %878 = vdwg.mxu0
        %879 = vmatprep.subr.bf16.mxu0 0
        %880 = vmatpush1.bf16.msra.mxu0 0
        %881 = vmatprep.subr.bf16.mxu0 0
        %882 = vmatpush1.bf16.msra.mxu0 0
        %883 = vmatprep.subr.bf16.mxu0 0
        %884 = vmatpush1.bf16.msra.mxu0 0
        %885 = vmatprep.subr.bf16.mxu0 0
        %886 = vmatpush1.bf16.msra.mxu0 0
        %887 = vmatprep.subr.bf16.mxu0 0
        %888 = vmatpush1.bf16.msra.mxu0 0
        %889 = vmatprep.subr.bf16.mxu0 0
        %890 = vmatpush1.bf16.msra.mxu0 0
        %891 = vmatprep.subr.bf16.mxu0 0
        %892 = vmatpush1.bf16.msra.mxu0 0
        %893 = vmatprep.subr.bf16.mxu0 0
        %894 = vmatpush1.bf16.msra.mxu0 %v511
        %895 = vmatprep.subr.bf16.mxu0 0
        %896 = vmatpush2.bf16.msra.mxu0 0
        %897 = vmatprep.subr.bf16.mxu0 0
        %898 = vmatpush2.bf16.msra.mxu0 0
        %899 = vmatprep.subr.bf16.mxu0 0
        %900 = vmatpush2.bf16.msra.mxu0 0
        %901 = vmatprep.subr.bf16.mxu0 0
        %902 = vmatpush2.bf16.msra.mxu0 0
        %903 = vmatprep.subr.bf16.mxu0 0
        %904 = vmatpush2.bf16.msra.mxu0 0
        %905 = vmatprep.subr.bf16.mxu0 0
        %906 = vmatpush2.bf16.msra.mxu0 0
        %907 = vmatprep.subr.bf16.mxu0 0
        %908 = vmatpush2.bf16.msra.mxu0 0
        %909 = vmatprep.subr.bf16.mxu0 0
        %910 = vmatpush2.bf16.msra.mxu0 0
        %911 = vmatprep.mubr.bf16.mxu0 0
        %912 = vmatmul.mubr.bf16.gmra.mxu0 %v662
        %v913 = vpop.f32.mrf.mxu0
        %v914 = vadd.f32 0.0, %v913
        %v915 = vpop.f32.mrf.mxu0
        %v916 = vpop.f32.mrf.mxu0
        %v917 = vadd.f32 0.0, %v916
        %v918 = vpop.f32.mrf.mxu0
        %919 = vmatprep.mubr.bf16.mxu0 0
        %920 = vmatmul.mubr.bf16.gmra.mxu0 %v665
        %v921 = vpop.f32.mrf.mxu0
        %v922 = vadd.f32 0.0, %v921
        %v923 = vpop.f32.mrf.mxu0
        %v924 = vpop.f32.mrf.mxu0
        %v925 = vadd.f32 0.0, %v924
        %v926 = vpop.f32.mrf.mxu0
        %927 = vmatprep.mubr.bf16.mxu0 0
        %928 = vmatmul.mubr.bf16.gmra.mxu0 %v668
        %v929 = vpop.f32.mrf.mxu0
        %v930 = vadd.f32 0.0, %v929
        %v931 = vpop.f32.mrf.mxu0
        %v932 = vpop.f32.mrf.mxu0
        %v933 = vadd.f32 0.0, %v932
        %v934 = vpop.f32.mrf.mxu0
        %935 = vmatprep.mubr.bf16.mxu0 0
        %936 = vmatmul.mubr.bf16.gmra.mxu0 %v671
        %v937 = vpop.f32.mrf.mxu0
        %v938 = vadd.f32 0.0, %v937
        %v939 = vpop.f32.mrf.mxu0
        %v940 = vpop.f32.mrf.mxu0
        %v941 = vadd.f32 0.0, %v940
        %v942 = vpop.f32.mrf.mxu0
        %943 = vmatprep.mubr.bf16.mxu0 0
        %944 = vmatmul.mubr.bf16.gmra.mxu0 %v674
        %v945 = vpop.f32.mrf.mxu0
        %v946 = vadd.f32 0.0, %v945
        %v947 = vpop.f32.mrf.mxu0
        %v948 = vpop.f32.mrf.mxu0
        %v949 = vadd.f32 0.0, %v948
        %v950 = vpop.f32.mrf.mxu0
        %951 = vmatprep.mubr.bf16.mxu0 0
        %952 = vmatmul.mubr.bf16.gmra.mxu0 %v677
        %v953 = vpop.f32.mrf.mxu0
        %v954 = vadd.f32 0.0, %v953
        %v955 = vpop.f32.mrf.mxu0
        %v956 = vpop.f32.mrf.mxu0
        %v957 = vadd.f32 0.0, %v956
        %v958 = vpop.f32.mrf.mxu0
        %959 = vmatprep.mubr.bf16.mxu0 0
        %960 = vmatmul.mubr.bf16.gmra.mxu0 %v680
        %v961 = vpop.f32.mrf.mxu0
        %v962 = vadd.f32 0.0, %v961
        %v963 = vpop.f32.mrf.mxu0
        %v964 = vpop.f32.mrf.mxu0
        %v965 = vadd.f32 0.0, %v964
        %v966 = vpop.f32.mrf.mxu0
        %967 = vmatprep.mubr.bf16.mxu0 0
        %968 = vmatmul.mubr.bf16.gmra.mxu0 %v683
        %v969 = vpop.f32.mrf.mxu0
        %v970 = vadd.f32 0.0, %v969
        %v971 = vpop.f32.mrf.mxu0
        %v972 = vpop.f32.mrf.mxu0
        %v973 = vadd.f32 0.0, %v972
        %v974 = vpop.f32.mrf.mxu0
        %975 = vdwg.mxu0
        %976 = vmatprep.subr.bf16.mxu0 0
        %977 = vmatpush1.bf16.msra.mxu0 0
        %978 = vmatprep.subr.bf16.mxu0 0
        %979 = vmatpush1.bf16.msra.mxu0 0
        %980 = vmatprep.subr.bf16.mxu0 0
        %981 = vmatpush1.bf16.msra.mxu0 0
        %982 = vmatprep.subr.bf16.mxu0 0
        %983 = vmatpush1.bf16.msra.mxu0 0
        %984 = vmatprep.subr.bf16.mxu0 0
        %985 = vmatpush1.bf16.msra.mxu0 0
        %986 = vmatprep.subr.bf16.mxu0 0
        %987 = vmatpush1.bf16.msra.mxu0 0
        %988 = vmatprep.subr.bf16.mxu0 0
        %989 = vmatpush1.bf16.msra.mxu0 0
        %990 = vmatprep.subr.bf16.mxu0 0
        %991 = vmatpush1.bf16.msra.mxu0 %v512
        %992 = vmatprep.subr.bf16.mxu0 0
        %993 = vmatpush2.bf16.msra.mxu0 0
        %994 = vmatprep.subr.bf16.mxu0 0
        %995 = vmatpush2.bf16.msra.mxu0 0
        %996 = vmatprep.subr.bf16.mxu0 0
        %997 = vmatpush2.bf16.msra.mxu0 0
        %998 = vmatprep.subr.bf16.mxu0 0
        %999 = vmatpush2.bf16.msra.mxu0 0
        %1000 = vmatprep.subr.bf16.mxu0 0
        %1001 = vmatpush2.bf16.msra.mxu0 0
        %1002 = vmatprep.subr.bf16.mxu0 0
        %1003 = vmatpush2.bf16.msra.mxu0 0
        %1004 = vmatprep.subr.bf16.mxu0 0
        %1005 = vmatpush2.bf16.msra.mxu0 0
        %1006 = vmatprep.subr.bf16.mxu0 0
        %1007 = vmatpush2.bf16.msra.mxu0 0
        %1008 = vmatprep.mubr.bf16.mxu0 0
        %1009 = vmatmul.mubr.bf16.gmra.mxu0 %v662
        %v1010 = vpop.f32.mrf.mxu0
        %v1011 = vadd.f32 0.0, %v1010
        %v1012 = vpop.f32.mrf.mxu0
        %v1013 = vpop.f32.mrf.mxu0
        %v1014 = vadd.f32 0.0, %v1013
        %v1015 = vpop.f32.mrf.mxu0
        %1016 = vmatprep.mubr.bf16.mxu0 0
        %1017 = vmatmul.mubr.bf16.gmra.mxu0 %v665
        %v1018 = vpop.f32.mrf.mxu0
        %v1019 = vadd.f32 0.0, %v1018
        %v1020 = vpop.f32.mrf.mxu0
        %v1021 = vpop.f32.mrf.mxu0
        %v1022 = vadd.f32 0.0, %v1021
        %v1023 = vpop.f32.mrf.mxu0
        %1024 = vmatprep.mubr.bf16.mxu0 0
        %1025 = vmatmul.mubr.bf16.gmra.mxu0 %v668
        %v1026 = vpop.f32.mrf.mxu0
        %v1027 = vadd.f32 0.0, %v1026
        %v1028 = vpop.f32.mrf.mxu0
        %v1029 = vpop.f32.mrf.mxu0
        %v1030 = vadd.f32 0.0, %v1029
        %v1031 = vpop.f32.mrf.mxu0
        %1032 = vmatprep.mubr.bf16.mxu0 0
        %1033 = vmatmul.mubr.bf16.gmra.mxu0 %v671
        %v1034 = vpop.f32.mrf.mxu0
        %v1035 = vadd.f32 0.0, %v1034
        %v1036 = vpop.f32.mrf.mxu0
        %v1037 = vpop.f32.mrf.mxu0
        %v1038 = vadd.f32 0.0, %v1037
        %v1039 = vpop.f32.mrf.mxu0
        %1040 = vmatprep.mubr.bf16.mxu0 0
        %1041 = vmatmul.mubr.bf16.gmra.mxu0 %v674
        %v1042 = vpop.f32.mrf.mxu0
        %v1043 = vadd.f32 0.0, %v1042
        %v1044 = vpop.f32.mrf.mxu0
        %v1045 = vpop.f32.mrf.mxu0
        %v1046 = vadd.f32 0.0, %v1045
        %v1047 = vpop.f32.mrf.mxu0
        %1048 = vmatprep.mubr.bf16.mxu0 0
        %1049 = vmatmul.mubr.bf16.gmra.mxu0 %v677
        %v1050 = vpop.f32.mrf.mxu0
        %v1051 = vadd.f32 0.0, %v1050
        %v1052 = vpop.f32.mrf.mxu0
        %v1053 = vpop.f32.mrf.mxu0
        %v1054 = vadd.f32 0.0, %v1053
        %v1055 = vpop.f32.mrf.mxu0
        %1056 = vmatprep.mubr.bf16.mxu0 0
        %1057 = vmatmul.mubr.bf16.gmra.mxu0 %v680
        %v1058 = vpop.f32.mrf.mxu0
        %v1059 = vadd.f32 0.0, %v1058
        %v1060 = vpop.f32.mrf.mxu0
        %v1061 = vpop.f32.mrf.mxu0
        %v1062 = vadd.f32 0.0, %v1061
        %v1063 = vpop.f32.mrf.mxu0
        %1064 = vmatprep.mubr.bf16.mxu0 0
        %1065 = vmatmul.mubr.bf16.gmra.mxu0 %v683
        %v1066 = vpop.f32.mrf.mxu0
        %v1067 = vadd.f32 0.0, %v1066
        %v1068 = vpop.f32.mrf.mxu0
        %v1069 = vpop.f32.mrf.mxu0
        %v1070 = vadd.f32 0.0, %v1069
        %v1071 = vpop.f32.mrf.mxu0
        %1072 = vdwg.mxu0
        %1073 = vmatprep.subr.bf16.mxu0 0
        %1074 = vmatpush1.bf16.msra.mxu0 0
        %1075 = vmatprep.subr.bf16.mxu0 0
        %1076 = vmatpush1.bf16.msra.mxu0 0
        %1077 = vmatprep.subr.bf16.mxu0 0
        %1078 = vmatpush1.bf16.msra.mxu0 0
        %1079 = vmatprep.subr.bf16.mxu0 0
        %1080 = vmatpush1.bf16.msra.mxu0 0
        %1081 = vmatprep.subr.bf16.mxu0 0
        %1082 = vmatpush1.bf16.msra.mxu0 0
        %1083 = vmatprep.subr.bf16.mxu0 0
        %1084 = vmatpush1.bf16.msra.mxu0 0
        %1085 = vmatprep.subr.bf16.mxu0 0
        %1086 = vmatpush1.bf16.msra.mxu0 0
        %1087 = vmatprep.subr.bf16.mxu0 0
        %1088 = vmatpush1.bf16.msra.mxu0 %v513
        %1089 = vmatprep.subr.bf16.mxu0 0
        %1090 = vmatpush2.bf16.msra.mxu0 0
        %1091 = vmatprep.subr.bf16.mxu0 0
        %1092 = vmatpush2.bf16.msra.mxu0 0
        %1093 = vmatprep.subr.bf16.mxu0 0
        %1094 = vmatpush2.bf16.msra.mxu0 0
        %1095 = vmatprep.subr.bf16.mxu0 0
        %1096 = vmatpush2.bf16.msra.mxu0 0
        %1097 = vmatprep.subr.bf16.mxu0 0
        %1098 = vmatpush2.bf16.msra.mxu0 0
        %1099 = vmatprep.subr.bf16.mxu0 0
        %1100 = vmatpush2.bf16.msra.mxu0 0
        %1101 = vmatprep.subr.bf16.mxu0 0
        %1102 = vmatpush2.bf16.msra.mxu0 0
        %1103 = vmatprep.subr.bf16.mxu0 0
        %1104 = vmatpush2.bf16.msra.mxu0 0
        %1105 = vmatprep.mubr.bf16.mxu0 0
        %1106 = vmatmul.mubr.bf16.gmra.mxu0 %v662
        %v1107 = vpop.f32.mrf.mxu0
        %v1108 = vadd.f32 0.0, %v1107
        %v1109 = vpop.f32.mrf.mxu0
        %v1110 = vpop.f32.mrf.mxu0
        %v1111 = vadd.f32 0.0, %v1110
        %v1112 = vpop.f32.mrf.mxu0
        %1113 = vmatprep.mubr.bf16.mxu0 0
        %1114 = vmatmul.mubr.bf16.gmra.mxu0 %v665
        %v1115 = vpop.f32.mrf.mxu0
        %v1116 = vadd.f32 0.0, %v1115
        %v1117 = vpop.f32.mrf.mxu0
        %v1118 = vpop.f32.mrf.mxu0
        %v1119 = vadd.f32 0.0, %v1118
        %v1120 = vpop.f32.mrf.mxu0
        %1121 = vmatprep.mubr.bf16.mxu0 0
        %1122 = vmatmul.mubr.bf16.gmra.mxu0 %v668
        %v1123 = vpop.f32.mrf.mxu0
        %v1124 = vadd.f32 0.0, %v1123
        %v1125 = vpop.f32.mrf.mxu0
        %v1126 = vpop.f32.mrf.mxu0
        %v1127 = vadd.f32 0.0, %v1126
        %v1128 = vpop.f32.mrf.mxu0
        %1129 = vmatprep.mubr.bf16.mxu0 0
        %1130 = vmatmul.mubr.bf16.gmra.mxu0 %v671
        %v1131 = vpop.f32.mrf.mxu0
        %v1132 = vadd.f32 0.0, %v1131
        %v1133 = vpop.f32.mrf.mxu0
        %v1134 = vpop.f32.mrf.mxu0
        %v1135 = vadd.f32 0.0, %v1134
        %v1136 = vpop.f32.mrf.mxu0
        %1137 = vmatprep.mubr.bf16.mxu0 0
        %1138 = vmatmul.mubr.bf16.gmra.mxu0 %v674
        %v1139 = vpop.f32.mrf.mxu0
        %v1140 = vadd.f32 0.0, %v1139
        %v1141 = vpop.f32.mrf.mxu0
        %v1142 = vpop.f32.mrf.mxu0
        %v1143 = vadd.f32 0.0, %v1142
        %v1144 = vpop.f32.mrf.mxu0
        %1145 = vmatprep.mubr.bf16.mxu0 0
        %1146 = vmatmul.mubr.bf16.gmra.mxu0 %v677
        %v1147 = vpop.f32.mrf.mxu0
        %v1148 = vadd.f32 0.0, %v1147
        %v1149 = vpop.f32.mrf.mxu0
        %v1150 = vpop.f32.mrf.mxu0
        %v1151 = vadd.f32 0.0, %v1150
        %v1152 = vpop.f32.mrf.mxu0
        %1153 = vmatprep.mubr.bf16.mxu0 0
        %1154 = vmatmul.mubr.bf16.gmra.mxu0 %v680
        %v1155 = vpop.f32.mrf.mxu0
        %v1156 = vadd.f32 0.0, %v1155
        %v1157 = vpop.f32.mrf.mxu0
        %v1158 = vpop.f32.mrf.mxu0
        %v1159 = vadd.f32 0.0, %v1158
        %v1160 = vpop.f32.mrf.mxu0
        %1161 = vmatprep.mubr.bf16.mxu0 0
        %1162 = vmatmul.mubr.bf16.gmra.mxu0 %v683
        %v1163 = vpop.f32.mrf.mxu0
        %v1164 = vadd.f32 0.0, %v1163
        %v1165 = vpop.f32.mrf.mxu0
        %v1166 = vpop.f32.mrf.mxu0
        %v1167 = vadd.f32 0.0, %v1166
        %v1168 = vpop.f32.mrf.mxu0
        %1169 = vdwg.mxu0
        %1170 = vmatprep.subr.bf16.mxu0 0
        %1171 = vmatpush1.bf16.msra.mxu0 0
        %1172 = vmatprep.subr.bf16.mxu0 0
        %1173 = vmatpush1.bf16.msra.mxu0 0
        %1174 = vmatprep.subr.bf16.mxu0 0
        %1175 = vmatpush1.bf16.msra.mxu0 0
        %1176 = vmatprep.subr.bf16.mxu0 0
        %1177 = vmatpush1.bf16.msra.mxu0 0
        %1178 = vmatprep.subr.bf16.mxu0 0
        %1179 = vmatpush1.bf16.msra.mxu0 0
        %1180 = vmatprep.subr.bf16.mxu0 0
        %1181 = vmatpush1.bf16.msra.mxu0 0
        %1182 = vmatprep.subr.bf16.mxu0 0
        %1183 = vmatpush1.bf16.msra.mxu0 0
        %1184 = vmatprep.subr.bf16.mxu0 0
        %1185 = vmatpush1.bf16.msra.mxu0 %v514
        %1186 = vmatprep.subr.bf16.mxu0 0
        %1187 = vmatpush2.bf16.msra.mxu0 0
        %1188 = vmatprep.subr.bf16.mxu0 0
        %1189 = vmatpush2.bf16.msra.mxu0 0
        %1190 = vmatprep.subr.bf16.mxu0 0
        %1191 = vmatpush2.bf16.msra.mxu0 0
        %1192 = vmatprep.subr.bf16.mxu0 0
        %1193 = vmatpush2.bf16.msra.mxu0 0
        %1194 = vmatprep.subr.bf16.mxu0 0
        %1195 = vmatpush2.bf16.msra.mxu0 0
        %1196 = vmatprep.subr.bf16.mxu0 0
        %1197 = vmatpush2.bf16.msra.mxu0 0
        %1198 = vmatprep.subr.bf16.mxu0 0
        %1199 = vmatpush2.bf16.msra.mxu0 0
        %1200 = vmatprep.subr.bf16.mxu0 0
        %1201 = vmatpush2.bf16.msra.mxu0 0
        %1202 = vmatprep.mubr.bf16.mxu0 0
        %1203 = vmatmul.mubr.bf16.gmra.mxu0 %v662
        %v1204 = vpop.f32.mrf.mxu0
        %v1205 = vadd.f32 0.0, %v1204
        %v1206 = vpop.f32.mrf.mxu0
        %v1207 = vpop.f32.mrf.mxu0
        %v1208 = vadd.f32 0.0, %v1207
        %v1209 = vpop.f32.mrf.mxu0
        %1210 = vmatprep.mubr.bf16.mxu0 0
        %1211 = vmatmul.mubr.bf16.gmra.mxu0 %v665
        %v1212 = vpop.f32.mrf.mxu0
        %v1213 = vadd.f32 0.0, %v1212
        %v1214 = vpop.f32.mrf.mxu0
        %v1215 = vpop.f32.mrf.mxu0
        %v1216 = vadd.f32 0.0, %v1215
        %v1217 = vpop.f32.mrf.mxu0
        %1218 = vmatprep.mubr.bf16.mxu0 0
        %1219 = vmatmul.mubr.bf16.gmra.mxu0 %v668
        %v1220 = vpop.f32.mrf.mxu0
        %v1221 = vadd.f32 0.0, %v1220
        %v1222 = vpop.f32.mrf.mxu0
        %v1223 = vpop.f32.mrf.mxu0
        %v1224 = vadd.f32 0.0, %v1223
        %v1225 = vpop.f32.mrf.mxu0
        %1226 = vmatprep.mubr.bf16.mxu0 0
        %1227 = vmatmul.mubr.bf16.gmra.mxu0 %v671
        %v1228 = vpop.f32.mrf.mxu0
        %v1229 = vadd.f32 0.0, %v1228
        %v1230 = vpop.f32.mrf.mxu0
        %v1231 = vpop.f32.mrf.mxu0
        %v1232 = vadd.f32 0.0, %v1231
        %v1233 = vpop.f32.mrf.mxu0
        %1234 = vmatprep.mubr.bf16.mxu0 0
        %1235 = vmatmul.mubr.bf16.gmra.mxu0 %v674
        %v1236 = vpop.f32.mrf.mxu0
        %v1237 = vadd.f32 0.0, %v1236
        %v1238 = vpop.f32.mrf.mxu0
        %v1239 = vpop.f32.mrf.mxu0
        %v1240 = vadd.f32 0.0, %v1239
        %v1241 = vpop.f32.mrf.mxu0
        %1242 = vmatprep.mubr.bf16.mxu0 0
        %1243 = vmatmul.mubr.bf16.gmra.mxu0 %v677
        %v1244 = vpop.f32.mrf.mxu0
        %v1245 = vadd.f32 0.0, %v1244
        %v1246 = vpop.f32.mrf.mxu0
        %v1247 = vpop.f32.mrf.mxu0
        %v1248 = vadd.f32 0.0, %v1247
        %v1249 = vpop.f32.mrf.mxu0
        %1250 = vmatprep.mubr.bf16.mxu0 0
        %1251 = vmatmul.mubr.bf16.gmra.mxu0 %v680
        %v1252 = vpop.f32.mrf.mxu0
        %v1253 = vadd.f32 0.0, %v1252
        %v1254 = vpop.f32.mrf.mxu0
        %v1255 = vpop.f32.mrf.mxu0
        %v1256 = vadd.f32 0.0, %v1255
        %v1257 = vpop.f32.mrf.mxu0
        %1258 = vmatprep.mubr.bf16.mxu0 0
        %1259 = vmatmul.mubr.bf16.gmra.mxu0 %v683
        %v1260 = vpop.f32.mrf.mxu0
        %v1261 = vadd.f32 0.0, %v1260
        %v1262 = vpop.f32.mrf.mxu0
        %v1263 = vpop.f32.mrf.mxu0
        %v1264 = vadd.f32 0.0, %v1263
        %v1265 = vpop.f32.mrf.mxu0
        %1266 = vdwg.mxu0
        %1267 = vmatprep.subr.bf16.mxu0 0
        %1268 = vmatpush1.bf16.msra.mxu0 0
        %1269 = vmatprep.subr.bf16.mxu0 0
        %1270 = vmatpush1.bf16.msra.mxu0 0
        %1271 = vmatprep.subr.bf16.mxu0 0
        %1272 = vmatpush1.bf16.msra.mxu0 0
        %1273 = vmatprep.subr.bf16.mxu0 0
        %1274 = vmatpush1.bf16.msra.mxu0 0
        %1275 = vmatprep.subr.bf16.mxu0 0
        %1276 = vmatpush1.bf16.msra.mxu0 0
        %1277 = vmatprep.subr.bf16.mxu0 0
        %1278 = vmatpush1.bf16.msra.mxu0 0
        %1279 = vmatprep.subr.bf16.mxu0 0
        %1280 = vmatpush1.bf16.msra.mxu0 0
        %1281 = vmatprep.subr.bf16.mxu0 0
        %1282 = vmatpush1.bf16.msra.mxu0 %v515
        %1283 = vmatprep.subr.bf16.mxu0 0
        %1284 = vmatpush2.bf16.msra.mxu0 0
        %1285 = vmatprep.subr.bf16.mxu0 0
        %1286 = vmatpush2.bf16.msra.mxu0 0
        %1287 = vmatprep.subr.bf16.mxu0 0
        %1288 = vmatpush2.bf16.msra.mxu0 0
        %1289 = vmatprep.subr.bf16.mxu0 0
        %1290 = vmatpush2.bf16.msra.mxu0 0
        %1291 = vmatprep.subr.bf16.mxu0 0
        %1292 = vmatpush2.bf16.msra.mxu0 0
        %1293 = vmatprep.subr.bf16.mxu0 0
        %1294 = vmatpush2.bf16.msra.mxu0 0
        %1295 = vmatprep.subr.bf16.mxu0 0
        %1296 = vmatpush2.bf16.msra.mxu0 0
        %1297 = vmatprep.subr.bf16.mxu0 0
        %1298 = vmatpush2.bf16.msra.mxu0 0
        %1299 = vmatprep.mubr.bf16.mxu0 0
        %1300 = vmatmul.mubr.bf16.gmra.mxu0 %v662
        %v1301 = vpop.f32.mrf.mxu0
        %v1302 = vadd.f32 0.0, %v1301
        %v1303 = vpop.f32.mrf.mxu0
        %v1304 = vpop.f32.mrf.mxu0
        %v1305 = vadd.f32 0.0, %v1304
        %v1306 = vpop.f32.mrf.mxu0
        %1307 = vmatprep.mubr.bf16.mxu0 0
        %1308 = vmatmul.mubr.bf16.gmra.mxu0 %v665
        %v1309 = vpop.f32.mrf.mxu0
        %v1310 = vadd.f32 0.0, %v1309
        %v1311 = vpop.f32.mrf.mxu0
        %v1312 = vpop.f32.mrf.mxu0
        %v1313 = vadd.f32 0.0, %v1312
        %v1314 = vpop.f32.mrf.mxu0
        %1315 = vmatprep.mubr.bf16.mxu0 0
        %1316 = vmatmul.mubr.bf16.gmra.mxu0 %v668
        %v1317 = vpop.f32.mrf.mxu0
        %v1318 = vadd.f32 0.0, %v1317
        %v1319 = vpop.f32.mrf.mxu0
        %v1320 = vpop.f32.mrf.mxu0
        %v1321 = vadd.f32 0.0, %v1320
        %v1322 = vpop.f32.mrf.mxu0
        %1323 = vmatprep.mubr.bf16.mxu0 0
        %1324 = vmatmul.mubr.bf16.gmra.mxu0 %v671
        %v1325 = vpop.f32.mrf.mxu0
        %v1326 = vadd.f32 0.0, %v1325
        %v1327 = vpop.f32.mrf.mxu0
        %v1328 = vpop.f32.mrf.mxu0
        %v1329 = vadd.f32 0.0, %v1328
        %v1330 = vpop.f32.mrf.mxu0
        %1331 = vmatprep.mubr.bf16.mxu0 0
        %1332 = vmatmul.mubr.bf16.gmra.mxu0 %v674
        %v1333 = vpop.f32.mrf.mxu0
        %v1334 = vadd.f32 0.0, %v1333
        %v1335 = vpop.f32.mrf.mxu0
        %v1336 = vpop.f32.mrf.mxu0
        %v1337 = vadd.f32 0.0, %v1336
        %v1338 = vpop.f32.mrf.mxu0
        %1339 = vmatprep.mubr.bf16.mxu0 0
        %1340 = vmatmul.mubr.bf16.gmra.mxu0 %v677
        %v1341 = vpop.f32.mrf.mxu0
        %v1342 = vadd.f32 0.0, %v1341
        %v1343 = vpop.f32.mrf.mxu0
        %v1344 = vpop.f32.mrf.mxu0
        %v1345 = vadd.f32 0.0, %v1344
        %v1346 = vpop.f32.mrf.mxu0
        %1347 = vmatprep.mubr.bf16.mxu0 0
        %1348 = vmatmul.mubr.bf16.gmra.mxu0 %v680
        %v1349 = vpop.f32.mrf.mxu0
        %v1350 = vadd.f32 0.0, %v1349
        %v1351 = vpop.f32.mrf.mxu0
        %v1352 = vpop.f32.mrf.mxu0
        %v1353 = vadd.f32 0.0, %v1352
        %v1354 = vpop.f32.mrf.mxu0
        %1355 = vmatprep.mubr.bf16.mxu0 0
        %1356 = vmatmul.mubr.bf16.gmra.mxu0 %v683
        %v1357 = vpop.f32.mrf.mxu0
        %v1358 = vadd.f32 0.0, %v1357
        %v1359 = vpop.f32.mrf.mxu0
        %v1360 = vpop.f32.mrf.mxu0
        %v1361 = vadd.f32 0.0, %v1360
        %v1362 = vpop.f32.mrf.mxu0
        %1363 = vdwg.mxu0
        %1364 = vmatprep.subr.bf16.mxu0 0
        %1365 = vmatpush1.bf16.msra.mxu0 0
        %1366 = vmatprep.subr.bf16.mxu0 0
        %1367 = vmatpush1.bf16.msra.mxu0 0
        %1368 = vmatprep.subr.bf16.mxu0 0
        %1369 = vmatpush1.bf16.msra.mxu0 0
        %1370 = vmatprep.subr.bf16.mxu0 0
        %1371 = vmatpush1.bf16.msra.mxu0 0
        %1372 = vmatprep.subr.bf16.mxu0 0
        %1373 = vmatpush1.bf16.msra.mxu0 0
        %1374 = vmatprep.subr.bf16.mxu0 0
        %1375 = vmatpush1.bf16.msra.mxu0 0
        %1376 = vmatprep.subr.bf16.mxu0 0
        %1377 = vmatpush1.bf16.msra.mxu0 0
        %1378 = vmatprep.subr.bf16.mxu0 0
        %1379 = vmatpush1.bf16.msra.mxu0 %v516
        %1380 = vmatprep.subr.bf16.mxu0 0
        %1381 = vmatpush2.bf16.msra.mxu0 0
        %1382 = vmatprep.subr.bf16.mxu0 0
        %1383 = vmatpush2.bf16.msra.mxu0 0
        %1384 = vmatprep.subr.bf16.mxu0 0
        %1385 = vmatpush2.bf16.msra.mxu0 0
        %1386 = vmatprep.subr.bf16.mxu0 0
        %1387 = vmatpush2.bf16.msra.mxu0 0
        %1388 = vmatprep.subr.bf16.mxu0 0
        %1389 = vmatpush2.bf16.msra.mxu0 0
        %1390 = vmatprep.subr.bf16.mxu0 0
        %1391 = vmatpush2.bf16.msra.mxu0 0
        %1392 = vmatprep.subr.bf16.mxu0 0
        %1393 = vmatpush2.bf16.msra.mxu0 0
        %1394 = vmatprep.subr.bf16.mxu0 0
        %1395 = vmatpush2.bf16.msra.mxu0 0
        %1396 = vmatprep.mubr.bf16.mxu0 0
        %1397 = vmatmul.mubr.bf16.gmra.mxu0 %v662
        %v1398 = vpop.f32.mrf.mxu0
        %v1399 = vadd.f32 0.0, %v1398
        %v1400 = vpop.f32.mrf.mxu0
        %v1401 = vpop.f32.mrf.mxu0
        %v1402 = vadd.f32 0.0, %v1401
        %v1403 = vpop.f32.mrf.mxu0
        %1404 = vmatprep.mubr.bf16.mxu0 0
        %1405 = vmatmul.mubr.bf16.gmra.mxu0 %v665
        %v1406 = vpop.f32.mrf.mxu0
        %v1407 = vadd.f32 0.0, %v1406
        %v1408 = vpop.f32.mrf.mxu0
        %v1409 = vpop.f32.mrf.mxu0
        %v1410 = vadd.f32 0.0, %v1409
        %v1411 = vpop.f32.mrf.mxu0
        %1412 = vmatprep.mubr.bf16.mxu0 0
        %1413 = vmatmul.mubr.bf16.gmra.mxu0 %v668
        %v1414 = vpop.f32.mrf.mxu0
        %v1415 = vadd.f32 0.0, %v1414
        %v1416 = vpop.f32.mrf.mxu0
        %v1417 = vpop.f32.mrf.mxu0
        %v1418 = vadd.f32 0.0, %v1417
        %v1419 = vpop.f32.mrf.mxu0
        %1420 = vmatprep.mubr.bf16.mxu0 0
        %1421 = vmatmul.mubr.bf16.gmra.mxu0 %v671
        %v1422 = vpop.f32.mrf.mxu0
        %v1423 = vadd.f32 0.0, %v1422
        %v1424 = vpop.f32.mrf.mxu0
        %v1425 = vpop.f32.mrf.mxu0
        %v1426 = vadd.f32 0.0, %v1425
        %v1427 = vpop.f32.mrf.mxu0
        %1428 = vmatprep.mubr.bf16.mxu0 0
        %1429 = vmatmul.mubr.bf16.gmra.mxu0 %v674
        %v1430 = vpop.f32.mrf.mxu0
        %v1431 = vadd.f32 0.0, %v1430
        %v1432 = vpop.f32.mrf.mxu0
        %v1433 = vpop.f32.mrf.mxu0
        %v1434 = vadd.f32 0.0, %v1433
        %v1435 = vpop.f32.mrf.mxu0
        %1436 = vmatprep.mubr.bf16.mxu0 0
        %1437 = vmatmul.mubr.bf16.gmra.mxu0 %v677
        %v1438 = vpop.f32.mrf.mxu0
        %v1439 = vadd.f32 0.0, %v1438
        %v1440 = vpop.f32.mrf.mxu0
        %v1441 = vpop.f32.mrf.mxu0
        %v1442 = vadd.f32 0.0, %v1441
        %v1443 = vpop.f32.mrf.mxu0
        %1444 = vmatprep.mubr.bf16.mxu0 0
        %1445 = vmatmul.mubr.bf16.gmra.mxu0 %v680
        %v1446 = vpop.f32.mrf.mxu0
        %v1447 = vadd.f32 0.0, %v1446
        %v1448 = vpop.f32.mrf.mxu0
        %v1449 = vpop.f32.mrf.mxu0
        %v1450 = vadd.f32 0.0, %v1449
        %v1451 = vpop.f32.mrf.mxu0
        %1452 = vmatprep.mubr.bf16.mxu0 0
        %1453 = vmatmul.mubr.bf16.gmra.mxu0 %v683
        %v1454 = vpop.f32.mrf.mxu0
        %v1455 = vadd.f32 0.0, %v1454
        %v1456 = vpop.f32.mrf.mxu0
        %v1457 = vpop.f32.mrf.mxu0
        %v1458 = vadd.f32 0.0, %v1457
        %v1459 = vpop.f32.mrf.mxu0
        %1460 = vdwg.mxu0
        %1461 = vmatprep.subr.bf16.mxu0 0
        %1462 = vmatpush1.bf16.msra.mxu0 0
        %1463 = vmatprep.subr.bf16.mxu0 0
        %1464 = vmatpush1.bf16.msra.mxu0 0
        %1465 = vmatprep.subr.bf16.mxu0 0
        %1466 = vmatpush1.bf16.msra.mxu0 0
        %1467 = vmatprep.subr.bf16.mxu0 0
        %1468 = vmatpush1.bf16.msra.mxu0 0
        %1469 = vmatprep.subr.bf16.mxu0 0
        %1470 = vmatpush1.bf16.msra.mxu0 0
        %1471 = vmatprep.subr.bf16.mxu0 0
        %1472 = vmatpush1.bf16.msra.mxu0 0
        %1473 = vmatprep.subr.bf16.mxu0 0
        %1474 = vmatpush1.bf16.msra.mxu0 0
        %1475 = vmatprep.subr.bf16.mxu0 0
        %1476 = vmatpush1.bf16.msra.mxu0 %v517
        %1477 = vmatprep.subr.bf16.mxu0 0
        %1478 = vmatpush2.bf16.msra.mxu0 0
        %1479 = vmatprep.subr.bf16.mxu0 0
        %1480 = vmatpush2.bf16.msra.mxu0 0
        %1481 = vmatprep.subr.bf16.mxu0 0
        %1482 = vmatpush2.bf16.msra.mxu0 0
        %1483 = vmatprep.subr.bf16.mxu0 0
        %1484 = vmatpush2.bf16.msra.mxu0 0
        %1485 = vmatprep.subr.bf16.mxu0 0
        %1486 = vmatpush2.bf16.msra.mxu0 0
        %1487 = vmatprep.subr.bf16.mxu0 0
        %1488 = vmatpush2.bf16.msra.mxu0 0
        %1489 = vmatprep.subr.bf16.mxu0 0
        %1490 = vmatpush2.bf16.msra.mxu0 0
        %1491 = vmatprep.subr.bf16.mxu0 0
        %1492 = vmatpush2.bf16.msra.mxu0 0
        %1493 = vmatprep.mubr.bf16.mxu0 0
        %1494 = vmatmul.mubr.bf16.gmra.mxu0 %v662
        %v1495 = vpop.f32.mrf.mxu0
        %v1496 = vadd.f32 0.0, %v1495
        %v1497 = vpop.f32.mrf.mxu0
        %v1498 = vpop.f32.mrf.mxu0
        %v1499 = vadd.f32 0.0, %v1498
        %v1500 = vpop.f32.mrf.mxu0
        %1501 = vmatprep.mubr.bf16.mxu0 0
        %1502 = vmatmul.mubr.bf16.gmra.mxu0 %v665
        %v1503 = vpop.f32.mrf.mxu0
        %v1504 = vadd.f32 0.0, %v1503
        %v1505 = vpop.f32.mrf.mxu0
        %v1506 = vpop.f32.mrf.mxu0
        %v1507 = vadd.f32 0.0, %v1506
        %v1508 = vpop.f32.mrf.mxu0
        %1509 = vmatprep.mubr.bf16.mxu0 0
        %1510 = vmatmul.mubr.bf16.gmra.mxu0 %v668
        %v1511 = vpop.f32.mrf.mxu0
        %v1512 = vadd.f32 0.0, %v1511
        %v1513 = vpop.f32.mrf.mxu0
        %v1514 = vpop.f32.mrf.mxu0
        %v1515 = vadd.f32 0.0, %v1514
        %v1516 = vpop.f32.mrf.mxu0
        %1517 = vmatprep.mubr.bf16.mxu0 0
        %1518 = vmatmul.mubr.bf16.gmra.mxu0 %v671
        %v1519 = vpop.f32.mrf.mxu0
        %v1520 = vadd.f32 0.0, %v1519
        %v1521 = vpop.f32.mrf.mxu0
        %v1522 = vpop.f32.mrf.mxu0
        %v1523 = vadd.f32 0.0, %v1522
        %v1524 = vpop.f32.mrf.mxu0
        %1525 = vmatprep.mubr.bf16.mxu0 0
        %1526 = vmatmul.mubr.bf16.gmra.mxu0 %v674
        %v1527 = vpop.f32.mrf.mxu0
        %v1528 = vadd.f32 0.0, %v1527
        %v1529 = vpop.f32.mrf.mxu0
        %v1530 = vpop.f32.mrf.mxu0
        %v1531 = vadd.f32 0.0, %v1530
        %v1532 = vpop.f32.mrf.mxu0
        %1533 = vmatprep.mubr.bf16.mxu0 0
        %1534 = vmatmul.mubr.bf16.gmra.mxu0 %v677
        %v1535 = vpop.f32.mrf.mxu0
        %v1536 = vadd.f32 0.0, %v1535
        %v1537 = vpop.f32.mrf.mxu0
        %v1538 = vpop.f32.mrf.mxu0
        %v1539 = vadd.f32 0.0, %v1538
        %v1540 = vpop.f32.mrf.mxu0
        %1541 = vmatprep.mubr.bf16.mxu0 0
        %1542 = vmatmul.mubr.bf16.gmra.mxu0 %v680
        %v1543 = vpop.f32.mrf.mxu0
        %v1544 = vadd.f32 0.0, %v1543
        %v1545 = vpop.f32.mrf.mxu0
        %v1546 = vpop.f32.mrf.mxu0
        %v1547 = vadd.f32 0.0, %v1546
        %v1548 = vpop.f32.mrf.mxu0
        %1549 = vmatprep.mubr.bf16.mxu0 0
        %1550 = vmatmul.mubr.bf16.gmra.mxu0 %v683
        %v1551 = vpop.f32.mrf.mxu0
        %v1552 = vadd.f32 0.0, %v1551
        %v1553 = vpop.f32.mrf.mxu0
        %v1554 = vpop.f32.mrf.mxu0
        %v1555 = vadd.f32 0.0, %v1554
        %v1556 = vpop.f32.mrf.mxu0
        %1557 = vdwg.mxu0
        %v1558 = vld [vmem:[%s3] sm:$0xff]
        %v1559 = vld [vmem:[%s3 + $0x8] sm:$0xff]
        %v1560 = vld [vmem:[%s3 + $0x10] sm:$0xff]
        %v1561 = vld [vmem:[%s3 + $0x18] sm:$0xff]
        %v1562 = vld [vmem:[%s3 + $0x20] sm:$0xff]
        %v1563 = vld [vmem:[%s3 + $0x28] sm:$0xff]
        %v1564 = vld [vmem:[%s3 + $0x30] sm:$0xff]
        %v1565 = vld [vmem:[%s3 + $0x38] sm:$0xff]
        %v1566 = vld [vmem:[%s4] sm:$0xff]
        %v1567 = vld [vmem:[%s4 + $0x8] sm:$0xff]
        %v1568 = vld [vmem:[%s4 + $0x10] sm:$0xff]
        %v1569 = vld [vmem:[%s4 + $0x18] sm:$0xff]
        %v1570 = vld [vmem:[%s4 + $0x20] sm:$0xff]
        %v1571 = vld [vmem:[%s4 + $0x28] sm:$0xff]
        %v1572 = vld [vmem:[%s4 + $0x30] sm:$0xff]
        %v1573 = vld [vmem:[%s4 + $0x38] sm:$0xff]
        %v1574 = vadd.f32 %v575, %v578
        %v1575 = vadd.f32 %v1574, %v583
        %v1576 = vadd.f32 %v1575, %v586
        %v1577 = vadd.f32 %v1576, %v591
        %v1578 = vadd.f32 %v1577, %v594
        %v1579 = vadd.f32 %v1578, %v599
        %v1580 = vadd.f32 %v1579, %v602
        %v1581 = vrot.slane %v1580, 4
        %v1582 = vadd.f32 %v1580, %v1581
        %v1583 = vrot.slane %v1582, 2
        %v1584 = vadd.f32 %v1582, %v1583
        %v1585 = vrot.slane %v1584, 1
        %v1586 = vadd.f32 %v1584, %v1585
        %v1587 = vrcp.pop 64.0
        %v1588 = vmul.f32 %v1586, %v1587
        %v1589 = vsub.f32 %v575, %v1588
        %v1590 = vsub.f32 %v578, %v1588
        %v1591 = vsub.f32 %v583, %v1588
        %v1592 = vsub.f32 %v586, %v1588
        %v1593 = vsub.f32 %v591, %v1588
        %v1594 = vsub.f32 %v594, %v1588
        %v1595 = vsub.f32 %v599, %v1588
        %v1596 = vsub.f32 %v602, %v1588
        %v1597 = vmul.f32 %v1589, %v1589
        %v1598 = vmul.f32 %v1590, %v1590
        %v1599 = vmul.f32 %v1591, %v1591
        %v1600 = vmul.f32 %v1592, %v1592
        %v1601 = vmul.f32 %v1593, %v1593
        %v1602 = vmul.f32 %v1594, %v1594
        %v1603 = vmul.f32 %v1595, %v1595
        %v1604 = vmul.f32 %v1596, %v1596
        %v1605 = vadd.f32 %v1597, %v1598
        %v1606 = vadd.f32 %v1605, %v1599
        %v1607 = vadd.f32 %v1606, %v1600
        %v1608 = vadd.f32 %v1607, %v1601
        %v1609 = vadd.f32 %v1608, %v1602
        %v1610 = vadd.f32 %v1609, %v1603
        %v1611 = vadd.f32 %v1610, %v1604
        %v1612 = vrot.slane %v1611, 4
        %v1613 = vadd.f32 %v1611, %v1612
        %v1614 = vrot.slane %v1613, 2
        %v1615 = vadd.f32 %v1613, %v1614
        %v1616 = vrot.slane %v1615, 1
        %v1617 = vadd.f32 %v1615, %v1616
        %v1618 = vmul.f32 %v1617, %v1587
        %v1619 = vadd.f32 %v1618, 1e-06
        %v1620 = vrsqrt.pop %v1619
        %v1621 = vmul.f32 %v1589, %v1620
        %v1622 = vmul.f32 %v1590, %v1620
        %v1623 = vmul.f32 %v1591, %v1620
        %v1624 = vmul.f32 %v1592, %v1620
        %v1625 = vmul.f32 %v1593, %v1620
        %v1626 = vmul.f32 %v1594, %v1620
        %v1627 = vmul.f32 %v1595, %v1620
        %v1628 = vmul.f32 %v1596, %v1620
        %1630 = vset.pattern.permute.xlu0 0
        %1631 = vperm.xlu0 %1630, %v1558
        %v1632 = vpop.permute.xlu0 %1631
        %1635 = vset.pattern.permute.xlu0 0
        %1636 = vperm.xlu0 %1635, %v1559
        %v1637 = vpop.permute.xlu0 %1636
        %1640 = vset.pattern.permute.xlu0 0
        %1641 = vperm.xlu0 %1640, %v1560
        %v1642 = vpop.permute.xlu0 %1641
        %1645 = vset.pattern.permute.xlu0 0
        %1646 = vperm.xlu0 %1645, %v1561
        %v1647 = vpop.permute.xlu0 %1646
        %1650 = vset.pattern.permute.xlu0 0
        %1651 = vperm.xlu0 %1650, %v1562
        %v1652 = vpop.permute.xlu0 %1651
        %1655 = vset.pattern.permute.xlu0 0
        %1656 = vperm.xlu0 %1655, %v1563
        %v1657 = vpop.permute.xlu0 %1656
        %1660 = vset.pattern.permute.xlu0 0
        %1661 = vperm.xlu0 %1660, %v1564
        %v1662 = vpop.permute.xlu0 %1661
        %1665 = vset.pattern.permute.xlu0 0
        %1666 = vperm.xlu0 %1665, %v1565
        %v1667 = vpop.permute.xlu0 %1666
        %v1669 = vmul.f32 %v1621, %v1632
        %v1670 = vmul.f32 %v1622, %v1637
        %v1671 = vmul.f32 %v1623, %v1642
        %v1672 = vmul.f32 %v1624, %v1647
        %v1673 = vmul.f32 %v1625, %v1652
        %v1674 = vmul.f32 %v1626, %v1657
        %v1675 = vmul.f32 %v1627, %v1662
        %v1676 = vmul.f32 %v1628, %v1667
        %1678 = vset.pattern.permute.xlu0 0
        %1679 = vperm.xlu0 %1678, %v1566
        %v1680 = vpop.permute.xlu0 %1679
        %1683 = vset.pattern.permute.xlu0 0
        %1684 = vperm.xlu0 %1683, %v1567
        %v1685 = vpop.permute.xlu0 %1684
        %1688 = vset.pattern.permute.xlu0 0
        %1689 = vperm.xlu0 %1688, %v1568
        %v1690 = vpop.permute.xlu0 %1689
        %1693 = vset.pattern.permute.xlu0 0
        %1694 = vperm.xlu0 %1693, %v1569
        %v1695 = vpop.permute.xlu0 %1694
        %1698 = vset.pattern.permute.xlu0 0
        %1699 = vperm.xlu0 %1698, %v1570
        %v1700 = vpop.permute.xlu0 %1699
        %1703 = vset.pattern.permute.xlu0 0
        %1704 = vperm.xlu0 %1703, %v1571
        %v1705 = vpop.permute.xlu0 %1704
        %1708 = vset.pattern.permute.xlu0 0
        %1709 = vperm.xlu0 %1708, %v1572
        %v1710 = vpop.permute.xlu0 %1709
        %1713 = vset.pattern.permute.xlu0 0
        %1714 = vperm.xlu0 %1713, %v1573
        %v1715 = vpop.permute.xlu0 %1714
        %v1717 = vadd.f32 %v1669, %v1680
        %v1718 = vadd.f32 %v1670, %v1685
        %v1719 = vadd.f32 %v1671, %v1690
        %v1720 = vadd.f32 %v1672, %v1695
        %v1721 = vadd.f32 %v1673, %v1700
        %v1722 = vadd.f32 %v1674, %v1705
        %v1723 = vadd.f32 %v1675, %v1710
        %v1724 = vadd.f32 %v1676, %v1715
        %v1725 = vld [vmem:[%s5] sm:$0xff]
        %v1726 = vld [vmem:[%s5 + $0x8] sm:$0xff]
        %v1727 = vld [vmem:[%s5 + $0x10] sm:$0xff]
        %v1728 = vld [vmem:[%s5 + $0x18] sm:$0xff]
        %v1729 = vld [vmem:[%s5 + $0x20] sm:$0xff]
        %v1730 = vld [vmem:[%s5 + $0x28] sm:$0xff]
        %v1731 = vld [vmem:[%s5 + $0x30] sm:$0xff]
        %v1732 = vld [vmem:[%s5 + $0x38] sm:$0xff]
        %v1733 = vld [vmem:[%s6] sm:$0xff]
        %v1734 = vld [vmem:[%s6 + $0x8] sm:$0xff]
        %v1735 = vld [vmem:[%s6 + $0x10] sm:$0xff]
        %v1736 = vld [vmem:[%s6 + $0x18] sm:$0xff]
        %v1737 = vld [vmem:[%s6 + $0x20] sm:$0xff]
        %v1738 = vld [vmem:[%s6 + $0x28] sm:$0xff]
        %v1739 = vld [vmem:[%s6 + $0x30] sm:$0xff]
        %v1740 = vld [vmem:[%s6 + $0x38] sm:$0xff]
        %v1741 = vadd.f32 %v720, %v723
        %v1742 = vadd.f32 %v1741, %v728
        %v1743 = vadd.f32 %v1742, %v731
        %v1744 = vadd.f32 %v1743, %v736
        %v1745 = vadd.f32 %v1744, %v739
        %v1746 = vadd.f32 %v1745, %v744
        %v1747 = vadd.f32 %v1746, %v747
        %v1748 = vrot.slane %v1747, 4
        %v1749 = vadd.f32 %v1747, %v1748
        %v1750 = vrot.slane %v1749, 2
        %v1751 = vadd.f32 %v1749, %v1750
        %v1752 = vrot.slane %v1751, 1
        %v1753 = vadd.f32 %v1751, %v1752
        %v1754 = vadd.f32 %v817, %v820
        %v1755 = vadd.f32 %v1754, %v825
        %v1756 = vadd.f32 %v1755, %v828
        %v1757 = vadd.f32 %v1756, %v833
        %v1758 = vadd.f32 %v1757, %v836
        %v1759 = vadd.f32 %v1758, %v841
        %v1760 = vadd.f32 %v1759, %v844
        %v1761 = vrot.slane %v1760, 4
        %v1762 = vadd.f32 %v1760, %v1761
        %v1763 = vrot.slane %v1762, 2
        %v1764 = vadd.f32 %v1762, %v1763
        %v1765 = vrot.slane %v1764, 1
        %v1766 = vadd.f32 %v1764, %v1765
        %v1767 = vadd.f32 %v914, %v917
        %v1768 = vadd.f32 %v1767, %v922
        %v1769 = vadd.f32 %v1768, %v925
        %v1770 = vadd.f32 %v1769, %v930
        %v1771 = vadd.f32 %v1770, %v933
        %v1772 = vadd.f32 %v1771, %v938
        %v1773 = vadd.f32 %v1772, %v941
        %v1774 = vrot.slane %v1773, 4
        %v1775 = vadd.f32 %v1773, %v1774
        %v1776 = vrot.slane %v1775, 2
        %v1777 = vadd.f32 %v1775, %v1776
        %v1778 = vrot.slane %v1777, 1
        %v1779 = vadd.f32 %v1777, %v1778
        %v1780 = vadd.f32 %v1011, %v1014
        %v1781 = vadd.f32 %v1780, %v1019
        %v1782 = vadd.f32 %v1781, %v1022
        %v1783 = vadd.f32 %v1782, %v1027
        %v1784 = vadd.f32 %v1783, %v1030
        %v1785 = vadd.f32 %v1784, %v1035
        %v1786 = vadd.f32 %v1785, %v1038
        %v1787 = vrot.slane %v1786, 4
        %v1788 = vadd.f32 %v1786, %v1787
        %v1789 = vrot.slane %v1788, 2
        %v1790 = vadd.f32 %v1788, %v1789
        %v1791 = vrot.slane %v1790, 1
        %v1792 = vadd.f32 %v1790, %v1791
        %v1793 = vadd.f32 %v1108, %v1111
        %v1794 = vadd.f32 %v1793, %v1116
        %v1795 = vadd.f32 %v1794, %v1119
        %v1796 = vadd.f32 %v1795, %v1124
        %v1797 = vadd.f32 %v1796, %v1127
        %v1798 = vadd.f32 %v1797, %v1132
        %v1799 = vadd.f32 %v1798, %v1135
        %v1800 = vrot.slane %v1799, 4
        %v1801 = vadd.f32 %v1799, %v1800
        %v1802 = vrot.slane %v1801, 2
        %v1803 = vadd.f32 %v1801, %v1802
        %v1804 = vrot.slane %v1803, 1
        %v1805 = vadd.f32 %v1803, %v1804
        %v1806 = vadd.f32 %v1205, %v1208
        %v1807 = vadd.f32 %v1806, %v1213
        %v1808 = vadd.f32 %v1807, %v1216
        %v1809 = vadd.f32 %v1808, %v1221
        %v1810 = vadd.f32 %v1809, %v1224
        %v1811 = vadd.f32 %v1810, %v1229
        %v1812 = vadd.f32 %v1811, %v1232
        %v1813 = vrot.slane %v1812, 4
        %v1814 = vadd.f32 %v1812, %v1813
        %v1815 = vrot.slane %v1814, 2
        %v1816 = vadd.f32 %v1814, %v1815
        %v1817 = vrot.slane %v1816, 1
        %v1818 = vadd.f32 %v1816, %v1817
        %v1819 = vadd.f32 %v1302, %v1305
        %v1820 = vadd.f32 %v1819, %v1310
        %v1821 = vadd.f32 %v1820, %v1313
        %v1822 = vadd.f32 %v1821, %v1318
        %v1823 = vadd.f32 %v1822, %v1321
        %v1824 = vadd.f32 %v1823, %v1326
        %v1825 = vadd.f32 %v1824, %v1329
        %v1826 = vrot.slane %v1825, 4
        %v1827 = vadd.f32 %v1825, %v1826
        %v1828 = vrot.slane %v1827, 2
        %v1829 = vadd.f32 %v1827, %v1828
        %v1830 = vrot.slane %v1829, 1
        %v1831 = vadd.f32 %v1829, %v1830
        %v1832 = vadd.f32 %v1399, %v1402
        %v1833 = vadd.f32 %v1832, %v1407
        %v1834 = vadd.f32 %v1833, %v1410
        %v1835 = vadd.f32 %v1834, %v1415
        %v1836 = vadd.f32 %v1835, %v1418
        %v1837 = vadd.f32 %v1836, %v1423
        %v1838 = vadd.f32 %v1837, %v1426
        %v1839 = vrot.slane %v1838, 4
        %v1840 = vadd.f32 %v1838, %v1839
        %v1841 = vrot.slane %v1840, 2
        %v1842 = vadd.f32 %v1840, %v1841
        %v1843 = vrot.slane %v1842, 1
        %v1844 = vadd.f32 %v1842, %v1843
        %v1845 = vadd.f32 %v1496, %v1499
        %v1846 = vadd.f32 %v1845, %v1504
        %v1847 = vadd.f32 %v1846, %v1507
        %v1848 = vadd.f32 %v1847, %v1512
        %v1849 = vadd.f32 %v1848, %v1515
        %v1850 = vadd.f32 %v1849, %v1520
        %v1851 = vadd.f32 %v1850, %v1523
        %v1852 = vrot.slane %v1851, 4
        %v1853 = vadd.f32 %v1851, %v1852
        %v1854 = vrot.slane %v1853, 2
        %v1855 = vadd.f32 %v1853, %v1854
        %v1856 = vrot.slane %v1855, 1
        %v1857 = vadd.f32 %v1855, %v1856
        %v1858 = vmul.f32 %v1753, %v1587
        %v1859 = vmul.f32 %v1766, %v1587
        %v1860 = vmul.f32 %v1779, %v1587
        %v1861 = vmul.f32 %v1792, %v1587
        %v1862 = vmul.f32 %v1805, %v1587
        %v1863 = vmul.f32 %v1818, %v1587
        %v1864 = vmul.f32 %v1831, %v1587
        %v1865 = vmul.f32 %v1844, %v1587
        %v1866 = vmul.f32 %v1857, %v1587
        %v1867 = vsub.f32 %v720, %v1858
        %v1868 = vsub.f32 %v723, %v1858
        %v1869 = vsub.f32 %v728, %v1858
        %v1870 = vsub.f32 %v731, %v1858
        %v1871 = vsub.f32 %v736, %v1858
        %v1872 = vsub.f32 %v739, %v1858
        %v1873 = vsub.f32 %v744, %v1858
        %v1874 = vsub.f32 %v747, %v1858
        %v1875 = vsub.f32 %v817, %v1859
        %v1876 = vsub.f32 %v820, %v1859
        %v1877 = vsub.f32 %v825, %v1859
        %v1878 = vsub.f32 %v828, %v1859
        %v1879 = vsub.f32 %v833, %v1859
        %v1880 = vsub.f32 %v836, %v1859
        %v1881 = vsub.f32 %v841, %v1859
        %v1882 = vsub.f32 %v844, %v1859
        %v1883 = vsub.f32 %v914, %v1860
        %v1884 = vsub.f32 %v917, %v1860
        %v1885 = vsub.f32 %v922, %v1860
        %v1886 = vsub.f32 %v925, %v1860
        %v1887 = vsub.f32 %v930, %v1860
        %v1888 = vsub.f32 %v933, %v1860
        %v1889 = vsub.f32 %v938, %v1860
        %v1890 = vsub.f32 %v941, %v1860
        %v1891 = vsub.f32 %v1011, %v1861
        %v1892 = vsub.f32 %v1014, %v1861
        %v1893 = vsub.f32 %v1019, %v1861
        %v1894 = vsub.f32 %v1022, %v1861
        %v1895 = vsub.f32 %v1027, %v1861
        %v1896 = vsub.f32 %v1030, %v1861
        %v1897 = vsub.f32 %v1035, %v1861
        %v1898 = vsub.f32 %v1038, %v1861
        %v1899 = vsub.f32 %v1108, %v1862
        %v1900 = vsub.f32 %v1111, %v1862
        %v1901 = vsub.f32 %v1116, %v1862
        %v1902 = vsub.f32 %v1119, %v1862
        %v1903 = vsub.f32 %v1124, %v1862
        %v1904 = vsub.f32 %v1127, %v1862
        %v1905 = vsub.f32 %v1132, %v1862
        %v1906 = vsub.f32 %v1135, %v1862
        %v1907 = vsub.f32 %v1205, %v1863
        %v1908 = vsub.f32 %v1208, %v1863
        %v1909 = vsub.f32 %v1213, %v1863
        %v1910 = vsub.f32 %v1216, %v1863
        %v1911 = vsub.f32 %v1221, %v1863
        %v1912 = vsub.f32 %v1224, %v1863
        %v1913 = vsub.f32 %v1229, %v1863
        %v1914 = vsub.f32 %v1232, %v1863
        %v1915 = vsub.f32 %v1302, %v1864
        %v1916 = vsub.f32 %v1305, %v1864
        %v1917 = vsub.f32 %v1310, %v1864
        %v1918 = vsub.f32 %v1313, %v1864
        %v1919 = vsub.f32 %v1318, %v1864
        %v1920 = vsub.f32 %v1321, %v1864
        %v1921 = vsub.f32 %v1326, %v1864
        %v1922 = vsub.f32 %v1329, %v1864
        %v1923 = vsub.f32 %v1399, %v1865
        %v1924 = vsub.f32 %v1402, %v1865
        %v1925 = vsub.f32 %v1407, %v1865
        %v1926 = vsub.f32 %v1410, %v1865
        %v1927 = vsub.f32 %v1415, %v1865
        %v1928 = vsub.f32 %v1418, %v1865
        %v1929 = vsub.f32 %v1423, %v1865
        %v1930 = vsub.f32 %v1426, %v1865
        %v1931 = vsub.f32 %v1496, %v1866
        %v1932 = vsub.f32 %v1499, %v1866
        %v1933 = vsub.f32 %v1504, %v1866
        %v1934 = vsub.f32 %v1507, %v1866
        %v1935 = vsub.f32 %v1512, %v1866
        %v1936 = vsub.f32 %v1515, %v1866
        %v1937 = vsub.f32 %v1520, %v1866
        %v1938 = vsub.f32 %v1523, %v1866
        %v1939 = vmul.f32 %v1867, %v1867
        %v1940 = vmul.f32 %v1868, %v1868
        %v1941 = vmul.f32 %v1869, %v1869
        %v1942 = vmul.f32 %v1870, %v1870
        %v1943 = vmul.f32 %v1871, %v1871
        %v1944 = vmul.f32 %v1872, %v1872
        %v1945 = vmul.f32 %v1873, %v1873
        %v1946 = vmul.f32 %v1874, %v1874
        %v1947 = vmul.f32 %v1875, %v1875
        %v1948 = vmul.f32 %v1876, %v1876
        %v1949 = vmul.f32 %v1877, %v1877
        %v1950 = vmul.f32 %v1878, %v1878
        %v1951 = vmul.f32 %v1879, %v1879
        %v1952 = vmul.f32 %v1880, %v1880
        %v1953 = vmul.f32 %v1881, %v1881
        %v1954 = vmul.f32 %v1882, %v1882
        %v1955 = vmul.f32 %v1883, %v1883
        %v1956 = vmul.f32 %v1884, %v1884
        %v1957 = vmul.f32 %v1885, %v1885
        %v1958 = vmul.f32 %v1886, %v1886
        %v1959 = vmul.f32 %v1887, %v1887
        %v1960 = vmul.f32 %v1888, %v1888
        %v1961 = vmul.f32 %v1889, %v1889
        %v1962 = vmul.f32 %v1890, %v1890
        %v1963 = vmul.f32 %v1891, %v1891
        %v1964 = vmul.f32 %v1892, %v1892
        %v1965 = vmul.f32 %v1893, %v1893
        %v1966 = vmul.f32 %v1894, %v1894
        %v1967 = vmul.f32 %v1895, %v1895
        %v1968 = vmul.f32 %v1896, %v1896
        %v1969 = vmul.f32 %v1897, %v1897
        %v1970 = vmul.f32 %v1898, %v1898
        %v1971 = vmul.f32 %v1899, %v1899
        %v1972 = vmul.f32 %v1900, %v1900
        %v1973 = vmul.f32 %v1901, %v1901
        %v1974 = vmul.f32 %v1902, %v1902
        %v1975 = vmul.f32 %v1903, %v1903
        %v1976 = vmul.f32 %v1904, %v1904
        %v1977 = vmul.f32 %v1905, %v1905
        %v1978 = vmul.f32 %v1906, %v1906
        %v1979 = vmul.f32 %v1907, %v1907
        %v1980 = vmul.f32 %v1908, %v1908
        %v1981 = vmul.f32 %v1909, %v1909
        %v1982 = vmul.f32 %v1910, %v1910
        %v1983 = vmul.f32 %v1911, %v1911
        %v1984 = vmul.f32 %v1912, %v1912
        %v1985 = vmul.f32 %v1913, %v1913
        %v1986 = vmul.f32 %v1914, %v1914
        %v1987 = vmul.f32 %v1915, %v1915
        %v1988 = vmul.f32 %v1916, %v1916
        %v1989 = vmul.f32 %v1917, %v1917
        %v1990 = vmul.f32 %v1918, %v1918
        %v1991 = vmul.f32 %v1919, %v1919
        %v1992 = vmul.f32 %v1920, %v1920
        %v1993 = vmul.f32 %v1921, %v1921
        %v1994 = vmul.f32 %v1922, %v1922
        %v1995 = vmul.f32 %v1923, %v1923
        %v1996 = vmul.f32 %v1924, %v1924
        %v1997 = vmul.f32 %v1925, %v1925
        %v1998 = vmul.f32 %v1926, %v1926
        %v1999 = vmul.f32 %v1927, %v1927
        %v2000 = vmul.f32 %v1928, %v1928
        %v2001 = vmul.f32 %v1929, %v1929
        %v2002 = vmul.f32 %v1930, %v1930
        %v2003 = vmul.f32 %v1931, %v1931
        %v2004 = vmul.f32 %v1932, %v1932
        %v2005 = vmul.f32 %v1933, %v1933
        %v2006 = vmul.f32 %v1934, %v1934
        %v2007 = vmul.f32 %v1935, %v1935
        %v2008 = vmul.f32 %v1936, %v1936
        %v2009 = vmul.f32 %v1937, %v1937
        %v2010 = vmul.f32 %v1938, %v1938
        %v2011 = vadd.f32 %v1939, %v1940
        %v2012 = vadd.f32 %v2011, %v1941
        %v2013 = vadd.f32 %v2012, %v1942
        %v2014 = vadd.f32 %v2013, %v1943
        %v2015 = vadd.f32 %v2014, %v1944
        %v2016 = vadd.f32 %v2015, %v1945
        %v2017 = vadd.f32 %v2016, %v1946
        %v2018 = vrot.slane %v2017, 4
        %v2019 = vadd.f32 %v2017, %v2018
        %v2020 = vrot.slane %v2019, 2
        %v2021 = vadd.f32 %v2019, %v2020
        %v2022 = vrot.slane %v2021, 1
        %v2023 = vadd.f32 %v2021, %v2022
        %v2024 = vadd.f32 %v1947, %v1948
        %v2025 = vadd.f32 %v2024, %v1949
        %v2026 = vadd.f32 %v2025, %v1950
        %v2027 = vadd.f32 %v2026, %v1951
        %v2028 = vadd.f32 %v2027, %v1952
        %v2029 = vadd.f32 %v2028, %v1953
        %v2030 = vadd.f32 %v2029, %v1954
        %v2031 = vrot.slane %v2030, 4
        %v2032 = vadd.f32 %v2030, %v2031
        %v2033 = vrot.slane %v2032, 2
        %v2034 = vadd.f32 %v2032, %v2033
        %v2035 = vrot.slane %v2034, 1
        %v2036 = vadd.f32 %v2034, %v2035
        %v2037 = vadd.f32 %v1955, %v1956
        %v2038 = vadd.f32 %v2037, %v1957
        %v2039 = vadd.f32 %v2038, %v1958
        %v2040 = vadd.f32 %v2039, %v1959
        %v2041 = vadd.f32 %v2040, %v1960
        %v2042 = vadd.f32 %v2041, %v1961
        %v2043 = vadd.f32 %v2042, %v1962
        %v2044 = vrot.slane %v2043, 4
        %v2045 = vadd.f32 %v2043, %v2044
        %v2046 = vrot.slane %v2045, 2
        %v2047 = vadd.f32 %v2045, %v2046
        %v2048 = vrot.slane %v2047, 1
        %v2049 = vadd.f32 %v2047, %v2048
        %v2050 = vadd.f32 %v1963, %v1964
        %v2051 = vadd.f32 %v2050, %v1965
        %v2052 = vadd.f32 %v2051, %v1966
        %v2053 = vadd.f32 %v2052, %v1967
        %v2054 = vadd.f32 %v2053, %v1968
        %v2055 = vadd.f32 %v2054, %v1969
        %v2056 = vadd.f32 %v2055, %v1970
        %v2057 = vrot.slane %v2056, 4
        %v2058 = vadd.f32 %v2056, %v2057
        %v2059 = vrot.slane %v2058, 2
        %v2060 = vadd.f32 %v2058, %v2059
        %v2061 = vrot.slane %v2060, 1
        %v2062 = vadd.f32 %v2060, %v2061
        %v2063 = vadd.f32 %v1971, %v1972
        %v2064 = vadd.f32 %v2063, %v1973
        %v2065 = vadd.f32 %v2064, %v1974
        %v2066 = vadd.f32 %v2065, %v1975
        %v2067 = vadd.f32 %v2066, %v1976
        %v2068 = vadd.f32 %v2067, %v1977
        %v2069 = vadd.f32 %v2068, %v1978
        %v2070 = vrot.slane %v2069, 4
        %v2071 = vadd.f32 %v2069, %v2070
        %v2072 = vrot.slane %v2071, 2
        %v2073 = vadd.f32 %v2071, %v2072
        %v2074 = vrot.slane %v2073, 1
        %v2075 = vadd.f32 %v2073, %v2074
        %v2076 = vadd.f32 %v1979, %v1980
        %v2077 = vadd.f32 %v2076, %v1981
        %v2078 = vadd.f32 %v2077, %v1982
        %v2079 = vadd.f32 %v2078, %v1983
        %v2080 = vadd.f32 %v2079, %v1984
        %v2081 = vadd.f32 %v2080, %v1985
        %v2082 = vadd.f32 %v2081, %v1986
        %v2083 = vrot.slane %v2082, 4
        %v2084 = vadd.f32 %v2082, %v2083
        %v2085 = vrot.slane %v2084, 2
        %v2086 = vadd.f32 %v2084, %v2085
        %v2087 = vrot.slane %v2086, 1
        %v2088 = vadd.f32 %v2086, %v2087
        %v2089 = vadd.f32 %v1987, %v1988
        %v2090 = vadd.f32 %v2089, %v1989
        %v2091 = vadd.f32 %v2090, %v1990
        %v2092 = vadd.f32 %v2091, %v1991
        %v2093 = vadd.f32 %v2092, %v1992
        %v2094 = vadd.f32 %v2093, %v1993
        %v2095 = vadd.f32 %v2094, %v1994
        %v2096 = vrot.slane %v2095, 4
        %v2097 = vadd.f32 %v2095, %v2096
        %v2098 = vrot.slane %v2097, 2
        %v2099 = vadd.f32 %v2097, %v2098
        %v2100 = vrot.slane %v2099, 1
        %v2101 = vadd.f32 %v2099, %v2100
        %v2102 = vadd.f32 %v1995, %v1996
        %v2103 = vadd.f32 %v2102, %v1997
        %v2104 = vadd.f32 %v2103, %v1998
        %v2105 = vadd.f32 %v2104, %v1999
        %v2106 = vadd.f32 %v2105, %v2000
        %v2107 = vadd.f32 %v2106, %v2001
        %v2108 = vadd.f32 %v2107, %v2002
        %v2109 = vrot.slane %v2108, 4
        %v2110 = vadd.f32 %v2108, %v2109
        %v2111 = vrot.slane %v2110, 2
        %v2112 = vadd.f32 %v2110, %v2111
        %v2113 = vrot.slane %v2112, 1
        %v2114 = vadd.f32 %v2112, %v2113
        %v2115 = vadd.f32 %v2003, %v2004
        %v2116 = vadd.f32 %v2115, %v2005
        %v2117 = vadd.f32 %v2116, %v2006
        %v2118 = vadd.f32 %v2117, %v2007
        %v2119 = vadd.f32 %v2118, %v2008
        %v2120 = vadd.f32 %v2119, %v2009
        %v2121 = vadd.f32 %v2120, %v2010
        %v2122 = vrot.slane %v2121, 4
        %v2123 = vadd.f32 %v2121, %v2122
        %v2124 = vrot.slane %v2123, 2
        %v2125 = vadd.f32 %v2123, %v2124
        %v2126 = vrot.slane %v2125, 1
        %v2127 = vadd.f32 %v2125, %v2126
        %v2128 = vmul.f32 %v2023, %v1587
        %v2129 = vmul.f32 %v2036, %v1587
        %v2130 = vmul.f32 %v2049, %v1587
        %v2131 = vmul.f32 %v2062, %v1587
        %v2132 = vmul.f32 %v2075, %v1587
        %v2133 = vmul.f32 %v2088, %v1587
        %v2134 = vmul.f32 %v2101, %v1587
        %v2135 = vmul.f32 %v2114, %v1587
        %v2136 = vmul.f32 %v2127, %v1587
        %v2137 = vadd.f32 %v2128, 1e-06
        %v2138 = vadd.f32 %v2129, 1e-06
        %v2139 = vadd.f32 %v2130, 1e-06
        %v2140 = vadd.f32 %v2131, 1e-06
        %v2141 = vadd.f32 %v2132, 1e-06
        %v2142 = vadd.f32 %v2133, 1e-06
        %v2143 = vadd.f32 %v2134, 1e-06
        %v2144 = vadd.f32 %v2135, 1e-06
        %v2145 = vadd.f32 %v2136, 1e-06
        %v2146 = vrsqrt.pop %v2137
        %v2147 = vrsqrt.pop %v2138
        %v2148 = vrsqrt.pop %v2139
        %v2149 = vrsqrt.pop %v2140
        %v2150 = vrsqrt.pop %v2141
        %v2151 = vrsqrt.pop %v2142
        %v2152 = vrsqrt.pop %v2143
        %v2153 = vrsqrt.pop %v2144
        %v2154 = vrsqrt.pop %v2145
        %v2155 = vmul.f32 %v1867, %v2146
        %v2156 = vmul.f32 %v1868, %v2146
        %v2157 = vmul.f32 %v1869, %v2146
        %v2158 = vmul.f32 %v1870, %v2146
        %v2159 = vmul.f32 %v1871, %v2146
        %v2160 = vmul.f32 %v1872, %v2146
        %v2161 = vmul.f32 %v1873, %v2146
        %v2162 = vmul.f32 %v1874, %v2146
        %v2163 = vmul.f32 %v1875, %v2147
        %v2164 = vmul.f32 %v1876, %v2147
        %v2165 = vmul.f32 %v1877, %v2147
        %v2166 = vmul.f32 %v1878, %v2147
        %v2167 = vmul.f32 %v1879, %v2147
        %v2168 = vmul.f32 %v1880, %v2147
        %v2169 = vmul.f32 %v1881, %v2147
        %v2170 = vmul.f32 %v1882, %v2147
        %v2171 = vmul.f32 %v1883, %v2148
        %v2172 = vmul.f32 %v1884, %v2148
        %v2173 = vmul.f32 %v1885, %v2148
        %v2174 = vmul.f32 %v1886, %v2148
        %v2175 = vmul.f32 %v1887, %v2148
        %v2176 = vmul.f32 %v1888, %v2148
        %v2177 = vmul.f32 %v1889, %v2148
        %v2178 = vmul.f32 %v1890, %v2148
        %v2179 = vmul.f32 %v1891, %v2149
        %v2180 = vmul.f32 %v1892, %v2149
        %v2181 = vmul.f32 %v1893, %v2149
        %v2182 = vmul.f32 %v1894, %v2149
        %v2183 = vmul.f32 %v1895, %v2149
        %v2184 = vmul.f32 %v1896, %v2149
        %v2185 = vmul.f32 %v1897, %v2149
        %v2186 = vmul.f32 %v1898, %v2149
        %v2187 = vmul.f32 %v1899, %v2150
        %v2188 = vmul.f32 %v1900, %v2150
        %v2189 = vmul.f32 %v1901, %v2150
        %v2190 = vmul.f32 %v1902, %v2150
        %v2191 = vmul.f32 %v1903, %v2150
        %v2192 = vmul.f32 %v1904, %v2150
        %v2193 = vmul.f32 %v1905, %v2150
        %v2194 = vmul.f32 %v1906, %v2150
        %v2195 = vmul.f32 %v1907, %v2151
        %v2196 = vmul.f32 %v1908, %v2151
        %v2197 = vmul.f32 %v1909, %v2151
        %v2198 = vmul.f32 %v1910, %v2151
        %v2199 = vmul.f32 %v1911, %v2151
        %v2200 = vmul.f32 %v1912, %v2151
        %v2201 = vmul.f32 %v1913, %v2151
        %v2202 = vmul.f32 %v1914, %v2151
        %v2203 = vmul.f32 %v1915, %v2152
        %v2204 = vmul.f32 %v1916, %v2152
        %v2205 = vmul.f32 %v1917, %v2152
        %v2206 = vmul.f32 %v1918, %v2152
        %v2207 = vmul.f32 %v1919, %v2152
        %v2208 = vmul.f32 %v1920, %v2152
        %v2209 = vmul.f32 %v1921, %v2152
        %v2210 = vmul.f32 %v1922, %v2152
        %v2211 = vmul.f32 %v1923, %v2153
        %v2212 = vmul.f32 %v1924, %v2153
        %v2213 = vmul.f32 %v1925, %v2153
        %v2214 = vmul.f32 %v1926, %v2153
        %v2215 = vmul.f32 %v1927, %v2153
        %v2216 = vmul.f32 %v1928, %v2153
        %v2217 = vmul.f32 %v1929, %v2153
        %v2218 = vmul.f32 %v1930, %v2153
        %v2219 = vmul.f32 %v1931, %v2154
        %v2220 = vmul.f32 %v1932, %v2154
        %v2221 = vmul.f32 %v1933, %v2154
        %v2222 = vmul.f32 %v1934, %v2154
        %v2223 = vmul.f32 %v1935, %v2154
        %v2224 = vmul.f32 %v1936, %v2154
        %v2225 = vmul.f32 %v1937, %v2154
        %v2226 = vmul.f32 %v1938, %v2154
        %2228 = vset.pattern.permute.xlu0 0
        %2229 = vperm.xlu0 %2228, %v1725
        %v2230 = vpop.permute.xlu0 %2229
        %2233 = vset.pattern.permute.xlu0 0
        %2234 = vperm.xlu0 %2233, %v1726
        %v2235 = vpop.permute.xlu0 %2234
        %2238 = vset.pattern.permute.xlu0 0
        %2239 = vperm.xlu0 %2238, %v1727
        %v2240 = vpop.permute.xlu0 %2239
        %2243 = vset.pattern.permute.xlu0 0
        %2244 = vperm.xlu0 %2243, %v1728
        %v2245 = vpop.permute.xlu0 %2244
        %2248 = vset.pattern.permute.xlu0 0
        %2249 = vperm.xlu0 %2248, %v1729
        %v2250 = vpop.permute.xlu0 %2249
        %2253 = vset.pattern.permute.xlu0 0
        %2254 = vperm.xlu0 %2253, %v1730
        %v2255 = vpop.permute.xlu0 %2254
        %2258 = vset.pattern.permute.xlu0 0
        %2259 = vperm.xlu0 %2258, %v1731
        %v2260 = vpop.permute.xlu0 %2259
        %2263 = vset.pattern.permute.xlu0 0
        %2264 = vperm.xlu0 %2263, %v1732
        %v2265 = vpop.permute.xlu0 %2264
        %v2267 = vmul.f32 %v2155, %v2230
        %v2268 = vmul.f32 %v2156, %v2235
        %v2269 = vmul.f32 %v2157, %v2240
        %v2270 = vmul.f32 %v2158, %v2245
        %v2271 = vmul.f32 %v2159, %v2250
        %v2272 = vmul.f32 %v2160, %v2255
        %v2273 = vmul.f32 %v2161, %v2260
        %v2274 = vmul.f32 %v2162, %v2265
        %v2275 = vmul.f32 %v2163, %v2230
        %v2276 = vmul.f32 %v2164, %v2235
        %v2277 = vmul.f32 %v2165, %v2240
        %v2278 = vmul.f32 %v2166, %v2245
        %v2279 = vmul.f32 %v2167, %v2250
        %v2280 = vmul.f32 %v2168, %v2255
        %v2281 = vmul.f32 %v2169, %v2260
        %v2282 = vmul.f32 %v2170, %v2265
        %v2283 = vmul.f32 %v2171, %v2230
        %v2284 = vmul.f32 %v2172, %v2235
        %v2285 = vmul.f32 %v2173, %v2240
        %v2286 = vmul.f32 %v2174, %v2245
        %v2287 = vmul.f32 %v2175, %v2250
        %v2288 = vmul.f32 %v2176, %v2255
        %v2289 = vmul.f32 %v2177, %v2260
        %v2290 = vmul.f32 %v2178, %v2265
        %v2291 = vmul.f32 %v2179, %v2230
        %v2292 = vmul.f32 %v2180, %v2235
        %v2293 = vmul.f32 %v2181, %v2240
        %v2294 = vmul.f32 %v2182, %v2245
        %v2295 = vmul.f32 %v2183, %v2250
        %v2296 = vmul.f32 %v2184, %v2255
        %v2297 = vmul.f32 %v2185, %v2260
        %v2298 = vmul.f32 %v2186, %v2265
        %v2299 = vmul.f32 %v2187, %v2230
        %v2300 = vmul.f32 %v2188, %v2235
        %v2301 = vmul.f32 %v2189, %v2240
        %v2302 = vmul.f32 %v2190, %v2245
        %v2303 = vmul.f32 %v2191, %v2250
        %v2304 = vmul.f32 %v2192, %v2255
        %v2305 = vmul.f32 %v2193, %v2260
        %v2306 = vmul.f32 %v2194, %v2265
        %v2307 = vmul.f32 %v2195, %v2230
        %v2308 = vmul.f32 %v2196, %v2235
        %v2309 = vmul.f32 %v2197, %v2240
        %v2310 = vmul.f32 %v2198, %v2245
        %v2311 = vmul.f32 %v2199, %v2250
        %v2312 = vmul.f32 %v2200, %v2255
        %v2313 = vmul.f32 %v2201, %v2260
        %v2314 = vmul.f32 %v2202, %v2265
        %v2315 = vmul.f32 %v2203, %v2230
        %v2316 = vmul.f32 %v2204, %v2235
        %v2317 = vmul.f32 %v2205, %v2240
        %v2318 = vmul.f32 %v2206, %v2245
        %v2319 = vmul.f32 %v2207, %v2250
        %v2320 = vmul.f32 %v2208, %v2255
        %v2321 = vmul.f32 %v2209, %v2260
        %v2322 = vmul.f32 %v2210, %v2265
        %v2323 = vmul.f32 %v2211, %v2230
        %v2324 = vmul.f32 %v2212, %v2235
        %v2325 = vmul.f32 %v2213, %v2240
        %v2326 = vmul.f32 %v2214, %v2245
        %v2327 = vmul.f32 %v2215, %v2250
        %v2328 = vmul.f32 %v2216, %v2255
        %v2329 = vmul.f32 %v2217, %v2260
        %v2330 = vmul.f32 %v2218, %v2265
        %v2331 = vmul.f32 %v2219, %v2230
        %v2332 = vmul.f32 %v2220, %v2235
        %v2333 = vmul.f32 %v2221, %v2240
        %v2334 = vmul.f32 %v2222, %v2245
        %v2335 = vmul.f32 %v2223, %v2250
        %v2336 = vmul.f32 %v2224, %v2255
        %v2337 = vmul.f32 %v2225, %v2260
        %v2338 = vmul.f32 %v2226, %v2265
        %2340 = vset.pattern.permute.xlu0 0
        %2341 = vperm.xlu0 %2340, %v1733
        %v2342 = vpop.permute.xlu0 %2341
        %2345 = vset.pattern.permute.xlu0 0
        %2346 = vperm.xlu0 %2345, %v1734
        %v2347 = vpop.permute.xlu0 %2346
        %2350 = vset.pattern.permute.xlu0 0
        %2351 = vperm.xlu0 %2350, %v1735
        %v2352 = vpop.permute.xlu0 %2351
        %2355 = vset.pattern.permute.xlu0 0
        %2356 = vperm.xlu0 %2355, %v1736
        %v2357 = vpop.permute.xlu0 %2356
        %2360 = vset.pattern.permute.xlu0 0
        %2361 = vperm.xlu0 %2360, %v1737
        %v2362 = vpop.permute.xlu0 %2361
        %2365 = vset.pattern.permute.xlu0 0
        %2366 = vperm.xlu0 %2365, %v1738
        %v2367 = vpop.permute.xlu0 %2366
        %2370 = vset.pattern.permute.xlu0 0
        %2371 = vperm.xlu0 %2370, %v1739
        %v2372 = vpop.permute.xlu0 %2371
        %2375 = vset.pattern.permute.xlu0 0
        %2376 = vperm.xlu0 %2375, %v1740
        %v2377 = vpop.permute.xlu0 %2376
        %v2379 = vadd.f32 %v2267, %v2342
        %v2380 = vadd.f32 %v2268, %v2347
        %v2381 = vadd.f32 %v2269, %v2352
        %v2382 = vadd.f32 %v2270, %v2357
        %v2383 = vadd.f32 %v2271, %v2362
        %v2384 = vadd.f32 %v2272, %v2367
        %v2385 = vadd.f32 %v2273, %v2372
        %v2386 = vadd.f32 %v2274, %v2377
        %v2387 = vadd.f32 %v2275, %v2342
        %v2388 = vadd.f32 %v2276, %v2347
        %v2389 = vadd.f32 %v2277, %v2352
        %v2390 = vadd.f32 %v2278, %v2357
        %v2391 = vadd.f32 %v2279, %v2362
        %v2392 = vadd.f32 %v2280, %v2367
        %v2393 = vadd.f32 %v2281, %v2372
        %v2394 = vadd.f32 %v2282, %v2377
        %v2395 = vadd.f32 %v2283, %v2342
        %v2396 = vadd.f32 %v2284, %v2347
        %v2397 = vadd.f32 %v2285, %v2352
        %v2398 = vadd.f32 %v2286, %v2357
        %v2399 = vadd.f32 %v2287, %v2362
        %v2400 = vadd.f32 %v2288, %v2367
        %v2401 = vadd.f32 %v2289, %v2372
        %v2402 = vadd.f32 %v2290, %v2377
        %v2403 = vadd.f32 %v2291, %v2342
        %v2404 = vadd.f32 %v2292, %v2347
        %v2405 = vadd.f32 %v2293, %v2352
        %v2406 = vadd.f32 %v2294, %v2357
        %v2407 = vadd.f32 %v2295, %v2362
        %v2408 = vadd.f32 %v2296, %v2367
        %v2409 = vadd.f32 %v2297, %v2372
        %v2410 = vadd.f32 %v2298, %v2377
        %v2411 = vadd.f32 %v2299, %v2342
        %v2412 = vadd.f32 %v2300, %v2347
        %v2413 = vadd.f32 %v2301, %v2352
        %v2414 = vadd.f32 %v2302, %v2357
        %v2415 = vadd.f32 %v2303, %v2362
        %v2416 = vadd.f32 %v2304, %v2367
        %v2417 = vadd.f32 %v2305, %v2372
        %v2418 = vadd.f32 %v2306, %v2377
        %v2419 = vadd.f32 %v2307, %v2342
        %v2420 = vadd.f32 %v2308, %v2347
        %v2421 = vadd.f32 %v2309, %v2352
        %v2422 = vadd.f32 %v2310, %v2357
        %v2423 = vadd.f32 %v2311, %v2362
        %v2424 = vadd.f32 %v2312, %v2367
        %v2425 = vadd.f32 %v2313, %v2372
        %v2426 = vadd.f32 %v2314, %v2377
        %v2427 = vadd.f32 %v2315, %v2342
        %v2428 = vadd.f32 %v2316, %v2347
        %v2429 = vadd.f32 %v2317, %v2352
        %v2430 = vadd.f32 %v2318, %v2357
        %v2431 = vadd.f32 %v2319, %v2362
        %v2432 = vadd.f32 %v2320, %v2367
        %v2433 = vadd.f32 %v2321, %v2372
        %v2434 = vadd.f32 %v2322, %v2377
        %v2435 = vadd.f32 %v2323, %v2342
        %v2436 = vadd.f32 %v2324, %v2347
        %v2437 = vadd.f32 %v2325, %v2352
        %v2438 = vadd.f32 %v2326, %v2357
        %v2439 = vadd.f32 %v2327, %v2362
        %v2440 = vadd.f32 %v2328, %v2367
        %v2441 = vadd.f32 %v2329, %v2372
        %v2442 = vadd.f32 %v2330, %v2377
        %v2443 = vadd.f32 %v2331, %v2342
        %v2444 = vadd.f32 %v2332, %v2347
        %v2445 = vadd.f32 %v2333, %v2352
        %v2446 = vadd.f32 %v2334, %v2357
        %v2447 = vadd.f32 %v2335, %v2362
        %v2448 = vadd.f32 %v2336, %v2367
        %v2449 = vadd.f32 %v2337, %v2372
        %v2450 = vadd.f32 %v2338, %v2377
        %v2451 = vld [vmem:[%s7] sm:$0xff]
        %v2452 = vld [vmem:[%s7 + $0x8] sm:$0xff]
        %v2453 = vld [vmem:[%s7 + $0x10] sm:$0xff]
        %v2454 = vld [vmem:[%s7 + $0x18] sm:$0xff]
        %v2455 = vld [vmem:[%s7 + $0x20] sm:$0xff]
        %v2456 = vld [vmem:[%s7 + $0x28] sm:$0xff]
        %v2457 = vld [vmem:[%s7 + $0x30] sm:$0xff]
        %v2458 = vld [vmem:[%s7 + $0x38] sm:$0xff]
        %v2459 = vld [vmem:[%s8] sm:$0xff]
        %v2460 = vld [vmem:[%s8 + $0x8] sm:$0xff]
        %v2461 = vld [vmem:[%s8 + $0x10] sm:$0xff]
        %v2462 = vld [vmem:[%s8 + $0x18] sm:$0xff]
        %v2463 = vld [vmem:[%s8 + $0x20] sm:$0xff]
        %v2464 = vld [vmem:[%s8 + $0x28] sm:$0xff]
        %v2465 = vld [vmem:[%s8 + $0x30] sm:$0xff]
        %v2466 = vld [vmem:[%s8 + $0x38] sm:$0xff]
        %v2467 = vadd.f32 %v752, %v755
        %v2468 = vadd.f32 %v2467, %v760
        %v2469 = vadd.f32 %v2468, %v763
        %v2470 = vadd.f32 %v2469, %v768
        %v2471 = vadd.f32 %v2470, %v771
        %v2472 = vadd.f32 %v2471, %v776
        %v2473 = vadd.f32 %v2472, %v779
        %v2474 = vrot.slane %v2473, 4
        %v2475 = vadd.f32 %v2473, %v2474
        %v2476 = vrot.slane %v2475, 2
        %v2477 = vadd.f32 %v2475, %v2476
        %v2478 = vrot.slane %v2477, 1
        %v2479 = vadd.f32 %v2477, %v2478
        %v2480 = vadd.f32 %v849, %v852
        %v2481 = vadd.f32 %v2480, %v857
        %v2482 = vadd.f32 %v2481, %v860
        %v2483 = vadd.f32 %v2482, %v865
        %v2484 = vadd.f32 %v2483, %v868
        %v2485 = vadd.f32 %v2484, %v873
        %v2486 = vadd.f32 %v2485, %v876
        %v2487 = vrot.slane %v2486, 4
        %v2488 = vadd.f32 %v2486, %v2487
        %v2489 = vrot.slane %v2488, 2
        %v2490 = vadd.f32 %v2488, %v2489
        %v2491 = vrot.slane %v2490, 1
        %v2492 = vadd.f32 %v2490, %v2491
        %v2493 = vadd.f32 %v946, %v949
        %v2494 = vadd.f32 %v2493, %v954
        %v2495 = vadd.f32 %v2494, %v957
        %v2496 = vadd.f32 %v2495, %v962
        %v2497 = vadd.f32 %v2496, %v965
        %v2498 = vadd.f32 %v2497, %v970
        %v2499 = vadd.f32 %v2498, %v973
        %v2500 = vrot.slane %v2499, 4
        %v2501 = vadd.f32 %v2499, %v2500
        %v2502 = vrot.slane %v2501, 2
        %v2503 = vadd.f32 %v2501, %v2502
        %v2504 = vrot.slane %v2503, 1
        %v2505 = vadd.f32 %v2503, %v2504
        %v2506 = vadd.f32 %v1043, %v1046
        %v2507 = vadd.f32 %v2506, %v1051
        %v2508 = vadd.f32 %v2507, %v1054
        %v2509 = vadd.f32 %v2508, %v1059
        %v2510 = vadd.f32 %v2509, %v1062
        %v2511 = vadd.f32 %v2510, %v1067
        %v2512 = vadd.f32 %v2511, %v1070
        %v2513 = vrot.slane %v2512, 4
        %v2514 = vadd.f32 %v2512, %v2513
        %v2515 = vrot.slane %v2514, 2
        %v2516 = vadd.f32 %v2514, %v2515
        %v2517 = vrot.slane %v2516, 1
        %v2518 = vadd.f32 %v2516, %v2517
        %v2519 = vadd.f32 %v1140, %v1143
        %v2520 = vadd.f32 %v2519, %v1148
        %v2521 = vadd.f32 %v2520, %v1151
        %v2522 = vadd.f32 %v2521, %v1156
        %v2523 = vadd.f32 %v2522, %v1159
        %v2524 = vadd.f32 %v2523, %v1164
        %v2525 = vadd.f32 %v2524, %v1167
        %v2526 = vrot.slane %v2525, 4
        %v2527 = vadd.f32 %v2525, %v2526
        %v2528 = vrot.slane %v2527, 2
        %v2529 = vadd.f32 %v2527, %v2528
        %v2530 = vrot.slane %v2529, 1
        %v2531 = vadd.f32 %v2529, %v2530
        %v2532 = vadd.f32 %v1237, %v1240
        %v2533 = vadd.f32 %v2532, %v1245
        %v2534 = vadd.f32 %v2533, %v1248
        %v2535 = vadd.f32 %v2534, %v1253
        %v2536 = vadd.f32 %v2535, %v1256
        %v2537 = vadd.f32 %v2536, %v1261
        %v2538 = vadd.f32 %v2537, %v1264
        %v2539 = vrot.slane %v2538, 4
        %v2540 = vadd.f32 %v2538, %v2539
        %v2541 = vrot.slane %v2540, 2
        %v2542 = vadd.f32 %v2540, %v2541
        %v2543 = vrot.slane %v2542, 1
        %v2544 = vadd.f32 %v2542, %v2543
        %v2545 = vadd.f32 %v1334, %v1337
        %v2546 = vadd.f32 %v2545, %v1342
        %v2547 = vadd.f32 %v2546, %v1345
        %v2548 = vadd.f32 %v2547, %v1350
        %v2549 = vadd.f32 %v2548, %v1353
        %v2550 = vadd.f32 %v2549, %v1358
        %v2551 = vadd.f32 %v2550, %v1361
        %v2552 = vrot.slane %v2551, 4
        %v2553 = vadd.f32 %v2551, %v2552
        %v2554 = vrot.slane %v2553, 2
        %v2555 = vadd.f32 %v2553, %v2554
        %v2556 = vrot.slane %v2555, 1
        %v2557 = vadd.f32 %v2555, %v2556
        %v2558 = vadd.f32 %v1431, %v1434
        %v2559 = vadd.f32 %v2558, %v1439
        %v2560 = vadd.f32 %v2559, %v1442
        %v2561 = vadd.f32 %v2560, %v1447
        %v2562 = vadd.f32 %v2561, %v1450
        %v2563 = vadd.f32 %v2562, %v1455
        %v2564 = vadd.f32 %v2563, %v1458
        %v2565 = vrot.slane %v2564, 4
        %v2566 = vadd.f32 %v2564, %v2565
        %v2567 = vrot.slane %v2566, 2
        %v2568 = vadd.f32 %v2566, %v2567
        %v2569 = vrot.slane %v2568, 1
        %v2570 = vadd.f32 %v2568, %v2569
        %v2571 = vadd.f32 %v1528, %v1531
        %v2572 = vadd.f32 %v2571, %v1536
        %v2573 = vadd.f32 %v2572, %v1539
        %v2574 = vadd.f32 %v2573, %v1544
        %v2575 = vadd.f32 %v2574, %v1547
        %v2576 = vadd.f32 %v2575, %v1552
        %v2577 = vadd.f32 %v2576, %v1555
        %v2578 = vrot.slane %v2577, 4
        %v2579 = vadd.f32 %v2577, %v2578
        %v2580 = vrot.slane %v2579, 2
        %v2581 = vadd.f32 %v2579, %v2580
        %v2582 = vrot.slane %v2581, 1
        %v2583 = vadd.f32 %v2581, %v2582
        %v2584 = vmul.f32 %v2479, %v1587
        %v2585 = vmul.f32 %v2492, %v1587
        %v2586 = vmul.f32 %v2505, %v1587
        %v2587 = vmul.f32 %v2518, %v1587
        %v2588 = vmul.f32 %v2531, %v1587
        %v2589 = vmul.f32 %v2544, %v1587
        %v2590 = vmul.f32 %v2557, %v1587
        %v2591 = vmul.f32 %v2570, %v1587
        %v2592 = vmul.f32 %v2583, %v1587
        %v2593 = vsub.f32 %v752, %v2584
        %v2594 = vsub.f32 %v755, %v2584
        %v2595 = vsub.f32 %v760, %v2584
        %v2596 = vsub.f32 %v763, %v2584
        %v2597 = vsub.f32 %v768, %v2584
        %v2598 = vsub.f32 %v771, %v2584
        %v2599 = vsub.f32 %v776, %v2584
        %v2600 = vsub.f32 %v779, %v2584
        %v2601 = vsub.f32 %v849, %v2585
        %v2602 = vsub.f32 %v852, %v2585
        %v2603 = vsub.f32 %v857, %v2585
        %v2604 = vsub.f32 %v860, %v2585
        %v2605 = vsub.f32 %v865, %v2585
        %v2606 = vsub.f32 %v868, %v2585
        %v2607 = vsub.f32 %v873, %v2585
        %v2608 = vsub.f32 %v876, %v2585
        %v2609 = vsub.f32 %v946, %v2586
        %v2610 = vsub.f32 %v949, %v2586
        %v2611 = vsub.f32 %v954, %v2586
        %v2612 = vsub.f32 %v957, %v2586
        %v2613 = vsub.f32 %v962, %v2586
        %v2614 = vsub.f32 %v965, %v2586
        %v2615 = vsub.f32 %v970, %v2586
        %v2616 = vsub.f32 %v973, %v2586
        %v2617 = vsub.f32 %v1043, %v2587
        %v2618 = vsub.f32 %v1046, %v2587
        %v2619 = vsub.f32 %v1051, %v2587
        %v2620 = vsub.f32 %v1054, %v2587
        %v2621 = vsub.f32 %v1059, %v2587
        %v2622 = vsub.f32 %v1062, %v2587
        %v2623 = vsub.f32 %v1067, %v2587
        %v2624 = vsub.f32 %v1070, %v2587
        %v2625 = vsub.f32 %v1140, %v2588
        %v2626 = vsub.f32 %v1143, %v2588
        %v2627 = vsub.f32 %v1148, %v2588
        %v2628 = vsub.f32 %v1151, %v2588
        %v2629 = vsub.f32 %v1156, %v2588
        %v2630 = vsub.f32 %v1159, %v2588
        %v2631 = vsub.f32 %v1164, %v2588
        %v2632 = vsub.f32 %v1167, %v2588
        %v2633 = vsub.f32 %v1237, %v2589
        %v2634 = vsub.f32 %v1240, %v2589
        %v2635 = vsub.f32 %v1245, %v2589
        %v2636 = vsub.f32 %v1248, %v2589
        %v2637 = vsub.f32 %v1253, %v2589
        %v2638 = vsub.f32 %v1256, %v2589
        %v2639 = vsub.f32 %v1261, %v2589
        %v2640 = vsub.f32 %v1264, %v2589
        %v2641 = vsub.f32 %v1334, %v2590
        %v2642 = vsub.f32 %v1337, %v2590
        %v2643 = vsub.f32 %v1342, %v2590
        %v2644 = vsub.f32 %v1345, %v2590
        %v2645 = vsub.f32 %v1350, %v2590
        %v2646 = vsub.f32 %v1353, %v2590
        %v2647 = vsub.f32 %v1358, %v2590
        %v2648 = vsub.f32 %v1361, %v2590
        %v2649 = vsub.f32 %v1431, %v2591
        %v2650 = vsub.f32 %v1434, %v2591
        %v2651 = vsub.f32 %v1439, %v2591
        %v2652 = vsub.f32 %v1442, %v2591
        %v2653 = vsub.f32 %v1447, %v2591
        %v2654 = vsub.f32 %v1450, %v2591
        %v2655 = vsub.f32 %v1455, %v2591
        %v2656 = vsub.f32 %v1458, %v2591
        %v2657 = vsub.f32 %v1528, %v2592
        %v2658 = vsub.f32 %v1531, %v2592
        %v2659 = vsub.f32 %v1536, %v2592
        %v2660 = vsub.f32 %v1539, %v2592
        %v2661 = vsub.f32 %v1544, %v2592
        %v2662 = vsub.f32 %v1547, %v2592
        %v2663 = vsub.f32 %v1552, %v2592
        %v2664 = vsub.f32 %v1555, %v2592
        %v2665 = vmul.f32 %v2593, %v2593
        %v2666 = vmul.f32 %v2594, %v2594
        %v2667 = vmul.f32 %v2595, %v2595
        %v2668 = vmul.f32 %v2596, %v2596
        %v2669 = vmul.f32 %v2597, %v2597
        %v2670 = vmul.f32 %v2598, %v2598
        %v2671 = vmul.f32 %v2599, %v2599
        %v2672 = vmul.f32 %v2600, %v2600
        %v2673 = vmul.f32 %v2601, %v2601
        %v2674 = vmul.f32 %v2602, %v2602
        %v2675 = vmul.f32 %v2603, %v2603
        %v2676 = vmul.f32 %v2604, %v2604
        %v2677 = vmul.f32 %v2605, %v2605
        %v2678 = vmul.f32 %v2606, %v2606
        %v2679 = vmul.f32 %v2607, %v2607
        %v2680 = vmul.f32 %v2608, %v2608
        %v2681 = vmul.f32 %v2609, %v2609
        %v2682 = vmul.f32 %v2610, %v2610
        %v2683 = vmul.f32 %v2611, %v2611
        %v2684 = vmul.f32 %v2612, %v2612
        %v2685 = vmul.f32 %v2613, %v2613
        %v2686 = vmul.f32 %v2614, %v2614
        %v2687 = vmul.f32 %v2615, %v2615
        %v2688 = vmul.f32 %v2616, %v2616
        %v2689 = vmul.f32 %v2617, %v2617
        %v2690 = vmul.f32 %v2618, %v2618
        %v2691 = vmul.f32 %v2619, %v2619
        %v2692 = vmul.f32 %v2620, %v2620
        %v2693 = vmul.f32 %v2621, %v2621
        %v2694 = vmul.f32 %v2622, %v2622
        %v2695 = vmul.f32 %v2623, %v2623
        %v2696 = vmul.f32 %v2624, %v2624
        %v2697 = vmul.f32 %v2625, %v2625
        %v2698 = vmul.f32 %v2626, %v2626
        %v2699 = vmul.f32 %v2627, %v2627
        %v2700 = vmul.f32 %v2628, %v2628
        %v2701 = vmul.f32 %v2629, %v2629
        %v2702 = vmul.f32 %v2630, %v2630
        %v2703 = vmul.f32 %v2631, %v2631
        %v2704 = vmul.f32 %v2632, %v2632
        %v2705 = vmul.f32 %v2633, %v2633
        %v2706 = vmul.f32 %v2634, %v2634
        %v2707 = vmul.f32 %v2635, %v2635
        %v2708 = vmul.f32 %v2636, %v2636
        %v2709 = vmul.f32 %v2637, %v2637
        %v2710 = vmul.f32 %v2638, %v2638
        %v2711 = vmul.f32 %v2639, %v2639
        %v2712 = vmul.f32 %v2640, %v2640
        %v2713 = vmul.f32 %v2641, %v2641
        %v2714 = vmul.f32 %v2642, %v2642
        %v2715 = vmul.f32 %v2643, %v2643
        %v2716 = vmul.f32 %v2644, %v2644
        %v2717 = vmul.f32 %v2645, %v2645
        %v2718 = vmul.f32 %v2646, %v2646
        %v2719 = vmul.f32 %v2647, %v2647
        %v2720 = vmul.f32 %v2648, %v2648
        %v2721 = vmul.f32 %v2649, %v2649
        %v2722 = vmul.f32 %v2650, %v2650
        %v2723 = vmul.f32 %v2651, %v2651
        %v2724 = vmul.f32 %v2652, %v2652
        %v2725 = vmul.f32 %v2653, %v2653
        %v2726 = vmul.f32 %v2654, %v2654
        %v2727 = vmul.f32 %v2655, %v2655
        %v2728 = vmul.f32 %v2656, %v2656
        %v2729 = vmul.f32 %v2657, %v2657
        %v2730 = vmul.f32 %v2658, %v2658
        %v2731 = vmul.f32 %v2659, %v2659
        %v2732 = vmul.f32 %v2660, %v2660
        %v2733 = vmul.f32 %v2661, %v2661
        %v2734 = vmul.f32 %v2662, %v2662
        %v2735 = vmul.f32 %v2663, %v2663
        %v2736 = vmul.f32 %v2664, %v2664
        %v2737 = vadd.f32 %v2665, %v2666
        %v2738 = vadd.f32 %v2737, %v2667
        %v2739 = vadd.f32 %v2738, %v2668
        %v2740 = vadd.f32 %v2739, %v2669
        %v2741 = vadd.f32 %v2740, %v2670
        %v2742 = vadd.f32 %v2741, %v2671
        %v2743 = vadd.f32 %v2742, %v2672
        %v2744 = vrot.slane %v2743, 4
        %v2745 = vadd.f32 %v2743, %v2744
        %v2746 = vrot.slane %v2745, 2
        %v2747 = vadd.f32 %v2745, %v2746
        %v2748 = vrot.slane %v2747, 1
        %v2749 = vadd.f32 %v2747, %v2748
        %v2750 = vadd.f32 %v2673, %v2674
        %v2751 = vadd.f32 %v2750, %v2675
        %v2752 = vadd.f32 %v2751, %v2676
        %v2753 = vadd.f32 %v2752, %v2677
        %v2754 = vadd.f32 %v2753, %v2678
        %v2755 = vadd.f32 %v2754, %v2679
        %v2756 = vadd.f32 %v2755, %v2680
        %v2757 = vrot.slane %v2756, 4
        %v2758 = vadd.f32 %v2756, %v2757
        %v2759 = vrot.slane %v2758, 2
        %v2760 = vadd.f32 %v2758, %v2759
        %v2761 = vrot.slane %v2760, 1
        %v2762 = vadd.f32 %v2760, %v2761
        %v2763 = vadd.f32 %v2681, %v2682
        %v2764 = vadd.f32 %v2763, %v2683
        %v2765 = vadd.f32 %v2764, %v2684
        %v2766 = vadd.f32 %v2765, %v2685
        %v2767 = vadd.f32 %v2766, %v2686
        %v2768 = vadd.f32 %v2767, %v2687
        %v2769 = vadd.f32 %v2768, %v2688
        %v2770 = vrot.slane %v2769, 4
        %v2771 = vadd.f32 %v2769, %v2770
        %v2772 = vrot.slane %v2771, 2
        %v2773 = vadd.f32 %v2771, %v2772
        %v2774 = vrot.slane %v2773, 1
        %v2775 = vadd.f32 %v2773, %v2774
        %v2776 = vadd.f32 %v2689, %v2690
        %v2777 = vadd.f32 %v2776, %v2691
        %v2778 = vadd.f32 %v2777, %v2692
        %v2779 = vadd.f32 %v2778, %v2693
        %v2780 = vadd.f32 %v2779, %v2694
        %v2781 = vadd.f32 %v2780, %v2695
        %v2782 = vadd.f32 %v2781, %v2696
        %v2783 = vrot.slane %v2782, 4
        %v2784 = vadd.f32 %v2782, %v2783
        %v2785 = vrot.slane %v2784, 2
        %v2786 = vadd.f32 %v2784, %v2785
        %v2787 = vrot.slane %v2786, 1
        %v2788 = vadd.f32 %v2786, %v2787
        %v2789 = vadd.f32 %v2697, %v2698
        %v2790 = vadd.f32 %v2789, %v2699
        %v2791 = vadd.f32 %v2790, %v2700
        %v2792 = vadd.f32 %v2791, %v2701
        %v2793 = vadd.f32 %v2792, %v2702
        %v2794 = vadd.f32 %v2793, %v2703
        %v2795 = vadd.f32 %v2794, %v2704
        %v2796 = vrot.slane %v2795, 4
        %v2797 = vadd.f32 %v2795, %v2796
        %v2798 = vrot.slane %v2797, 2
        %v2799 = vadd.f32 %v2797, %v2798
        %v2800 = vrot.slane %v2799, 1
        %v2801 = vadd.f32 %v2799, %v2800
        %v2802 = vadd.f32 %v2705, %v2706
        %v2803 = vadd.f32 %v2802, %v2707
        %v2804 = vadd.f32 %v2803, %v2708
        %v2805 = vadd.f32 %v2804, %v2709
        %v2806 = vadd.f32 %v2805, %v2710
        %v2807 = vadd.f32 %v2806, %v2711
        %v2808 = vadd.f32 %v2807, %v2712
        %v2809 = vrot.slane %v2808, 4
        %v2810 = vadd.f32 %v2808, %v2809
        %v2811 = vrot.slane %v2810, 2
        %v2812 = vadd.f32 %v2810, %v2811
        %v2813 = vrot.slane %v2812, 1
        %v2814 = vadd.f32 %v2812, %v2813
        %v2815 = vadd.f32 %v2713, %v2714
        %v2816 = vadd.f32 %v2815, %v2715
        %v2817 = vadd.f32 %v2816, %v2716
        %v2818 = vadd.f32 %v2817, %v2717
        %v2819 = vadd.f32 %v2818, %v2718
        %v2820 = vadd.f32 %v2819, %v2719
        %v2821 = vadd.f32 %v2820, %v2720
        %v2822 = vrot.slane %v2821, 4
        %v2823 = vadd.f32 %v2821, %v2822
        %v2824 = vrot.slane %v2823, 2
        %v2825 = vadd.f32 %v2823, %v2824
        %v2826 = vrot.slane %v2825, 1
        %v2827 = vadd.f32 %v2825, %v2826
        %v2828 = vadd.f32 %v2721, %v2722
        %v2829 = vadd.f32 %v2828, %v2723
        %v2830 = vadd.f32 %v2829, %v2724
        %v2831 = vadd.f32 %v2830, %v2725
        %v2832 = vadd.f32 %v2831, %v2726
        %v2833 = vadd.f32 %v2832, %v2727
        %v2834 = vadd.f32 %v2833, %v2728
        %v2835 = vrot.slane %v2834, 4
        %v2836 = vadd.f32 %v2834, %v2835
        %v2837 = vrot.slane %v2836, 2
        %v2838 = vadd.f32 %v2836, %v2837
        %v2839 = vrot.slane %v2838, 1
        %v2840 = vadd.f32 %v2838, %v2839
        %v2841 = vadd.f32 %v2729, %v2730
        %v2842 = vadd.f32 %v2841, %v2731
        %v2843 = vadd.f32 %v2842, %v2732
        %v2844 = vadd.f32 %v2843, %v2733
        %v2845 = vadd.f32 %v2844, %v2734
        %v2846 = vadd.f32 %v2845, %v2735
        %v2847 = vadd.f32 %v2846, %v2736
        %v2848 = vrot.slane %v2847, 4
        %v2849 = vadd.f32 %v2847, %v2848
        %v2850 = vrot.slane %v2849, 2
        %v2851 = vadd.f32 %v2849, %v2850
        %v2852 = vrot.slane %v2851, 1
        %v2853 = vadd.f32 %v2851, %v2852
        %v2854 = vmul.f32 %v2749, %v1587
        %v2855 = vmul.f32 %v2762, %v1587
        %v2856 = vmul.f32 %v2775, %v1587
        %v2857 = vmul.f32 %v2788, %v1587
        %v2858 = vmul.f32 %v2801, %v1587
        %v2859 = vmul.f32 %v2814, %v1587
        %v2860 = vmul.f32 %v2827, %v1587
        %v2861 = vmul.f32 %v2840, %v1587
        %v2862 = vmul.f32 %v2853, %v1587
        %v2863 = vadd.f32 %v2854, 1e-06
        %v2864 = vadd.f32 %v2855, 1e-06
        %v2865 = vadd.f32 %v2856, 1e-06
        %v2866 = vadd.f32 %v2857, 1e-06
        %v2867 = vadd.f32 %v2858, 1e-06
        %v2868 = vadd.f32 %v2859, 1e-06
        %v2869 = vadd.f32 %v2860, 1e-06
        %v2870 = vadd.f32 %v2861, 1e-06
        %v2871 = vadd.f32 %v2862, 1e-06
        %v2872 = vrsqrt.pop %v2863
        %v2873 = vrsqrt.pop %v2864
        %v2874 = vrsqrt.pop %v2865
        %v2875 = vrsqrt.pop %v2866
        %v2876 = vrsqrt.pop %v2867
        %v2877 = vrsqrt.pop %v2868
        %v2878 = vrsqrt.pop %v2869
        %v2879 = vrsqrt.pop %v2870
        %v2880 = vrsqrt.pop %v2871
        %v2881 = vmul.f32 %v2593, %v2872
        %v2882 = vmul.f32 %v2594, %v2872
        %v2883 = vmul.f32 %v2595, %v2872
        %v2884 = vmul.f32 %v2596, %v2872
        %v2885 = vmul.f32 %v2597, %v2872
        %v2886 = vmul.f32 %v2598, %v2872
        %v2887 = vmul.f32 %v2599, %v2872
        %v2888 = vmul.f32 %v2600, %v2872
        %v2889 = vmul.f32 %v2601, %v2873
        %v2890 = vmul.f32 %v2602, %v2873
        %v2891 = vmul.f32 %v2603, %v2873
        %v2892 = vmul.f32 %v2604, %v2873
        %v2893 = vmul.f32 %v2605, %v2873
        %v2894 = vmul.f32 %v2606, %v2873
        %v2895 = vmul.f32 %v2607, %v2873
        %v2896 = vmul.f32 %v2608, %v2873
        %v2897 = vmul.f32 %v2609, %v2874
        %v2898 = vmul.f32 %v2610, %v2874
        %v2899 = vmul.f32 %v2611, %v2874
        %v2900 = vmul.f32 %v2612, %v2874
        %v2901 = vmul.f32 %v2613, %v2874
        %v2902 = vmul.f32 %v2614, %v2874
        %v2903 = vmul.f32 %v2615, %v2874
        %v2904 = vmul.f32 %v2616, %v2874
        %v2905 = vmul.f32 %v2617, %v2875
        %v2906 = vmul.f32 %v2618, %v2875
        %v2907 = vmul.f32 %v2619, %v2875
        %v2908 = vmul.f32 %v2620, %v2875
        %v2909 = vmul.f32 %v2621, %v2875
        %v2910 = vmul.f32 %v2622, %v2875
        %v2911 = vmul.f32 %v2623, %v2875
        %v2912 = vmul.f32 %v2624, %v2875
        %v2913 = vmul.f32 %v2625, %v2876
        %v2914 = vmul.f32 %v2626, %v2876
        %v2915 = vmul.f32 %v2627, %v2876
        %v2916 = vmul.f32 %v2628, %v2876
        %v2917 = vmul.f32 %v2629, %v2876
        %v2918 = vmul.f32 %v2630, %v2876
        %v2919 = vmul.f32 %v2631, %v2876
        %v2920 = vmul.f32 %v2632, %v2876
        %v2921 = vmul.f32 %v2633, %v2877
        %v2922 = vmul.f32 %v2634, %v2877
        %v2923 = vmul.f32 %v2635, %v2877
        %v2924 = vmul.f32 %v2636, %v2877
        %v2925 = vmul.f32 %v2637, %v2877
        %v2926 = vmul.f32 %v2638, %v2877
        %v2927 = vmul.f32 %v2639, %v2877
        %v2928 = vmul.f32 %v2640, %v2877
        %v2929 = vmul.f32 %v2641, %v2878
        %v2930 = vmul.f32 %v2642, %v2878
        %v2931 = vmul.f32 %v2643, %v2878
        %v2932 = vmul.f32 %v2644, %v2878
        %v2933 = vmul.f32 %v2645, %v2878
        %v2934 = vmul.f32 %v2646, %v2878
        %v2935 = vmul.f32 %v2647, %v2878
        %v2936 = vmul.f32 %v2648, %v2878
        %v2937 = vmul.f32 %v2649, %v2879
        %v2938 = vmul.f32 %v2650, %v2879
        %v2939 = vmul.f32 %v2651, %v2879
        %v2940 = vmul.f32 %v2652, %v2879
        %v2941 = vmul.f32 %v2653, %v2879
        %v2942 = vmul.f32 %v2654, %v2879
        %v2943 = vmul.f32 %v2655, %v2879
        %v2944 = vmul.f32 %v2656, %v2879
        %v2945 = vmul.f32 %v2657, %v2880
        %v2946 = vmul.f32 %v2658, %v2880
        %v2947 = vmul.f32 %v2659, %v2880
        %v2948 = vmul.f32 %v2660, %v2880
        %v2949 = vmul.f32 %v2661, %v2880
        %v2950 = vmul.f32 %v2662, %v2880
        %v2951 = vmul.f32 %v2663, %v2880
        %v2952 = vmul.f32 %v2664, %v2880
        %2954 = vset.pattern.permute.xlu0 0
        %2955 = vperm.xlu0 %2954, %v2451
        %v2956 = vpop.permute.xlu0 %2955
        %2959 = vset.pattern.permute.xlu0 0
        %2960 = vperm.xlu0 %2959, %v2452
        %v2961 = vpop.permute.xlu0 %2960
        %2964 = vset.pattern.permute.xlu0 0
        %2965 = vperm.xlu0 %2964, %v2453
        %v2966 = vpop.permute.xlu0 %2965
        %2969 = vset.pattern.permute.xlu0 0
        %2970 = vperm.xlu0 %2969, %v2454
        %v2971 = vpop.permute.xlu0 %2970
        %2974 = vset.pattern.permute.xlu0 0
        %2975 = vperm.xlu0 %2974, %v2455
        %v2976 = vpop.permute.xlu0 %2975
        %2979 = vset.pattern.permute.xlu0 0
        %2980 = vperm.xlu0 %2979, %v2456
        %v2981 = vpop.permute.xlu0 %2980
        %2984 = vset.pattern.permute.xlu0 0
        %2985 = vperm.xlu0 %2984, %v2457
        %v2986 = vpop.permute.xlu0 %2985
        %2989 = vset.pattern.permute.xlu0 0
        %2990 = vperm.xlu0 %2989, %v2458
        %v2991 = vpop.permute.xlu0 %2990
        %v2993 = vmul.f32 %v2881, %v2956
        %v2994 = vmul.f32 %v2882, %v2961
        %v2995 = vmul.f32 %v2883, %v2966
        %v2996 = vmul.f32 %v2884, %v2971
        %v2997 = vmul.f32 %v2885, %v2976
        %v2998 = vmul.f32 %v2886, %v2981
        %v2999 = vmul.f32 %v2887, %v2986
        %v3000 = vmul.f32 %v2888, %v2991
        %v3001 = vmul.f32 %v2889, %v2956
        %v3002 = vmul.f32 %v2890, %v2961
        %v3003 = vmul.f32 %v2891, %v2966
        %v3004 = vmul.f32 %v2892, %v2971
        %v3005 = vmul.f32 %v2893, %v2976
        %v3006 = vmul.f32 %v2894, %v2981
        %v3007 = vmul.f32 %v2895, %v2986
        %v3008 = vmul.f32 %v2896, %v2991
        %v3009 = vmul.f32 %v2897, %v2956
        %v3010 = vmul.f32 %v2898, %v2961
        %v3011 = vmul.f32 %v2899, %v2966
        %v3012 = vmul.f32 %v2900, %v2971
        %v3013 = vmul.f32 %v2901, %v2976
        %v3014 = vmul.f32 %v2902, %v2981
        %v3015 = vmul.f32 %v2903, %v2986
        %v3016 = vmul.f32 %v2904, %v2991
        %v3017 = vmul.f32 %v2905, %v2956
        %v3018 = vmul.f32 %v2906, %v2961
        %v3019 = vmul.f32 %v2907, %v2966
        %v3020 = vmul.f32 %v2908, %v2971
        %v3021 = vmul.f32 %v2909, %v2976
        %v3022 = vmul.f32 %v2910, %v2981
        %v3023 = vmul.f32 %v2911, %v2986
        %v3024 = vmul.f32 %v2912, %v2991
        %v3025 = vmul.f32 %v2913, %v2956
        %v3026 = vmul.f32 %v2914, %v2961
        %v3027 = vmul.f32 %v2915, %v2966
        %v3028 = vmul.f32 %v2916, %v2971
        %v3029 = vmul.f32 %v2917, %v2976
        %v3030 = vmul.f32 %v2918, %v2981
        %v3031 = vmul.f32 %v2919, %v2986
        %v3032 = vmul.f32 %v2920, %v2991
        %v3033 = vmul.f32 %v2921, %v2956
        %v3034 = vmul.f32 %v2922, %v2961
        %v3035 = vmul.f32 %v2923, %v2966
        %v3036 = vmul.f32 %v2924, %v2971
        %v3037 = vmul.f32 %v2925, %v2976
        %v3038 = vmul.f32 %v2926, %v2981
        %v3039 = vmul.f32 %v2927, %v2986
        %v3040 = vmul.f32 %v2928, %v2991
        %v3041 = vmul.f32 %v2929, %v2956
        %v3042 = vmul.f32 %v2930, %v2961
        %v3043 = vmul.f32 %v2931, %v2966
        %v3044 = vmul.f32 %v2932, %v2971
        %v3045 = vmul.f32 %v2933, %v2976
        %v3046 = vmul.f32 %v2934, %v2981
        %v3047 = vmul.f32 %v2935, %v2986
        %v3048 = vmul.f32 %v2936, %v2991
        %v3049 = vmul.f32 %v2937, %v2956
        %v3050 = vmul.f32 %v2938, %v2961
        %v3051 = vmul.f32 %v2939, %v2966
        %v3052 = vmul.f32 %v2940, %v2971
        %v3053 = vmul.f32 %v2941, %v2976
        %v3054 = vmul.f32 %v2942, %v2981
        %v3055 = vmul.f32 %v2943, %v2986
        %v3056 = vmul.f32 %v2944, %v2991
        %v3057 = vmul.f32 %v2945, %v2956
        %v3058 = vmul.f32 %v2946, %v2961
        %v3059 = vmul.f32 %v2947, %v2966
        %v3060 = vmul.f32 %v2948, %v2971
        %v3061 = vmul.f32 %v2949, %v2976
        %v3062 = vmul.f32 %v2950, %v2981
        %v3063 = vmul.f32 %v2951, %v2986
        %v3064 = vmul.f32 %v2952, %v2991
        %3066 = vset.pattern.permute.xlu0 0
        %3067 = vperm.xlu0 %3066, %v2459
        %v3068 = vpop.permute.xlu0 %3067
        %3071 = vset.pattern.permute.xlu0 0
        %3072 = vperm.xlu0 %3071, %v2460
        %v3073 = vpop.permute.xlu0 %3072
        %3076 = vset.pattern.permute.xlu0 0
        %3077 = vperm.xlu0 %3076, %v2461
        %v3078 = vpop.permute.xlu0 %3077
        %3081 = vset.pattern.permute.xlu0 0
        %3082 = vperm.xlu0 %3081, %v2462
        %v3083 = vpop.permute.xlu0 %3082
        %3086 = vset.pattern.permute.xlu0 0
        %3087 = vperm.xlu0 %3086, %v2463
        %v3088 = vpop.permute.xlu0 %3087
        %3091 = vset.pattern.permute.xlu0 0
        %3092 = vperm.xlu0 %3091, %v2464
        %v3093 = vpop.permute.xlu0 %3092
        %3096 = vset.pattern.permute.xlu0 0
        %3097 = vperm.xlu0 %3096, %v2465
        %v3098 = vpop.permute.xlu0 %3097
        %3101 = vset.pattern.permute.xlu0 0
        %3102 = vperm.xlu0 %3101, %v2466
        %v3103 = vpop.permute.xlu0 %3102
        %v3105 = vadd.f32 %v2993, %v3068
        %v3106 = vadd.f32 %v2994, %v3073
        %v3107 = vadd.f32 %v2995, %v3078
        %v3108 = vadd.f32 %v2996, %v3083
        %v3109 = vadd.f32 %v2997, %v3088
        %v3110 = vadd.f32 %v2998, %v3093
        %v3111 = vadd.f32 %v2999, %v3098
        %v3112 = vadd.f32 %v3000, %v3103
        %v3113 = vadd.f32 %v3001, %v3068
        %v3114 = vadd.f32 %v3002, %v3073
        %v3115 = vadd.f32 %v3003, %v3078
        %v3116 = vadd.f32 %v3004, %v3083
        %v3117 = vadd.f32 %v3005, %v3088
        %v3118 = vadd.f32 %v3006, %v3093
        %v3119 = vadd.f32 %v3007, %v3098
        %v3120 = vadd.f32 %v3008, %v3103
        %v3121 = vadd.f32 %v3009, %v3068
        %v3122 = vadd.f32 %v3010, %v3073
        %v3123 = vadd.f32 %v3011, %v3078
        %v3124 = vadd.f32 %v3012, %v3083
        %v3125 = vadd.f32 %v3013, %v3088
        %v3126 = vadd.f32 %v3014, %v3093
        %v3127 = vadd.f32 %v3015, %v3098
        %v3128 = vadd.f32 %v3016, %v3103
        %v3129 = vadd.f32 %v3017, %v3068
        %v3130 = vadd.f32 %v3018, %v3073
        %v3131 = vadd.f32 %v3019, %v3078
        %v3132 = vadd.f32 %v3020, %v3083
        %v3133 = vadd.f32 %v3021, %v3088
        %v3134 = vadd.f32 %v3022, %v3093
        %v3135 = vadd.f32 %v3023, %v3098
        %v3136 = vadd.f32 %v3024, %v3103
        %v3137 = vadd.f32 %v3025, %v3068
        %v3138 = vadd.f32 %v3026, %v3073
        %v3139 = vadd.f32 %v3027, %v3078
        %v3140 = vadd.f32 %v3028, %v3083
        %v3141 = vadd.f32 %v3029, %v3088
        %v3142 = vadd.f32 %v3030, %v3093
        %v3143 = vadd.f32 %v3031, %v3098
        %v3144 = vadd.f32 %v3032, %v3103
        %v3145 = vadd.f32 %v3033, %v3068
        %v3146 = vadd.f32 %v3034, %v3073
        %v3147 = vadd.f32 %v3035, %v3078
        %v3148 = vadd.f32 %v3036, %v3083
        %v3149 = vadd.f32 %v3037, %v3088
        %v3150 = vadd.f32 %v3038, %v3093
        %v3151 = vadd.f32 %v3039, %v3098
        %v3152 = vadd.f32 %v3040, %v3103
        %v3153 = vadd.f32 %v3041, %v3068
        %v3154 = vadd.f32 %v3042, %v3073
        %v3155 = vadd.f32 %v3043, %v3078
        %v3156 = vadd.f32 %v3044, %v3083
        %v3157 = vadd.f32 %v3045, %v3088
        %v3158 = vadd.f32 %v3046, %v3093
        %v3159 = vadd.f32 %v3047, %v3098
        %v3160 = vadd.f32 %v3048, %v3103
        %v3161 = vadd.f32 %v3049, %v3068
        %v3162 = vadd.f32 %v3050, %v3073
        %v3163 = vadd.f32 %v3051, %v3078
        %v3164 = vadd.f32 %v3052, %v3083
        %v3165 = vadd.f32 %v3053, %v3088
        %v3166 = vadd.f32 %v3054, %v3093
        %v3167 = vadd.f32 %v3055, %v3098
        %v3168 = vadd.f32 %v3056, %v3103
        %v3169 = vadd.f32 %v3057, %v3068
        %v3170 = vadd.f32 %v3058, %v3073
        %v3171 = vadd.f32 %v3059, %v3078
        %v3172 = vadd.f32 %v3060, %v3083
        %v3173 = vadd.f32 %v3061, %v3088
        %v3174 = vadd.f32 %v3062, %v3093
        %v3175 = vadd.f32 %v3063, %v3098
        %v3176 = vadd.f32 %v3064, %v3103
        %v3177 = vmul.f32 %v1717, %v2379
        %v3178 = vmul.f32 %v1718, %v2380
        %v3179 = vmul.f32 %v1719, %v2381
        %v3180 = vmul.f32 %v1720, %v2382
        %v3181 = vmul.f32 %v1717, %v2387
        %v3182 = vmul.f32 %v1718, %v2388
        %v3183 = vmul.f32 %v1719, %v2389
        %v3184 = vmul.f32 %v1720, %v2390
        %v3185 = vmul.f32 %v1717, %v2395
        %v3186 = vmul.f32 %v1718, %v2396
        %v3187 = vmul.f32 %v1719, %v2397
        %v3188 = vmul.f32 %v1720, %v2398
        %v3189 = vmul.f32 %v1717, %v2403
        %v3190 = vmul.f32 %v1718, %v2404
        %v3191 = vmul.f32 %v1719, %v2405
        %v3192 = vmul.f32 %v1720, %v2406
        %v3193 = vmul.f32 %v1717, %v2411
        %v3194 = vmul.f32 %v1718, %v2412
        %v3195 = vmul.f32 %v1719, %v2413
        %v3196 = vmul.f32 %v1720, %v2414
        %v3197 = vmul.f32 %v1717, %v2419
        %v3198 = vmul.f32 %v1718, %v2420
        %v3199 = vmul.f32 %v1719, %v2421
        %v3200 = vmul.f32 %v1720, %v2422
        %v3201 = vmul.f32 %v1717, %v2427
        %v3202 = vmul.f32 %v1718, %v2428
        %v3203 = vmul.f32 %v1719, %v2429
        %v3204 = vmul.f32 %v1720, %v2430
        %v3205 = vmul.f32 %v1717, %v2435
        %v3206 = vmul.f32 %v1718, %v2436
        %v3207 = vmul.f32 %v1719, %v2437
        %v3208 = vmul.f32 %v1720, %v2438
        %v3209 = vmul.f32 %v1717, %v2443
        %v3210 = vmul.f32 %v1718, %v2444
        %v3211 = vmul.f32 %v1719, %v2445
        %v3212 = vmul.f32 %v1720, %v2446
        %v3213 = vadd.f32 %v3177, %v3178
        %v3214 = vadd.f32 %v3213, %v3179
        %v3215 = vadd.f32 %v3214, %v3180
        %v3216 = vrot.slane %v3215, 4
        %v3217 = vadd.f32 %v3215, %v3216
        %v3218 = vrot.slane %v3217, 2
        %v3219 = vadd.f32 %v3217, %v3218
        %v3220 = vrot.slane %v3219, 1
        %v3221 = vadd.f32 %v3219, %v3220
        %v3222 = vadd.f32 %v3181, %v3182
        %v3223 = vadd.f32 %v3222, %v3183
        %v3224 = vadd.f32 %v3223, %v3184
        %v3225 = vrot.slane %v3224, 4
        %v3226 = vadd.f32 %v3224, %v3225
        %v3227 = vrot.slane %v3226, 2
        %v3228 = vadd.f32 %v3226, %v3227
        %v3229 = vrot.slane %v3228, 1
        %v3230 = vadd.f32 %v3228, %v3229
        %v3231 = vadd.f32 %v3185, %v3186
        %v3232 = vadd.f32 %v3231, %v3187
        %v3233 = vadd.f32 %v3232, %v3188
        %v3234 = vrot.slane %v3233, 4
        %v3235 = vadd.f32 %v3233, %v3234
        %v3236 = vrot.slane %v3235, 2
        %v3237 = vadd.f32 %v3235, %v3236
        %v3238 = vrot.slane %v3237, 1
        %v3239 = vadd.f32 %v3237, %v3238
        %v3240 = vadd.f32 %v3189, %v3190
        %v3241 = vadd.f32 %v3240, %v3191
        %v3242 = vadd.f32 %v3241, %v3192
        %v3243 = vrot.slane %v3242, 4
        %v3244 = vadd.f32 %v3242, %v3243
        %v3245 = vrot.slane %v3244, 2
        %v3246 = vadd.f32 %v3244, %v3245
        %v3247 = vrot.slane %v3246, 1
        %v3248 = vadd.f32 %v3246, %v3247
        %v3249 = vadd.f32 %v3193, %v3194
        %v3250 = vadd.f32 %v3249, %v3195
        %v3251 = vadd.f32 %v3250, %v3196
        %v3252 = vrot.slane %v3251, 4
        %v3253 = vadd.f32 %v3251, %v3252
        %v3254 = vrot.slane %v3253, 2
        %v3255 = vadd.f32 %v3253, %v3254
        %v3256 = vrot.slane %v3255, 1
        %v3257 = vadd.f32 %v3255, %v3256
        %v3258 = vadd.f32 %v3197, %v3198
        %v3259 = vadd.f32 %v3258, %v3199
        %v3260 = vadd.f32 %v3259, %v3200
        %v3261 = vrot.slane %v3260, 4
        %v3262 = vadd.f32 %v3260, %v3261
        %v3263 = vrot.slane %v3262, 2
        %v3264 = vadd.f32 %v3262, %v3263
        %v3265 = vrot.slane %v3264, 1
        %v3266 = vadd.f32 %v3264, %v3265
        %v3267 = vadd.f32 %v3201, %v3202
        %v3268 = vadd.f32 %v3267, %v3203
        %v3269 = vadd.f32 %v3268, %v3204
        %v3270 = vrot.slane %v3269, 4
        %v3271 = vadd.f32 %v3269, %v3270
        %v3272 = vrot.slane %v3271, 2
        %v3273 = vadd.f32 %v3271, %v3272
        %v3274 = vrot.slane %v3273, 1
        %v3275 = vadd.f32 %v3273, %v3274
        %v3276 = vadd.f32 %v3205, %v3206
        %v3277 = vadd.f32 %v3276, %v3207
        %v3278 = vadd.f32 %v3277, %v3208
        %v3279 = vrot.slane %v3278, 4
        %v3280 = vadd.f32 %v3278, %v3279
        %v3281 = vrot.slane %v3280, 2
        %v3282 = vadd.f32 %v3280, %v3281
        %v3283 = vrot.slane %v3282, 1
        %v3284 = vadd.f32 %v3282, %v3283
        %v3285 = vadd.f32 %v3209, %v3210
        %v3286 = vadd.f32 %v3285, %v3211
        %v3287 = vadd.f32 %v3286, %v3212
        %v3288 = vrot.slane %v3287, 4
        %v3289 = vadd.f32 %v3287, %v3288
        %v3290 = vrot.slane %v3289, 2
        %v3291 = vadd.f32 %v3289, %v3290
        %v3292 = vrot.slane %v3291, 1
        %v3293 = vadd.f32 %v3291, %v3292
        %v3294 = vmul.f32 %v3221, 0.17677669
        %v3295 = vmul.f32 %v3230, 0.17677669
        %v3296 = vmul.f32 %v3239, 0.17677669
        %v3297 = vmul.f32 %v3248, 0.17677669
        %v3298 = vmul.f32 %v3257, 0.17677669
        %v3299 = vmul.f32 %v3266, 0.17677669
        %v3300 = vmul.f32 %v3275, 0.17677669
        %v3301 = vmul.f32 %v3284, 0.17677669
        %v3302 = vmul.f32 %v3293, 0.17677669
        %v3303 = vmax.f32 %v3294, %v3298
        %v3304 = vmax.f32 %v3295, %v3299
        %v3305 = vmax.f32 %v3296, %v3300
        %v3306 = vmax.f32 %v3297, %v3301
        %v3307 = vmax.f32 %v3303, %v3302
        %v3308 = vmax.f32 %v3307, %v3304
        %v3309 = vmax.f32 %v3305, %v3306
        %v3310 = vmax.f32 %v3308, %v3309
        %v3311 = vsub.f32 %v3294, %v3310
        %v3312 = vsub.f32 %v3295, %v3310
        %v3313 = vsub.f32 %v3296, %v3310
        %v3314 = vsub.f32 %v3297, %v3310
        %v3315 = vsub.f32 %v3298, %v3310
        %v3316 = vsub.f32 %v3299, %v3310
        %v3317 = vsub.f32 %v3300, %v3310
        %v3318 = vsub.f32 %v3301, %v3310
        %v3319 = vsub.f32 %v3302, %v3310
        %v3320 = vmul.f32 %v3311, 1.442695
        %v3321 = vpow.pop %v3320
        %v3322 = vmul.f32 %v3312, 1.442695
        %v3323 = vpow.pop %v3322
        %v3324 = vmul.f32 %v3313, 1.442695
        %v3325 = vpow.pop %v3324
        %v3326 = vmul.f32 %v3314, 1.442695
        %v3327 = vpow.pop %v3326
        %v3328 = vmul.f32 %v3315, 1.442695
        %v3329 = vpow.pop %v3328
        %v3330 = vmul.f32 %v3316, 1.442695
        %v3331 = vpow.pop %v3330
        %v3332 = vmul.f32 %v3317, 1.442695
        %v3333 = vpow.pop %v3332
        %v3334 = vmul.f32 %v3318, 1.442695
        %v3335 = vpow.pop %v3334
        %v3336 = vmul.f32 %v3319, 1.442695
        %v3337 = vpow.pop %v3336
        %v3347 = vrot.slane %v3323, 7
        %vm3348 = vcmask 1041409
        %v3349 = vsel %vm3348, %v3347, %v3321
        %v3350 = vrot.slane %v3325, 6
        %vm3351 = vcmask 1042434
        %v3352 = vsel %vm3351, %v3350, %v3349
        %v3353 = vrot.slane %v3327, 5
        %vm3354 = vcmask 1043459
        %v3355 = vsel %vm3354, %v3353, %v3352
        %v3356 = vrot.slane %v3329, 4
        %vm3357 = vcmask 1044484
        %v3358 = vsel %vm3357, %v3356, %v3355
        %v3359 = vrot.slane %v3331, 3
        %vm3360 = vcmask 1045509
        %v3361 = vsel %vm3360, %v3359, %v3358
        %v3362 = vrot.slane %v3333, 2
        %vm3363 = vcmask 1046534
        %v3364 = vsel %vm3363, %v3362, %v3361
        %v3365 = vrot.slane %v3335, 1
        %vm3366 = vcmask 1047559
        %v3367 = vsel %vm3366, %v3365, %v3364
        %vm3370 = vcmask 1040384
        %v3371 = vsel %vm3370, %v3337, 0.0
        %v3372 = vadd.f32 %v3367, %v3371
        %v3373 = vrot.slane %v3372, 4
        %v3374 = vadd.f32 %v3372, %v3373
        %v3375 = vrot.slane %v3374, 2
        %v3376 = vadd.f32 %v3374, %v3375
        %v3377 = vrot.slane %v3376, 1
        %v3378 = vadd.f32 %v3376, %v3377
        %v3379 = vrcp.pop %v3378
        %v3380 = vlaneseq
        %v3381 = vshrl.u32 %v3380, 7
        %v3382 = vsub.s32 0, %v3381
        %v3383 = vrot.slane %v3379, %v3382
        %v3384 = vmul.f32 %v3321, %v3383
        %v3385 = vmul.f32 %v3323, %v3383
        %v3386 = vmul.f32 %v3325, %v3383
        %v3387 = vmul.f32 %v3327, %v3383
        %v3388 = vmul.f32 %v3329, %v3383
        %v3389 = vmul.f32 %v3331, %v3383
        %v3390 = vmul.f32 %v3333, %v3383
        %v3391 = vmul.f32 %v3335, %v3383
        %v3392 = vmul.f32 %v3337, %v3383
        %v3393 = vlaneseq
        %v3394 = vshrl.u32 %v3393, 7
        %v3395 = vsub.s32 0, %v3394
        %v3396 = vrot.slane %v3384, %v3395
        %v3397 = vlaneseq
        %v3398 = vshrl.u32 %v3397, 7
        %v3399 = vsub.s32 0, %v3398
        %v3400 = vrot.slane %v3385, %v3399
        %v3401 = vlaneseq
        %v3402 = vshrl.u32 %v3401, 7
        %v3403 = vsub.s32 0, %v3402
        %v3404 = vrot.slane %v3386, %v3403
        %v3405 = vlaneseq
        %v3406 = vshrl.u32 %v3405, 7
        %v3407 = vsub.s32 0, %v3406
        %v3408 = vrot.slane %v3387, %v3407
        %v3409 = vlaneseq
        %v3410 = vshrl.u32 %v3409, 7
        %v3411 = vsub.s32 0, %v3410
        %v3412 = vrot.slane %v3388, %v3411
        %v3413 = vlaneseq
        %v3414 = vshrl.u32 %v3413, 7
        %v3415 = vsub.s32 0, %v3414
        %v3416 = vrot.slane %v3389, %v3415
        %v3417 = vlaneseq
        %v3418 = vshrl.u32 %v3417, 7
        %v3419 = vsub.s32 0, %v3418
        %v3420 = vrot.slane %v3390, %v3419
        %v3421 = vlaneseq
        %v3422 = vshrl.u32 %v3421, 7
        %v3423 = vsub.s32 0, %v3422
        %v3424 = vrot.slane %v3391, %v3423
        %v3425 = vlaneseq
        %v3426 = vshrl.u32 %v3425, 7
        %v3427 = vsub.s32 0, %v3426
        %v3428 = vrot.slane %v3392, %v3427
        %v3429 = vmul.f32 %v3396, %v3105
        %v3430 = vmul.f32 %v3396, %v3106
        %v3431 = vmul.f32 %v3396, %v3107
        %v3432 = vmul.f32 %v3396, %v3108
        %v3433 = vmul.f32 %v3400, %v3113
        %v3434 = vmul.f32 %v3400, %v3114
        %v3435 = vmul.f32 %v3400, %v3115
        %v3436 = vmul.f32 %v3400, %v3116
        %v3437 = vmul.f32 %v3404, %v3121
        %v3438 = vmul.f32 %v3404, %v3122
        %v3439 = vmul.f32 %v3404, %v3123
        %v3440 = vmul.f32 %v3404, %v3124
        %v3441 = vmul.f32 %v3408, %v3129
        %v3442 = vmul.f32 %v3408, %v3130
        %v3443 = vmul.f32 %v3408, %v3131
        %v3444 = vmul.f32 %v3408, %v3132
        %v3445 = vmul.f32 %v3412, %v3137
        %v3446 = vmul.f32 %v3412, %v3138
        %v3447 = vmul.f32 %v3412, %v3139
        %v3448 = vmul.f32 %v3412, %v3140
        %v3449 = vmul.f32 %v3416, %v3145
        %v3450 = vmul.f32 %v3416, %v3146
        %v3451 = vmul.f32 %v3416, %v3147
        %v3452 = vmul.f32 %v3416, %v3148
        %v3453 = vmul.f32 %v3420, %v3153
        %v3454 = vmul.f32 %v3420, %v3154
        %v3455 = vmul.f32 %v3420, %v3155
        %v3456 = vmul.f32 %v3420, %v3156
        %v3457 = vmul.f32 %v3424, %v3161
        %v3458 = vmul.f32 %v3424, %v3162
        %v3459 = vmul.f32 %v3424, %v3163
        %v3460 = vmul.f32 %v3424, %v3164
        %v3461 = vmul.f32 %v3428, %v3169
        %v3462 = vmul.f32 %v3428, %v3170
        %v3463 = vmul.f32 %v3428, %v3171
        %v3464 = vmul.f32 %v3428, %v3172
        %v3465 = vadd.f32 %v3429, %v3433
        %v3466 = vadd.f32 %v3465, %v3437
        %v3467 = vadd.f32 %v3466, %v3441
        %v3468 = vadd.f32 %v3467, %v3445
        %v3469 = vadd.f32 %v3468, %v3449
        %v3470 = vadd.f32 %v3469, %v3453
        %v3471 = vadd.f32 %v3470, %v3457
        %v3472 = vadd.f32 %v3471, %v3461
        %v3473 = vadd.f32 %v3430, %v3434
        %v3474 = vadd.f32 %v3473, %v3438
        %v3475 = vadd.f32 %v3474, %v3442
        %v3476 = vadd.f32 %v3475, %v3446
        %v3477 = vadd.f32 %v3476, %v3450
        %v3478 = vadd.f32 %v3477, %v3454
        %v3479 = vadd.f32 %v3478, %v3458
        %v3480 = vadd.f32 %v3479, %v3462
        %v3481 = vadd.f32 %v3431, %v3435
        %v3482 = vadd.f32 %v3481, %v3439
        %v3483 = vadd.f32 %v3482, %v3443
        %v3484 = vadd.f32 %v3483, %v3447
        %v3485 = vadd.f32 %v3484, %v3451
        %v3486 = vadd.f32 %v3485, %v3455
        %v3487 = vadd.f32 %v3486, %v3459
        %v3488 = vadd.f32 %v3487, %v3463
        %v3489 = vadd.f32 %v3432, %v3436
        %v3490 = vadd.f32 %v3489, %v3440
        %v3491 = vadd.f32 %v3490, %v3444
        %v3492 = vadd.f32 %v3491, %v3448
        %v3493 = vadd.f32 %v3492, %v3452
        %v3494 = vadd.f32 %v3493, %v3456
        %v3495 = vadd.f32 %v3494, %v3460
        %v3496 = vadd.f32 %v3495, %v3464
        %v3497 = vmul.f32 %v1721, %v2383
        %v3498 = vmul.f32 %v1722, %v2384
        %v3499 = vmul.f32 %v1723, %v2385
        %v3500 = vmul.f32 %v1724, %v2386
        %v3501 = vmul.f32 %v1721, %v2391
        %v3502 = vmul.f32 %v1722, %v2392
        %v3503 = vmul.f32 %v1723, %v2393
        %v3504 = vmul.f32 %v1724, %v2394
        %v3505 = vmul.f32 %v1721, %v2399
        %v3506 = vmul.f32 %v1722, %v2400
        %v3507 = vmul.f32 %v1723, %v2401
        %v3508 = vmul.f32 %v1724, %v2402
        %v3509 = vmul.f32 %v1721, %v2407
        %v3510 = vmul.f32 %v1722, %v2408
        %v3511 = vmul.f32 %v1723, %v2409
        %v3512 = vmul.f32 %v1724, %v2410
        %v3513 = vmul.f32 %v1721, %v2415
        %v3514 = vmul.f32 %v1722, %v2416
        %v3515 = vmul.f32 %v1723, %v2417
        %v3516 = vmul.f32 %v1724, %v2418
        %v3517 = vmul.f32 %v1721, %v2423
        %v3518 = vmul.f32 %v1722, %v2424
        %v3519 = vmul.f32 %v1723, %v2425
        %v3520 = vmul.f32 %v1724, %v2426
        %v3521 = vmul.f32 %v1721, %v2431
        %v3522 = vmul.f32 %v1722, %v2432
        %v3523 = vmul.f32 %v1723, %v2433
        %v3524 = vmul.f32 %v1724, %v2434
        %v3525 = vmul.f32 %v1721, %v2439
        %v3526 = vmul.f32 %v1722, %v2440
        %v3527 = vmul.f32 %v1723, %v2441
        %v3528 = vmul.f32 %v1724, %v2442
        %v3529 = vmul.f32 %v1721, %v2447
        %v3530 = vmul.f32 %v1722, %v2448
        %v3531 = vmul.f32 %v1723, %v2449
        %v3532 = vmul.f32 %v1724, %v2450
        %v3533 = vadd.f32 %v3497, %v3498
        %v3534 = vadd.f32 %v3533, %v3499
        %v3535 = vadd.f32 %v3534, %v3500
        %v3536 = vrot.slane %v3535, 4
        %v3537 = vadd.f32 %v3535, %v3536
        %v3538 = vrot.slane %v3537, 2
        %v3539 = vadd.f32 %v3537, %v3538
        %v3540 = vrot.slane %v3539, 1
        %v3541 = vadd.f32 %v3539, %v3540
        %v3542 = vadd.f32 %v3501, %v3502
        %v3543 = vadd.f32 %v3542, %v3503
        %v3544 = vadd.f32 %v3543, %v3504
        %v3545 = vrot.slane %v3544, 4
        %v3546 = vadd.f32 %v3544, %v3545
        %v3547 = vrot.slane %v3546, 2
        %v3548 = vadd.f32 %v3546, %v3547
        %v3549 = vrot.slane %v3548, 1
        %v3550 = vadd.f32 %v3548, %v3549
        %v3551 = vadd.f32 %v3505, %v3506
        %v3552 = vadd.f32 %v3551, %v3507
        %v3553 = vadd.f32 %v3552, %v3508
        %v3554 = vrot.slane %v3553, 4
        %v3555 = vadd.f32 %v3553, %v3554
        %v3556 = vrot.slane %v3555, 2
        %v3557 = vadd.f32 %v3555, %v3556
        %v3558 = vrot.slane %v3557, 1
        %v3559 = vadd.f32 %v3557, %v3558
        %v3560 = vadd.f32 %v3509, %v3510
        %v3561 = vadd.f32 %v3560, %v3511
        %v3562 = vadd.f32 %v3561, %v3512
        %v3563 = vrot.slane %v3562, 4
        %v3564 = vadd.f32 %v3562, %v3563
        %v3565 = vrot.slane %v3564, 2
        %v3566 = vadd.f32 %v3564, %v3565
        %v3567 = vrot.slane %v3566, 1
        %v3568 = vadd.f32 %v3566, %v3567
        %v3569 = vadd.f32 %v3513, %v3514
        %v3570 = vadd.f32 %v3569, %v3515
        %v3571 = vadd.f32 %v3570, %v3516
        %v3572 = vrot.slane %v3571, 4
        %v3573 = vadd.f32 %v3571, %v3572
        %v3574 = vrot.slane %v3573, 2
        %v3575 = vadd.f32 %v3573, %v3574
        %v3576 = vrot.slane %v3575, 1
        %v3577 = vadd.f32 %v3575, %v3576
        %v3578 = vadd.f32 %v3517, %v3518
        %v3579 = vadd.f32 %v3578, %v3519
        %v3580 = vadd.f32 %v3579, %v3520
        %v3581 = vrot.slane %v3580, 4
        %v3582 = vadd.f32 %v3580, %v3581
        %v3583 = vrot.slane %v3582, 2
        %v3584 = vadd.f32 %v3582, %v3583
        %v3585 = vrot.slane %v3584, 1
        %v3586 = vadd.f32 %v3584, %v3585
        %v3587 = vadd.f32 %v3521, %v3522
        %v3588 = vadd.f32 %v3587, %v3523
        %v3589 = vadd.f32 %v3588, %v3524
        %v3590 = vrot.slane %v3589, 4
        %v3591 = vadd.f32 %v3589, %v3590
        %v3592 = vrot.slane %v3591, 2
        %v3593 = vadd.f32 %v3591, %v3592
        %v3594 = vrot.slane %v3593, 1
        %v3595 = vadd.f32 %v3593, %v3594
        %v3596 = vadd.f32 %v3525, %v3526
        %v3597 = vadd.f32 %v3596, %v3527
        %v3598 = vadd.f32 %v3597, %v3528
        %v3599 = vrot.slane %v3598, 4
        %v3600 = vadd.f32 %v3598, %v3599
        %v3601 = vrot.slane %v3600, 2
        %v3602 = vadd.f32 %v3600, %v3601
        %v3603 = vrot.slane %v3602, 1
        %v3604 = vadd.f32 %v3602, %v3603
        %v3605 = vadd.f32 %v3529, %v3530
        %v3606 = vadd.f32 %v3605, %v3531
        %v3607 = vadd.f32 %v3606, %v3532
        %v3608 = vrot.slane %v3607, 4
        %v3609 = vadd.f32 %v3607, %v3608
        %v3610 = vrot.slane %v3609, 2
        %v3611 = vadd.f32 %v3609, %v3610
        %v3612 = vrot.slane %v3611, 1
        %v3613 = vadd.f32 %v3611, %v3612
        %v3614 = vmul.f32 %v3541, 0.17677669
        %v3615 = vmul.f32 %v3550, 0.17677669
        %v3616 = vmul.f32 %v3559, 0.17677669
        %v3617 = vmul.f32 %v3568, 0.17677669
        %v3618 = vmul.f32 %v3577, 0.17677669
        %v3619 = vmul.f32 %v3586, 0.17677669
        %v3620 = vmul.f32 %v3595, 0.17677669
        %v3621 = vmul.f32 %v3604, 0.17677669
        %v3622 = vmul.f32 %v3613, 0.17677669
        %v3623 = vmax.f32 %v3614, %v3618
        %v3624 = vmax.f32 %v3615, %v3619
        %v3625 = vmax.f32 %v3616, %v3620
        %v3626 = vmax.f32 %v3617, %v3621
        %v3627 = vmax.f32 %v3623, %v3622
        %v3628 = vmax.f32 %v3627, %v3624
        %v3629 = vmax.f32 %v3625, %v3626
        %v3630 = vmax.f32 %v3628, %v3629
        %v3631 = vsub.f32 %v3614, %v3630
        %v3632 = vsub.f32 %v3615, %v3630
        %v3633 = vsub.f32 %v3616, %v3630
        %v3634 = vsub.f32 %v3617, %v3630
        %v3635 = vsub.f32 %v3618, %v3630
        %v3636 = vsub.f32 %v3619, %v3630
        %v3637 = vsub.f32 %v3620, %v3630
        %v3638 = vsub.f32 %v3621, %v3630
        %v3639 = vsub.f32 %v3622, %v3630
        %v3640 = vmul.f32 %v3631, 1.442695
        %v3641 = vpow.pop %v3640
        %v3642 = vmul.f32 %v3632, 1.442695
        %v3643 = vpow.pop %v3642
        %v3644 = vmul.f32 %v3633, 1.442695
        %v3645 = vpow.pop %v3644
        %v3646 = vmul.f32 %v3634, 1.442695
        %v3647 = vpow.pop %v3646
        %v3648 = vmul.f32 %v3635, 1.442695
        %v3649 = vpow.pop %v3648
        %v3650 = vmul.f32 %v3636, 1.442695
        %v3651 = vpow.pop %v3650
        %v3652 = vmul.f32 %v3637, 1.442695
        %v3653 = vpow.pop %v3652
        %v3654 = vmul.f32 %v3638, 1.442695
        %v3655 = vpow.pop %v3654
        %v3656 = vmul.f32 %v3639, 1.442695
        %v3657 = vpow.pop %v3656
        %v3667 = vrot.slane %v3643, 7
        %v3668 = vsel %vm3348, %v3667, %v3641
        %v3669 = vrot.slane %v3645, 6
        %v3670 = vsel %vm3351, %v3669, %v3668
        %v3671 = vrot.slane %v3647, 5
        %v3672 = vsel %vm3354, %v3671, %v3670
        %v3673 = vrot.slane %v3649, 4
        %v3674 = vsel %vm3357, %v3673, %v3672
        %v3675 = vrot.slane %v3651, 3
        %v3676 = vsel %vm3360, %v3675, %v3674
        %v3677 = vrot.slane %v3653, 2
        %v3678 = vsel %vm3363, %v3677, %v3676
        %v3679 = vrot.slane %v3655, 1
        %v3680 = vsel %vm3366, %v3679, %v3678
        %v3683 = vsel %vm3370, %v3657, 0.0
        %v3684 = vadd.f32 %v3680, %v3683
        %v3685 = vrot.slane %v3684, 4
        %v3686 = vadd.f32 %v3684, %v3685
        %v3687 = vrot.slane %v3686, 2
        %v3688 = vadd.f32 %v3686, %v3687
        %v3689 = vrot.slane %v3688, 1
        %v3690 = vadd.f32 %v3688, %v3689
        %v3691 = vrcp.pop %v3690
        %v3692 = vlaneseq
        %v3693 = vshrl.u32 %v3692, 7
        %v3694 = vsub.s32 0, %v3693
        %v3695 = vrot.slane %v3691, %v3694
        %v3696 = vmul.f32 %v3641, %v3695
        %v3697 = vmul.f32 %v3643, %v3695
        %v3698 = vmul.f32 %v3645, %v3695
        %v3699 = vmul.f32 %v3647, %v3695
        %v3700 = vmul.f32 %v3649, %v3695
        %v3701 = vmul.f32 %v3651, %v3695
        %v3702 = vmul.f32 %v3653, %v3695
        %v3703 = vmul.f32 %v3655, %v3695
        %v3704 = vmul.f32 %v3657, %v3695
        %v3705 = vlaneseq
        %v3706 = vshrl.u32 %v3705, 7
        %v3707 = vsub.s32 0, %v3706
        %v3708 = vrot.slane %v3696, %v3707
        %v3709 = vlaneseq
        %v3710 = vshrl.u32 %v3709, 7
        %v3711 = vsub.s32 0, %v3710
        %v3712 = vrot.slane %v3697, %v3711
        %v3713 = vlaneseq
        %v3714 = vshrl.u32 %v3713, 7
        %v3715 = vsub.s32 0, %v3714
        %v3716 = vrot.slane %v3698, %v3715
        %v3717 = vlaneseq
        %v3718 = vshrl.u32 %v3717, 7
        %v3719 = vsub.s32 0, %v3718
        %v3720 = vrot.slane %v3699, %v3719
        %v3721 = vlaneseq
        %v3722 = vshrl.u32 %v3721, 7
        %v3723 = vsub.s32 0, %v3722
        %v3724 = vrot.slane %v3700, %v3723
        %v3725 = vlaneseq
        %v3726 = vshrl.u32 %v3725, 7
        %v3727 = vsub.s32 0, %v3726
        %v3728 = vrot.slane %v3701, %v3727
        %v3729 = vlaneseq
        %v3730 = vshrl.u32 %v3729, 7
        %v3731 = vsub.s32 0, %v3730
        %v3732 = vrot.slane %v3702, %v3731
        %v3733 = vlaneseq
        %v3734 = vshrl.u32 %v3733, 7
        %v3735 = vsub.s32 0, %v3734
        %v3736 = vrot.slane %v3703, %v3735
        %v3737 = vlaneseq
        %v3738 = vshrl.u32 %v3737, 7
        %v3739 = vsub.s32 0, %v3738
        %v3740 = vrot.slane %v3704, %v3739
        %v3741 = vmul.f32 %v3708, %v3109
        %v3742 = vmul.f32 %v3708, %v3110
        %v3743 = vmul.f32 %v3708, %v3111
        %v3744 = vmul.f32 %v3708, %v3112
        %v3745 = vmul.f32 %v3712, %v3117
        %v3746 = vmul.f32 %v3712, %v3118
        %v3747 = vmul.f32 %v3712, %v3119
        %v3748 = vmul.f32 %v3712, %v3120
        %v3749 = vmul.f32 %v3716, %v3125
        %v3750 = vmul.f32 %v3716, %v3126
        %v3751 = vmul.f32 %v3716, %v3127
        %v3752 = vmul.f32 %v3716, %v3128
        %v3753 = vmul.f32 %v3720, %v3133
        %v3754 = vmul.f32 %v3720, %v3134
        %v3755 = vmul.f32 %v3720, %v3135
        %v3756 = vmul.f32 %v3720, %v3136
        %v3757 = vmul.f32 %v3724, %v3141
        %v3758 = vmul.f32 %v3724, %v3142
        %v3759 = vmul.f32 %v3724, %v3143
        %v3760 = vmul.f32 %v3724, %v3144
        %v3761 = vmul.f32 %v3728, %v3149
        %v3762 = vmul.f32 %v3728, %v3150
        %v3763 = vmul.f32 %v3728, %v3151
        %v3764 = vmul.f32 %v3728, %v3152
        %v3765 = vmul.f32 %v3732, %v3157
        %v3766 = vmul.f32 %v3732, %v3158
        %v3767 = vmul.f32 %v3732, %v3159
        %v3768 = vmul.f32 %v3732, %v3160
        %v3769 = vmul.f32 %v3736, %v3165
        %v3770 = vmul.f32 %v3736, %v3166
        %v3771 = vmul.f32 %v3736, %v3167
        %v3772 = vmul.f32 %v3736, %v3168
        %v3773 = vmul.f32 %v3740, %v3173
        %v3774 = vmul.f32 %v3740, %v3174
        %v3775 = vmul.f32 %v3740, %v3175
        %v3776 = vmul.f32 %v3740, %v3176
        %v3777 = vadd.f32 %v3741, %v3745
        %v3778 = vadd.f32 %v3777, %v3749
        %v3779 = vadd.f32 %v3778, %v3753
        %v3780 = vadd.f32 %v3779, %v3757
        %v3781 = vadd.f32 %v3780, %v3761
        %v3782 = vadd.f32 %v3781, %v3765
        %v3783 = vadd.f32 %v3782, %v3769
        %v3784 = vadd.f32 %v3783, %v3773
        %v3785 = vadd.f32 %v3742, %v3746
        %v3786 = vadd.f32 %v3785, %v3750
        %v3787 = vadd.f32 %v3786, %v3754
        %v3788 = vadd.f32 %v3787, %v3758
        %v3789 = vadd.f32 %v3788, %v3762
        %v3790 = vadd.f32 %v3789, %v3766
        %v3791 = vadd.f32 %v3790, %v3770
        %v3792 = vadd.f32 %v3791, %v3774
        %v3793 = vadd.f32 %v3743, %v3747
        %v3794 = vadd.f32 %v3793, %v3751
        %v3795 = vadd.f32 %v3794, %v3755
        %v3796 = vadd.f32 %v3795, %v3759
        %v3797 = vadd.f32 %v3796, %v3763
        %v3798 = vadd.f32 %v3797, %v3767
        %v3799 = vadd.f32 %v3798, %v3771
        %v3800 = vadd.f32 %v3799, %v3775
        %v3801 = vadd.f32 %v3744, %v3748
        %v3802 = vadd.f32 %v3801, %v3752
        %v3803 = vadd.f32 %v3802, %v3756
        %v3804 = vadd.f32 %v3803, %v3760
        %v3805 = vadd.f32 %v3804, %v3764
        %v3806 = vadd.f32 %v3805, %v3768
        %v3807 = vadd.f32 %v3806, %v3772
        %v3808 = vadd.f32 %v3807, %v3776
        %v3809 = vld [vmem:[%s9] sm:$0xf]
        %v3810 = vld [vmem:[%s9 + $0x4] sm:$0xf]
        %v3811 = vld [vmem:[%s9 + $0x8] sm:$0xf]
        %v3812 = vld [vmem:[%s9 + $0xc] sm:$0xf]
        %v3813 = vld [vmem:[%s9 + $0x10] sm:$0xf]
        %v3814 = vld [vmem:[%s9 + $0x14] sm:$0xf]
        %v3815 = vld [vmem:[%s9 + $0x18] sm:$0xf]
        %v3816 = vld [vmem:[%s9 + $0x1c] sm:$0xf]
        %v3817 = vpack.c.bf16 %v3480, %v3472
        %v3818 = vpack.c.bf16 %v3496, %v3488
        %v3819 = vpack.c.bf16 %v3792, %v3784
        %v3820 = vpack.c.bf16 %v3808, %v3800
        %v3821 = vld [vmem:[%s10] sm:$0xff]
        %v3822 = vld [vmem:[%s10 + $0x8] sm:$0xff]
        %v3823 = vld [vmem:[%s10 + $0x10] sm:$0xff]
        %v3824 = vld [vmem:[%s10 + $0x18] sm:$0xff]
        %v3825 = vld [vmem:[%s10 + $0x20] sm:$0xff]
        %v3826 = vld [vmem:[%s10 + $0x28] sm:$0xff]
        %v3827 = vld [vmem:[%s10 + $0x30] sm:$0xff]
        %v3828 = vld [vmem:[%s10 + $0x38] sm:$0xff]
        %3830 = vset.pattern.permute.xlu0 0
        %3831 = vperm.xlu0 %3830, %v3821
        %v3832 = vpop.permute.xlu0 %3831
        %3835 = vset.pattern.permute.xlu0 0
        %3836 = vperm.xlu0 %3835, %v3822
        %v3837 = vpop.permute.xlu0 %3836
        %3840 = vset.pattern.permute.xlu0 0
        %3841 = vperm.xlu0 %3840, %v3823
        %v3842 = vpop.permute.xlu0 %3841
        %3845 = vset.pattern.permute.xlu0 0
        %3846 = vperm.xlu0 %3845, %v3824
        %v3847 = vpop.permute.xlu0 %3846
        %3850 = vset.pattern.permute.xlu0 0
        %3851 = vperm.xlu0 %3850, %v3825
        %v3852 = vpop.permute.xlu0 %3851
        %3855 = vset.pattern.permute.xlu0 0
        %3856 = vperm.xlu0 %3855, %v3826
        %v3857 = vpop.permute.xlu0 %3856
        %3860 = vset.pattern.permute.xlu0 0
        %3861 = vperm.xlu0 %3860, %v3827
        %v3862 = vpop.permute.xlu0 %3861
        %3865 = vset.pattern.permute.xlu0 0
        %3866 = vperm.xlu0 %3865, %v3828
        %v3867 = vpop.permute.xlu0 %3866
        %v3877 = vunpack.c.l.b16 %v3809
        %v3878 = vunpack.c.l.b16 %v3810
        %v3879 = vunpack.c.l.b16 %v3811
        %v3880 = vunpack.c.l.b16 %v3812
        %v3881 = vunpack.c.l.b16 %v3813
        %v3882 = vunpack.c.l.b16 %v3814
        %v3883 = vunpack.c.l.b16 %v3815
        %v3884 = vunpack.c.l.b16 %v3816
        %v3885 = vpack.c.b16 %v3878, %v3877
        %v3886 = vpack.c.b16 %v3880, %v3879
        %v3887 = vpack.c.b16 %v3882, %v3881
        %v3888 = vpack.c.b16 %v3884, %v3883
        %vm3889 = vcmask 523264
        %v3891 = vsel %vm3889, %v3885, 0
        %v3894 = vsel %vm3889, %v3886, 0
        %v3897 = vsel %vm3889, %v3887, 0
        %v3900 = vsel %vm3889, %v3888, 0
        %3902 = vmatprep.subr.bf16.mxu0 0
        %3903 = vmatpush1.bf16.msra.mxu0 0
        %3904 = vmatprep.subr.bf16.mxu0 0
        %3905 = vmatpush1.bf16.msra.mxu0 0
        %3906 = vmatprep.subr.bf16.mxu0 0
        %3907 = vmatpush1.bf16.msra.mxu0 0
        %3908 = vmatprep.subr.bf16.mxu0 0
        %3909 = vmatpush1.bf16.msra.mxu0 0
        %3910 = vmatprep.subr.bf16.mxu0 0
        %3911 = vmatpush1.bf16.msra.mxu0 %v3820
        %3912 = vmatprep.subr.bf16.mxu0 0
        %3913 = vmatpush1.bf16.msra.mxu0 %v3819
        %3914 = vmatprep.subr.bf16.mxu0 0
        %3915 = vmatpush1.bf16.msra.mxu0 %v3818
        %3916 = vmatprep.subr.bf16.mxu0 0
        %3917 = vmatpush1.bf16.msra.mxu0 %v3817
        %3918 = vmatprep.subr.bf16.mxu0 0
        %3919 = vmatpush2.bf16.msra.mxu0 0
        %3920 = vmatprep.subr.bf16.mxu0 0
        %3921 = vmatpush2.bf16.msra.mxu0 0
        %3922 = vmatprep.subr.bf16.mxu0 0
        %3923 = vmatpush2.bf16.msra.mxu0 0
        %3924 = vmatprep.subr.bf16.mxu0 0
        %3925 = vmatpush2.bf16.msra.mxu0 0
        %3926 = vmatprep.subr.bf16.mxu0 0
        %3927 = vmatpush2.bf16.msra.mxu0 0
        %3928 = vmatprep.subr.bf16.mxu0 0
        %3929 = vmatpush2.bf16.msra.mxu0 0
        %3930 = vmatprep.subr.bf16.mxu0 0
        %3931 = vmatpush2.bf16.msra.mxu0 0
        %3932 = vmatprep.subr.bf16.mxu0 0
        %3933 = vmatpush2.bf16.msra.mxu0 0
        %3934 = vmatprep.mubr.bf16.mxu0 0
        %3935 = vmatmul.mubr.bf16.gmra.mxu0 %v3891
        %v3936 = vpop.f32.mrf.mxu0
        %v3937 = vadd.f32 %v3832, %v3936
        %v3938 = vpop.f32.mrf.mxu0
        %v3939 = vpop.f32.mrf.mxu0
        %v3940 = vadd.f32 %v3837, %v3939
        %v3941 = vpop.f32.mrf.mxu0
        %3942 = vmatprep.mubr.bf16.mxu0 0
        %3943 = vmatmul.mubr.bf16.gmra.mxu0 %v3894
        %v3944 = vpop.f32.mrf.mxu0
        %v3945 = vadd.f32 %v3842, %v3944
        %v3946 = vpop.f32.mrf.mxu0
        %v3947 = vpop.f32.mrf.mxu0
        %v3948 = vadd.f32 %v3847, %v3947
        %v3949 = vpop.f32.mrf.mxu0
        %3950 = vmatprep.mubr.bf16.mxu0 0
        %3951 = vmatmul.mubr.bf16.gmra.mxu0 %v3897
        %v3952 = vpop.f32.mrf.mxu0
        %v3953 = vadd.f32 %v3852, %v3952
        %v3954 = vpop.f32.mrf.mxu0
        %v3955 = vpop.f32.mrf.mxu0
        %v3956 = vadd.f32 %v3857, %v3955
        %v3957 = vpop.f32.mrf.mxu0
        %3958 = vmatprep.mubr.bf16.mxu0 0
        %3959 = vmatmul.mubr.bf16.gmra.mxu0 %v3900
        %v3960 = vpop.f32.mrf.mxu0
        %v3961 = vadd.f32 %v3862, %v3960
        %v3962 = vpop.f32.mrf.mxu0
        %v3963 = vpop.f32.mrf.mxu0
        %v3964 = vadd.f32 %v3867, %v3963
        %v3965 = vpop.f32.mrf.mxu0
        %3966 = vdwg.mxu0
        %3967 = vst [vmem:[%s401] sm:$0xff] %v3937
        %3968 = vst [vmem:[%s401 + $0x8] sm:$0xff] %v3940
        %3969 = vst [vmem:[%s401 + $0x10] sm:$0xff] %v3945
        %3970 = vst [vmem:[%s401 + $0x18] sm:$0xff] %v3948
        %3971 = vst [vmem:[%s401 + $0x20] sm:$0xff] %v3953
        %3972 = vst [vmem:[%s401 + $0x28] sm:$0xff] %v3956
        %3973 = vst [vmem:[%s401 + $0x30] sm:$0xff] %v3961
        %3974 = vst [vmem:[%s401 + $0x38] sm:$0xff] %v3964
        %s3975 = sand.u32 %s285, 1
        %s3976 = scalar_lea.sflag [#allocation3], %s3975
        %s3977 = sand.u32 %s285, 1
        %s3978 = smul.addr %s3977, 64
        %s3979 = scalar_lea.vmem [#allocation2], %s3978
        // Predicated region
        $region65: #{tpu_custom_call.1} parent=63 // pred_check
          %p3980 = pneg %p295
        $region66: #{tpu_custom_call.1} parent=63 // pred_check_branch
          %3982 = sbr.rel (%p3980) target = $region68
        $region67: #{tpu_custom_call.1} parent=63 // pred_region
          %s3984 = ssub.s32 1024, 1024
          %3985 = vsyncadd %s3976, %s3984
          %s3986 = smul.addr %s29, 8
          %s3987 = sadd.s32 %s30, %s3986
          %s3988 = smul.addr %s3987, 128
          %s3989 = scalar_lea.hbm %s11, %s3988
          %s3990 = sshll.u32 %s3979, 4
          %s3991 = int_to_ptr.vmem [resolvable:$true] %s3990
          %3996 = dma.vmem_to_hbm [thread:$0]  %s3991, 1024, %s3989, %s3976, 128, 128, 8
        $region68: #{tpu_custom_call.1} parent=63 // pred_fallthru
          _
      $region64: #{tpu_custom_call.1} parent=5 // pred_fallthru
        _
      %p3997 = scmp.le.s32.totalorder 2, %s20
      // Predicated region
      $region69: #{tpu_custom_call.1} parent=5 // pred_check
        %p3998 = pneg %p3997
      $region70: #{tpu_custom_call.1} parent=5 // pred_check_branch
        %4000 = sbr.rel (%p3998) target = $region72
      $region71: #{tpu_custom_call.1} parent=5 // pred_region
        %s4001 = ssub.s32 %s20, 2
        // Predicated region
        $region73: #{tpu_custom_call.1} parent=71 // pred_check
          %p4002 = pneg %p301
        $region74: #{tpu_custom_call.1} parent=71 // pred_check_branch
          %4004 = sbr.rel (%p4002) target = $region76
        $region75: #{tpu_custom_call.1} parent=71 // pred_region
          %s4005 = sand.u32 %s286, 1
          %s4006 = scalar_lea.sflag [#allocation3], %s4005
          %s4007 = sand.u32 %s286, 1
          %s4008 = smul.addr %s4007, 64
          %s4009 = scalar_lea.vmem [#allocation2], %s4008
          %4010 = dma.done %s4006, 1024
        $region76: #{tpu_custom_call.1} parent=71 // pred_fallthru
          _
      $region72: #{tpu_custom_call.1} parent=5 // pred_fallthru
        _
    $region6: #{tpu_custom_call.1} parent=1 // loop_footer
      %s24 = sadd.s32 1, %s20
    $region7: #{tpu_custom_call.1} parent=1 // loop_footer_branch
      %19 = sbr.rel target = $region3
    $region8: #{tpu_custom_call.1} parent=1 // loop_exit
      _
    %4011 = vsyncpa [#allocation3], 1
    %s4012 = scalar_lea.sflag [#allocation3], 1
    %4013 = vsyncpa %s4012, 1

</llo_original>
